<compile_context>
chip_gen: v6e
topology: v6e:2x2x1
jax: 0.10.0
libtpu: 0.0.40
codegen_flags: <defaults>
</compile_context>

<pallas_src>
import functools

import jax
import jax.numpy as jnp
from jax.experimental import pallas as pl
from jax.experimental.pallas import tpu as pltpu

NUM_CHANNELS = 1
NUM_FEATURES = 64
BN_EPS = 1e-5

K1, S1, OH1 = 5, 2, 12       # conv1: 28x28 -> 12x12
K2, S2, OH2 = 5, 2, 4        # conv2: 12x12 -> 4x4
C1 = NUM_FEATURES            # 64
C2 = 2 * NUM_FEATURES        # 128
HW2 = OH2 * OH2              # 16
FLAT = C2 * HW2              # 2048
_VMEM_LIMIT = 32 * 1024 * 1024


# ----------------------------- Pallas kernels ------------------------------ #

def _conv_stack_kernel(p1_ref, w1_ref, w2_ref, y2_ref, stats_ref, *, tb):
    """Fused conv1+ReLU -> conv2 (+ BN partial sums) for one batch tile.

    p1_ref : (tb*256, 25)  bf16  conv1 im2col patches, rows ordered
             (n, phase, a, b) with phase = (h%2)*2 + (w%2), h = 2a + h%2,
             w = 2b + w%2, and the 6x6 phase maps zero-padded to 8x8 so all
             in-kernel reshapes stay sublane-aligned.
    w1_ref : (25, 64)      bf16
    w2_ref : (25, 64, 128) bf16  one (in, out) matrix per conv2 tap (kh, kw)
    y2_ref : (tb*16, 128)  f32   raw (pre-BN) conv2 output, rows (n, oh*4+ow)
    stats_ref : (1, 2, 128) f32  per-tile [sum; sum_of_squares] per channel
    """
    # conv1 as a single im2col matmul on the MXU (bf16 operands, f32 acc).
    y1 = jnp.dot(p1_ref[...], w1_ref[...], preferred_element_type=jnp.float32)
    y1 = jnp.maximum(y1, 0.0).reshape(tb, 4, 8, 8, C1)   # phase-split NHWC maps

    # conv2 as 25 tap-matmuls accumulated in f32 registers; thanks to the
    # phase-split layout every patch slice below is unit-stride (no gathers).
    acc = jnp.zeros((tb * HW2, C2), jnp.float32)
    for i in range(K2):
        for j in range(K2):
            phase = (i % 2) * 2 + (j % 2)
            a0, b0 = i // 2, j // 2
            patch = y1[:, phase, a0:a0 + OH2, b0:b0 + OH2, :]      # (tb,4,4,64)
            patch = patch.reshape(tb * HW2, C1).astype(jnp.bfloat16)
            acc = acc + jnp.dot(patch, w2_ref[i * K2 + j],
                                preferred_element_type=jnp.float32)

    y2_ref[...] = acc                                   # lane-dense (…,128) store
    # Partial sums for the *global* (whole-batch) BatchNorm statistics.
    s = jnp.sum(acc, axis=0, keepdims=True)
    sq = jnp.sum(acc * acc, axis=0, keepdims=True)
    stats_ref[0] = jnp.concatenate([s, sq], axis=0)


def _linear_sigmoid_kernel(x_ref, w_ref, b_ref, o_ref):
    """linear1 (with BN affine + flatten permutation folded in) + sigmoid."""
    y = jnp.dot(x_ref[...].astype(jnp.bfloat16), w_ref[...],
                preferred_element_type=jnp.float32)
    y = y + b_ref[...]
    o_ref[...] = 1.0 / (1.0 + jnp.exp(-y))              # exp -> EUP slot


# ------------------------------ JAX glue ----------------------------------- #

def _divisor_tile(n, cap):
    t = max(1, min(n, cap))
    while n % t:
        t -= 1
    return t


def _linear_tile(n, cap=256):
    if n <= cap:
        return n
    for t in range(cap, 7, -1):
        if n % t == 0 and t % 8 == 0:
            return t
    return n


def _conv1_patches(x):
    """(N,1,28,28) f32 -> (N*256, 25) bf16 phase-split im2col patches."""
    n = x.shape[0]
    x2 = x[:, 0]                                              # (N, 28, 28)
    cols = []
    for i in range(K1):
        for j in range(K1):
            cols.append(x2[:, i:i + S1 * OH1:S1, j:j + S1 * OH1:S1])  # (N,12,12)
    p = jnp.stack(cols, axis=-1)                              # (N,12,12,25)
    # Split each output coordinate into (coarse, parity), move the parity
    # (phase) dims forward and pad the 6x6 coarse maps to 8x8.
    p = p.reshape(n, 6, 2, 6, 2, K1 * K1).transpose(0, 2, 4, 1, 3, 5)
    p = jnp.pad(p, ((0, 0), (0, 0), (0, 0), (0, 2), (0, 2), (0, 0)))
    return p.reshape(n * 256, K1 * K1).astype(jnp.bfloat16)


def model_d_forward(x, params):
    """x: (N, 1, 28, 28) float32 -> (N, 64) float32 (sigmoid activations)."""
    w1, w2 = params["w1"], params["w2"]
    gamma, beta = params["gamma"], params["beta"]
    w_lin, b_lin = params["w_lin"], params["b_lin"]
    n = x.shape[0]

    tb = _divisor_tile(n, 8)            # conv-stack batch tile
    nt = n // tb

    # Weight repack / bf16 cast (constant-folded under jit).
    w1m = w1.reshape(C1, K1 * K1).T.astype(jnp.bfloat16)                    # (25,64)
    w2k = w2.transpose(2, 3, 1, 0).reshape(K2 * K2, C1, C2).astype(jnp.bfloat16)

    p1 = _conv1_patches(x)                                                  # (n*256,25)

    y2, stats = pl.pallas_call(
        functools.partial(_conv_stack_kernel, tb=tb),
        grid=(nt,),
        in_specs=[
            pl.BlockSpec((tb * 256, K1 * K1), lambda i: (i, 0)),
            pl.BlockSpec((K1 * K1, C1), lambda i: (0, 0)),
            pl.BlockSpec((K2 * K2, C1, C2), lambda i: (0, 0, 0)),
        ],
        out_specs=[
            pl.BlockSpec((tb * HW2, C2), lambda i: (i, 0)),
            pl.BlockSpec((1, 2, C2), lambda i: (i, 0, 0)),
        ],
        out_shape=[
            jax.ShapeDtypeStruct((n * HW2, C2), jnp.float32),
            jax.ShapeDtypeStruct((nt, 2, C2), jnp.float32),
        ],
        compiler_params=pltpu.CompilerParams(
            dimension_semantics=("parallel",),
            vmem_limit_bytes=_VMEM_LIMIT),
    )(p1, w1m, w2k)

    # --- global BatchNorm statistics (training mode, biased variance) ------
    tot = jnp.sum(stats, axis=0)                      # (2, 128)
    cnt = jnp.float32(n * HW2)
    mean = tot[0] / cnt
    var = jnp.maximum(tot[1] / cnt - mean * mean, 0.0)
    scale = gamma * jax.lax.rsqrt(var + BN_EPS)       # (128,)
    shift = beta - mean * scale                       # (128,)

    # --- fold BN affine + the NCHW flatten permutation into linear1 --------
    # PyTorch flattens (c, h, w); our y2 rows are (h, w) with channels minor,
    # so permute the *weight* columns once instead of transposing activations.
    w_hwc = w_lin.reshape(NUM_FEATURES, C2, HW2).transpose(0, 2, 1)
    w_hwc = w_hwc.reshape(NUM_FEATURES, FLAT)                     # (64, 2048)
    a_vec = jnp.tile(scale, HW2)                                  # (2048,)
    b_vec = jnp.tile(shift, HW2)
    w_eff = (w_hwc * a_vec[None, :]).T.astype(jnp.bfloat16)       # (2048, 64)
    b_eff = (b_lin + w_hwc @ b_vec).reshape(1, NUM_FEATURES)      # (1, 64)

    y2_flat = y2.reshape(n, FLAT)       # free reshape: rows already (n,h,w,c)

    tbb = _linear_tile(n)
    out = pl.pallas_call(
        _linear_sigmoid_kernel,
        grid=(n // tbb,),
        in_specs=[
            pl.BlockSpec((tbb, FLAT), lambda i: (i, 0)),
            pl.BlockSpec((FLAT, NUM_FEATURES), lambda i: (0, 0)),
            pl.BlockSpec((1, NUM_FEATURES), lambda i: (0, 0)),
        ],
        out_specs=pl.BlockSpec((tbb, NUM_FEATURES), lambda i: (i, 0)),
        out_shape=jax.ShapeDtypeStruct((n, NUM_FEATURES), jnp.float32),
        compiler_params=pltpu.CompilerParams(
            dimension_semantics=("parallel",),
            vmem_limit_bytes=_VMEM_LIMIT),
    )(y2_flat, w_eff, b_eff)
    return out


def init_params(key):
    k1, k2, k3, k4 = jax.random.split(key, 4)
    w1 = jax.random.normal(k1, (NUM_FEATURES, NUM_CHANNELS, 5, 5), jnp.float32) * 0.05
    w2 = jax.random.normal(k2, (2 * NUM_FEATURES, NUM_FEATURES, 5, 5), jnp.float32) * 0.05
    # BatchNorm2d defaults: weight=1, bias=0 (deterministic, like PyTorch init).
    gamma = jnp.ones((2 * NUM_FEATURES,), jnp.float32)
    beta = jnp.zeros((2 * NUM_FEATURES,), jnp.float32)
    w_lin = jax.random.normal(k3, (NUM_FEATURES, 2 * NUM_FEATURES * 4 * 4), jnp.float32) * 0.02
    b_lin = jax.random.normal(k4, (NUM_FEATURES,), jnp.float32) * 0.02
    return dict(w1=w1, w2=w2, gamma=gamma, beta=beta, w_lin=w_lin, b_lin=b_lin)


if __name__ == "__main__":
    key = jax.random.PRNGKey(0)
    pkey, xkey = jax.random.split(key)
    params = init_params(pkey)
    # Input must be 28x28 so that after two (k=5, s=2) convs the map is 4x4,
    # matching the hard-coded 128*4*4 flatten in the PyTorch module.
    x = jax.random.normal(xkey, (2, NUM_CHANNELS, 28, 28), jnp.float32)

    out = jax.jit(model_d_forward)(x, params)
    out = jax.block_until_ready(out)
    assert out.shape == (2, NUM_FEATURES), out.shape
    assert bool(jnp.all(jnp.isfinite(out)))
    assert bool(jnp.all((out >= 0.0) & (out <= 1.0)))  # sigmoid range
    print("KERNEL_OK")
</pallas_src>

<mosaic_0001>
module attributes {stable_mosaic.version = 11 : i64} {
  func.func @_conv_stack_kernel(%arg0: i32, %arg1: memref<512x25xbf16, #tpu.memory_space<vmem>>, %arg2: memref<25x64xbf16, #tpu.memory_space<vmem>>, %arg3: memref<25x64x128xbf16, #tpu.memory_space<vmem>>, %arg4: memref<32x128xf32, #tpu.memory_space<vmem>>, %arg5: memref<1x2x128xf32, #tpu.memory_space<vmem>>) attributes {dimension_semantics = [#tpu.dimension_semantics<parallel>], iteration_bounds = array<i64: 1>, scalar_prefetch = 0 : i64, scratch_operands = 0 : i64, tpu.core_type = #tpu.core_type<tc>, window_params = [{transform_indices = @transform_0, window_bounds = array<i64: 512, 25>}, {pipeline_mode = #tpu.pipeline_mode<synchronous>, transform_indices = @transform_1, window_bounds = array<i64: 25, 64>}, {pipeline_mode = #tpu.pipeline_mode<synchronous>, transform_indices = @transform_2, window_bounds = array<i64: 25, 64, 128>}, {transform_indices = @transform_3, window_bounds = array<i64: 32, 128>}, {transform_indices = @transform_4, window_bounds = array<i64: 1, 2, 128>}]} {
    %c0 = arith.constant 0 : index
    %c0_0 = arith.constant 0 : index
    %0 = vector.load %arg1[%c0, %c0_0] : memref<512x25xbf16, #tpu.memory_space<vmem>>, vector<512x25xbf16>
    %c0_1 = arith.constant 0 : index
    %c0_2 = arith.constant 0 : index
    %1 = vector.load %arg2[%c0_1, %c0_2] : memref<25x64xbf16, #tpu.memory_space<vmem>>, vector<25x64xbf16>
    %cst = arith.constant dense<0.000000e+00> : vector<512x64xf32>
    %2 = tpu.matmul %0, %1, %cst {dimension_numbers = #tpu.dot_dimension_numbers<[1], [0], [0], [1], [0, 0, 1, 1], [], []>} : vector<512x25xbf16>, vector<25x64xbf16>, vector<512x64xf32> -> vector<512x64xf32>
    %cst_3 = arith.constant 0.000000e+00 : f32
    %3 = vector.broadcast %cst_3 : f32 to vector<512x64xf32>
    %4 = arith.maximumf %2, %3 : vector<512x64xf32>
    %5 = vector.shape_cast %4 : vector<512x64xf32> to vector<2x4x8x8x64xf32>
    %cst_4 = arith.constant 0.000000e+00 : f32
    %6 = vector.broadcast %cst_4 : f32 to vector<32x128xf32>
    %7 = vector.extract_strided_slice %5 {offsets = [0, 0, 0, 0, 0], sizes = [2, 1, 4, 4, 64], strides = [1, 1, 1, 1, 1]} : vector<2x4x8x8x64xf32> to vector<2x1x4x4x64xf32>
    %8 = vector.shape_cast %7 : vector<2x1x4x4x64xf32> to vector<2x4x4x64xf32>
    %9 = vector.shape_cast %8 : vector<2x4x4x64xf32> to vector<32x64xf32>
    %10 = arith.truncf %9 : vector<32x64xf32> to vector<32x64xbf16>
    %c0_5 = arith.constant 0 : index
    %c0_6 = arith.constant 0 : index
    %c0_7 = arith.constant 0 : index
    %11 = vector.load %arg3[%c0_5, %c0_6, %c0_7] : memref<25x64x128xbf16, #tpu.memory_space<vmem>>, vector<1x64x128xbf16>
    %12 = vector.shape_cast %11 : vector<1x64x128xbf16> to vector<64x128xbf16>
    %cst_8 = arith.constant dense<0.000000e+00> : vector<32x128xf32>
    %13 = tpu.matmul %10, %12, %cst_8 {dimension_numbers = #tpu.dot_dimension_numbers<[1], [0], [0], [1], [0, 0, 1, 1], [], []>} : vector<32x64xbf16>, vector<64x128xbf16>, vector<32x128xf32> -> vector<32x128xf32>
    %14 = arith.addf %6, %13 : vector<32x128xf32>
    %15 = vector.extract_strided_slice %5 {offsets = [0, 1, 0, 0, 0], sizes = [2, 1, 4, 4, 64], strides = [1, 1, 1, 1, 1]} : vector<2x4x8x8x64xf32> to vector<2x1x4x4x64xf32>
    %16 = vector.shape_cast %15 : vector<2x1x4x4x64xf32> to vector<2x4x4x64xf32>
    %17 = vector.shape_cast %16 : vector<2x4x4x64xf32> to vector<32x64xf32>
    %18 = arith.truncf %17 : vector<32x64xf32> to vector<32x64xbf16>
    %c1 = arith.constant 1 : index
    %c0_9 = arith.constant 0 : index
    %c0_10 = arith.constant 0 : index
    %19 = vector.load %arg3[%c1, %c0_9, %c0_10] : memref<25x64x128xbf16, #tpu.memory_space<vmem>>, vector<1x64x128xbf16>
    %20 = vector.shape_cast %19 : vector<1x64x128xbf16> to vector<64x128xbf16>
    %cst_11 = arith.constant dense<0.000000e+00> : vector<32x128xf32>
    %21 = tpu.matmul %18, %20, %cst_11 {dimension_numbers = #tpu.dot_dimension_numbers<[1], [0], [0], [1], [0, 0, 1, 1], [], []>} : vector<32x64xbf16>, vector<64x128xbf16>, vector<32x128xf32> -> vector<32x128xf32>
    %22 = arith.addf %14, %21 : vector<32x128xf32>
    %23 = vector.extract_strided_slice %5 {offsets = [0, 0, 0, 1, 0], sizes = [2, 1, 4, 4, 64], strides = [1, 1, 1, 1, 1]} : vector<2x4x8x8x64xf32> to vector<2x1x4x4x64xf32>
    %24 = vector.shape_cast %23 : vector<2x1x4x4x64xf32> to vector<2x4x4x64xf32>
    %25 = vector.shape_cast %24 : vector<2x4x4x64xf32> to vector<32x64xf32>
    %26 = arith.truncf %25 : vector<32x64xf32> to vector<32x64xbf16>
    %c2 = arith.constant 2 : index
    %c0_12 = arith.constant 0 : index
    %c0_13 = arith.constant 0 : index
    %27 = vector.load %arg3[%c2, %c0_12, %c0_13] : memref<25x64x128xbf16, #tpu.memory_space<vmem>>, vector<1x64x128xbf16>
    %28 = vector.shape_cast %27 : vector<1x64x128xbf16> to vector<64x128xbf16>
    %cst_14 = arith.constant dense<0.000000e+00> : vector<32x128xf32>
    %29 = tpu.matmul %26, %28, %cst_14 {dimension_numbers = #tpu.dot_dimension_numbers<[1], [0], [0], [1], [0, 0, 1, 1], [], []>} : vector<32x64xbf16>, vector<64x128xbf16>, vector<32x128xf32> -> vector<32x128xf32>
    %30 = arith.addf %22, %29 : vector<32x128xf32>
    %31 = vector.extract_strided_slice %5 {offsets = [0, 1, 0, 1, 0], sizes = [2, 1, 4, 4, 64], strides = [1, 1, 1, 1, 1]} : vector<2x4x8x8x64xf32> to vector<2x1x4x4x64xf32>
    %32 = vector.shape_cast %31 : vector<2x1x4x4x64xf32> to vector<2x4x4x64xf32>
    %33 = vector.shape_cast %32 : vector<2x4x4x64xf32> to vector<32x64xf32>
    %34 = arith.truncf %33 : vector<32x64xf32> to vector<32x64xbf16>
    %c3 = arith.constant 3 : index
    %c0_15 = arith.constant 0 : index
    %c0_16 = arith.constant 0 : index
    %35 = vector.load %arg3[%c3, %c0_15, %c0_16] : memref<25x64x128xbf16, #tpu.memory_space<vmem>>, vector<1x64x128xbf16>
    %36 = vector.shape_cast %35 : vector<1x64x128xbf16> to vector<64x128xbf16>
    %cst_17 = arith.constant dense<0.000000e+00> : vector<32x128xf32>
    %37 = tpu.matmul %34, %36, %cst_17 {dimension_numbers = #tpu.dot_dimension_numbers<[1], [0], [0], [1], [0, 0, 1, 1], [], []>} : vector<32x64xbf16>, vector<64x128xbf16>, vector<32x128xf32> -> vector<32x128xf32>
    %38 = arith.addf %30, %37 : vector<32x128xf32>
    %39 = vector.extract_strided_slice %5 {offsets = [0, 0, 0, 2, 0], sizes = [2, 1, 4, 4, 64], strides = [1, 1, 1, 1, 1]} : vector<2x4x8x8x64xf32> to vector<2x1x4x4x64xf32>
    %40 = vector.shape_cast %39 : vector<2x1x4x4x64xf32> to vector<2x4x4x64xf32>
    %41 = vector.shape_cast %40 : vector<2x4x4x64xf32> to vector<32x64xf32>
    %42 = arith.truncf %41 : vector<32x64xf32> to vector<32x64xbf16>
    %c4 = arith.constant 4 : index
    %c0_18 = arith.constant 0 : index
    %c0_19 = arith.constant 0 : index
    %43 = vector.load %arg3[%c4, %c0_18, %c0_19] : memref<25x64x128xbf16, #tpu.memory_space<vmem>>, vector<1x64x128xbf16>
    %44 = vector.shape_cast %43 : vector<1x64x128xbf16> to vector<64x128xbf16>
    %cst_20 = arith.constant dense<0.000000e+00> : vector<32x128xf32>
    %45 = tpu.matmul %42, %44, %cst_20 {dimension_numbers = #tpu.dot_dimension_numbers<[1], [0], [0], [1], [0, 0, 1, 1], [], []>} : vector<32x64xbf16>, vector<64x128xbf16>, vector<32x128xf32> -> vector<32x128xf32>
    %46 = arith.addf %38, %45 : vector<32x128xf32>
    %47 = vector.extract_strided_slice %5 {offsets = [0, 2, 0, 0, 0], sizes = [2, 1, 4, 4, 64], strides = [1, 1, 1, 1, 1]} : vector<2x4x8x8x64xf32> to vector<2x1x4x4x64xf32>
    %48 = vector.shape_cast %47 : vector<2x1x4x4x64xf32> to vector<2x4x4x64xf32>
    %49 = vector.shape_cast %48 : vector<2x4x4x64xf32> to vector<32x64xf32>
    %50 = arith.truncf %49 : vector<32x64xf32> to vector<32x64xbf16>
    %c5 = arith.constant 5 : index
    %c0_21 = arith.constant 0 : index
    %c0_22 = arith.constant 0 : index
    %51 = vector.load %arg3[%c5, %c0_21, %c0_22] : memref<25x64x128xbf16, #tpu.memory_space<vmem>>, vector<1x64x128xbf16>
    %52 = vector.shape_cast %51 : vector<1x64x128xbf16> to vector<64x128xbf16>
    %cst_23 = arith.constant dense<0.000000e+00> : vector<32x128xf32>
    %53 = tpu.matmul %50, %52, %cst_23 {dimension_numbers = #tpu.dot_dimension_numbers<[1], [0], [0], [1], [0, 0, 1, 1], [], []>} : vector<32x64xbf16>, vector<64x128xbf16>, vector<32x128xf32> -> vector<32x128xf32>
    %54 = arith.addf %46, %53 : vector<32x128xf32>
    %55 = vector.extract_strided_slice %5 {offsets = [0, 3, 0, 0, 0], sizes = [2, 1, 4, 4, 64], strides = [1, 1, 1, 1, 1]} : vector<2x4x8x8x64xf32> to vector<2x1x4x4x64xf32>
    %56 = vector.shape_cast %55 : vector<2x1x4x4x64xf32> to vector<2x4x4x64xf32>
    %57 = vector.shape_cast %56 : vector<2x4x4x64xf32> to vector<32x64xf32>
    %58 = arith.truncf %57 : vector<32x64xf32> to vector<32x64xbf16>
    %c6 = arith.constant 6 : index
    %c0_24 = arith.constant 0 : index
    %c0_25 = arith.constant 0 : index
    %59 = vector.load %arg3[%c6, %c0_24, %c0_25] : memref<25x64x128xbf16, #tpu.memory_space<vmem>>, vector<1x64x128xbf16>
    %60 = vector.shape_cast %59 : vector<1x64x128xbf16> to vector<64x128xbf16>
    %cst_26 = arith.constant dense<0.000000e+00> : vector<32x128xf32>
    %61 = tpu.matmul %58, %60, %cst_26 {dimension_numbers = #tpu.dot_dimension_numbers<[1], [0], [0], [1], [0, 0, 1, 1], [], []>} : vector<32x64xbf16>, vector<64x128xbf16>, vector<32x128xf32> -> vector<32x128xf32>
    %62 = arith.addf %54, %61 : vector<32x128xf32>
    %63 = vector.extract_strided_slice %5 {offsets = [0, 2, 0, 1, 0], sizes = [2, 1, 4, 4, 64], strides = [1, 1, 1, 1, 1]} : vector<2x4x8x8x64xf32> to vector<2x1x4x4x64xf32>
    %64 = vector.shape_cast %63 : vector<2x1x4x4x64xf32> to vector<2x4x4x64xf32>
    %65 = vector.shape_cast %64 : vector<2x4x4x64xf32> to vector<32x64xf32>
    %66 = arith.truncf %65 : vector<32x64xf32> to vector<32x64xbf16>
    %c7 = arith.constant 7 : index
    %c0_27 = arith.constant 0 : index
    %c0_28 = arith.constant 0 : index
    %67 = vector.load %arg3[%c7, %c0_27, %c0_28] : memref<25x64x128xbf16, #tpu.memory_space<vmem>>, vector<1x64x128xbf16>
    %68 = vector.shape_cast %67 : vector<1x64x128xbf16> to vector<64x128xbf16>
    %cst_29 = arith.constant dense<0.000000e+00> : vector<32x128xf32>
    %69 = tpu.matmul %66, %68, %cst_29 {dimension_numbers = #tpu.dot_dimension_numbers<[1], [0], [0], [1], [0, 0, 1, 1], [], []>} : vector<32x64xbf16>, vector<64x128xbf16>, vector<32x128xf32> -> vector<32x128xf32>
    %70 = arith.addf %62, %69 : vector<32x128xf32>
    %71 = vector.extract_strided_slice %5 {offsets = [0, 3, 0, 1, 0], sizes = [2, 1, 4, 4, 64], strides = [1, 1, 1, 1, 1]} : vector<2x4x8x8x64xf32> to vector<2x1x4x4x64xf32>
    %72 = vector.shape_cast %71 : vector<2x1x4x4x64xf32> to vector<2x4x4x64xf32>
    %73 = vector.shape_cast %72 : vector<2x4x4x64xf32> to vector<32x64xf32>
    %74 = arith.truncf %73 : vector<32x64xf32> to vector<32x64xbf16>
    %c8 = arith.constant 8 : index
    %c0_30 = arith.constant 0 : index
    %c0_31 = arith.constant 0 : index
    %75 = vector.load %arg3[%c8, %c0_30, %c0_31] : memref<25x64x128xbf16, #tpu.memory_space<vmem>>, vector<1x64x128xbf16>
    %76 = vector.shape_cast %75 : vector<1x64x128xbf16> to vector<64x128xbf16>
    %cst_32 = arith.constant dense<0.000000e+00> : vector<32x128xf32>
    %77 = tpu.matmul %74, %76, %cst_32 {dimension_numbers = #tpu.dot_dimension_numbers<[1], [0], [0], [1], [0, 0, 1, 1], [], []>} : vector<32x64xbf16>, vector<64x128xbf16>, vector<32x128xf32> -> vector<32x128xf32>
    %78 = arith.addf %70, %77 : vector<32x128xf32>
    %79 = vector.extract_strided_slice %5 {offsets = [0, 2, 0, 2, 0], sizes = [2, 1, 4, 4, 64], strides = [1, 1, 1, 1, 1]} : vector<2x4x8x8x64xf32> to vector<2x1x4x4x64xf32>
    %80 = vector.shape_cast %79 : vector<2x1x4x4x64xf32> to vector<2x4x4x64xf32>
    %81 = vector.shape_cast %80 : vector<2x4x4x64xf32> to vector<32x64xf32>
    %82 = arith.truncf %81 : vector<32x64xf32> to vector<32x64xbf16>
    %c9 = arith.constant 9 : index
    %c0_33 = arith.constant 0 : index
    %c0_34 = arith.constant 0 : index
    %83 = vector.load %arg3[%c9, %c0_33, %c0_34] : memref<25x64x128xbf16, #tpu.memory_space<vmem>>, vector<1x64x128xbf16>
    %84 = vector.shape_cast %83 : vector<1x64x128xbf16> to vector<64x128xbf16>
    %cst_35 = arith.constant dense<0.000000e+00> : vector<32x128xf32>
    %85 = tpu.matmul %82, %84, %cst_35 {dimension_numbers = #tpu.dot_dimension_numbers<[1], [0], [0], [1], [0, 0, 1, 1], [], []>} : vector<32x64xbf16>, vector<64x128xbf16>, vector<32x128xf32> -> vector<32x128xf32>
    %86 = arith.addf %78, %85 : vector<32x128xf32>
    %87 = vector.extract_strided_slice %5 {offsets = [0, 0, 1, 0, 0], sizes = [2, 1, 4, 4, 64], strides = [1, 1, 1, 1, 1]} : vector<2x4x8x8x64xf32> to vector<2x1x4x4x64xf32>
    %88 = vector.shape_cast %87 : vector<2x1x4x4x64xf32> to vector<2x4x4x64xf32>
    %89 = vector.shape_cast %88 : vector<2x4x4x64xf32> to vector<32x64xf32>
    %90 = arith.truncf %89 : vector<32x64xf32> to vector<32x64xbf16>
    %c10 = arith.constant 10 : index
    %c0_36 = arith.constant 0 : index
    %c0_37 = arith.constant 0 : index
    %91 = vector.load %arg3[%c10, %c0_36, %c0_37] : memref<25x64x128xbf16, #tpu.memory_space<vmem>>, vector<1x64x128xbf16>
    %92 = vector.shape_cast %91 : vector<1x64x128xbf16> to vector<64x128xbf16>
    %cst_38 = arith.constant dense<0.000000e+00> : vector<32x128xf32>
    %93 = tpu.matmul %90, %92, %cst_38 {dimension_numbers = #tpu.dot_dimension_numbers<[1], [0], [0], [1], [0, 0, 1, 1], [], []>} : vector<32x64xbf16>, vector<64x128xbf16>, vector<32x128xf32> -> vector<32x128xf32>
    %94 = arith.addf %86, %93 : vector<32x128xf32>
    %95 = vector.extract_strided_slice %5 {offsets = [0, 1, 1, 0, 0], sizes = [2, 1, 4, 4, 64], strides = [1, 1, 1, 1, 1]} : vector<2x4x8x8x64xf32> to vector<2x1x4x4x64xf32>
    %96 = vector.shape_cast %95 : vector<2x1x4x4x64xf32> to vector<2x4x4x64xf32>
    %97 = vector.shape_cast %96 : vector<2x4x4x64xf32> to vector<32x64xf32>
    %98 = arith.truncf %97 : vector<32x64xf32> to vector<32x64xbf16>
    %c11 = arith.constant 11 : index
    %c0_39 = arith.constant 0 : index
    %c0_40 = arith.constant 0 : index
    %99 = vector.load %arg3[%c11, %c0_39, %c0_40] : memref<25x64x128xbf16, #tpu.memory_space<vmem>>, vector<1x64x128xbf16>
    %100 = vector.shape_cast %99 : vector<1x64x128xbf16> to vector<64x128xbf16>
    %cst_41 = arith.constant dense<0.000000e+00> : vector<32x128xf32>
    %101 = tpu.matmul %98, %100, %cst_41 {dimension_numbers = #tpu.dot_dimension_numbers<[1], [0], [0], [1], [0, 0, 1, 1], [], []>} : vector<32x64xbf16>, vector<64x128xbf16>, vector<32x128xf32> -> vector<32x128xf32>
    %102 = arith.addf %94, %101 : vector<32x128xf32>
    %103 = vector.extract_strided_slice %5 {offsets = [0, 0, 1, 1, 0], sizes = [2, 1, 4, 4, 64], strides = [1, 1, 1, 1, 1]} : vector<2x4x8x8x64xf32> to vector<2x1x4x4x64xf32>
    %104 = vector.shape_cast %103 : vector<2x1x4x4x64xf32> to vector<2x4x4x64xf32>
    %105 = vector.shape_cast %104 : vector<2x4x4x64xf32> to vector<32x64xf32>
    %106 = arith.truncf %105 : vector<32x64xf32> to vector<32x64xbf16>
    %c12 = arith.constant 12 : index
    %c0_42 = arith.constant 0 : index
    %c0_43 = arith.constant 0 : index
    %107 = vector.load %arg3[%c12, %c0_42, %c0_43] : memref<25x64x128xbf16, #tpu.memory_space<vmem>>, vector<1x64x128xbf16>
    %108 = vector.shape_cast %107 : vector<1x64x128xbf16> to vector<64x128xbf16>
    %cst_44 = arith.constant dense<0.000000e+00> : vector<32x128xf32>
    %109 = tpu.matmul %106, %108, %cst_44 {dimension_numbers = #tpu.dot_dimension_numbers<[1], [0], [0], [1], [0, 0, 1, 1], [], []>} : vector<32x64xbf16>, vector<64x128xbf16>, vector<32x128xf32> -> vector<32x128xf32>
    %110 = arith.addf %102, %109 : vector<32x128xf32>
    %111 = vector.extract_strided_slice %5 {offsets = [0, 1, 1, 1, 0], sizes = [2, 1, 4, 4, 64], strides = [1, 1, 1, 1, 1]} : vector<2x4x8x8x64xf32> to vector<2x1x4x4x64xf32>
    %112 = vector.shape_cast %111 : vector<2x1x4x4x64xf32> to vector<2x4x4x64xf32>
    %113 = vector.shape_cast %112 : vector<2x4x4x64xf32> to vector<32x64xf32>
    %114 = arith.truncf %113 : vector<32x64xf32> to vector<32x64xbf16>
    %c13 = arith.constant 13 : index
    %c0_45 = arith.constant 0 : index
    %c0_46 = arith.constant 0 : index
    %115 = vector.load %arg3[%c13, %c0_45, %c0_46] : memref<25x64x128xbf16, #tpu.memory_space<vmem>>, vector<1x64x128xbf16>
    %116 = vector.shape_cast %115 : vector<1x64x128xbf16> to vector<64x128xbf16>
    %cst_47 = arith.constant dense<0.000000e+00> : vector<32x128xf32>
    %117 = tpu.matmul %114, %116, %cst_47 {dimension_numbers = #tpu.dot_dimension_numbers<[1], [0], [0], [1], [0, 0, 1, 1], [], []>} : vector<32x64xbf16>, vector<64x128xbf16>, vector<32x128xf32> -> vector<32x128xf32>
    %118 = arith.addf %110, %117 : vector<32x128xf32>
    %119 = vector.extract_strided_slice %5 {offsets = [0, 0, 1, 2, 0], sizes = [2, 1, 4, 4, 64], strides = [1, 1, 1, 1, 1]} : vector<2x4x8x8x64xf32> to vector<2x1x4x4x64xf32>
    %120 = vector.shape_cast %119 : vector<2x1x4x4x64xf32> to vector<2x4x4x64xf32>
    %121 = vector.shape_cast %120 : vector<2x4x4x64xf32> to vector<32x64xf32>
    %122 = arith.truncf %121 : vector<32x64xf32> to vector<32x64xbf16>
    %c14 = arith.constant 14 : index
    %c0_48 = arith.constant 0 : index
    %c0_49 = arith.constant 0 : index
    %123 = vector.load %arg3[%c14, %c0_48, %c0_49] : memref<25x64x128xbf16, #tpu.memory_space<vmem>>, vector<1x64x128xbf16>
    %124 = vector.shape_cast %123 : vector<1x64x128xbf16> to vector<64x128xbf16>
    %cst_50 = arith.constant dense<0.000000e+00> : vector<32x128xf32>
    %125 = tpu.matmul %122, %124, %cst_50 {dimension_numbers = #tpu.dot_dimension_numbers<[1], [0], [0], [1], [0, 0, 1, 1], [], []>} : vector<32x64xbf16>, vector<64x128xbf16>, vector<32x128xf32> -> vector<32x128xf32>
    %126 = arith.addf %118, %125 : vector<32x128xf32>
    %127 = vector.extract_strided_slice %5 {offsets = [0, 2, 1, 0, 0], sizes = [2, 1, 4, 4, 64], strides = [1, 1, 1, 1, 1]} : vector<2x4x8x8x64xf32> to vector<2x1x4x4x64xf32>
    %128 = vector.shape_cast %127 : vector<2x1x4x4x64xf32> to vector<2x4x4x64xf32>
    %129 = vector.shape_cast %128 : vector<2x4x4x64xf32> to vector<32x64xf32>
    %130 = arith.truncf %129 : vector<32x64xf32> to vector<32x64xbf16>
    %c15 = arith.constant 15 : index
    %c0_51 = arith.constant 0 : index
    %c0_52 = arith.constant 0 : index
    %131 = vector.load %arg3[%c15, %c0_51, %c0_52] : memref<25x64x128xbf16, #tpu.memory_space<vmem>>, vector<1x64x128xbf16>
    %132 = vector.shape_cast %131 : vector<1x64x128xbf16> to vector<64x128xbf16>
    %cst_53 = arith.constant dense<0.000000e+00> : vector<32x128xf32>
    %133 = tpu.matmul %130, %132, %cst_53 {dimension_numbers = #tpu.dot_dimension_numbers<[1], [0], [0], [1], [0, 0, 1, 1], [], []>} : vector<32x64xbf16>, vector<64x128xbf16>, vector<32x128xf32> -> vector<32x128xf32>
    %134 = arith.addf %126, %133 : vector<32x128xf32>
    %135 = vector.extract_strided_slice %5 {offsets = [0, 3, 1, 0, 0], sizes = [2, 1, 4, 4, 64], strides = [1, 1, 1, 1, 1]} : vector<2x4x8x8x64xf32> to vector<2x1x4x4x64xf32>
    %136 = vector.shape_cast %135 : vector<2x1x4x4x64xf32> to vector<2x4x4x64xf32>
    %137 = vector.shape_cast %136 : vector<2x4x4x64xf32> to vector<32x64xf32>
    %138 = arith.truncf %137 : vector<32x64xf32> to vector<32x64xbf16>
    %c16 = arith.constant 16 : index
    %c0_54 = arith.constant 0 : index
    %c0_55 = arith.constant 0 : index
    %139 = vector.load %arg3[%c16, %c0_54, %c0_55] : memref<25x64x128xbf16, #tpu.memory_space<vmem>>, vector<1x64x128xbf16>
    %140 = vector.shape_cast %139 : vector<1x64x128xbf16> to vector<64x128xbf16>
    %cst_56 = arith.constant dense<0.000000e+00> : vector<32x128xf32>
    %141 = tpu.matmul %138, %140, %cst_56 {dimension_numbers = #tpu.dot_dimension_numbers<[1], [0], [0], [1], [0, 0, 1, 1], [], []>} : vector<32x64xbf16>, vector<64x128xbf16>, vector<32x128xf32> -> vector<32x128xf32>
    %142 = arith.addf %134, %141 : vector<32x128xf32>
    %143 = vector.extract_strided_slice %5 {offsets = [0, 2, 1, 1, 0], sizes = [2, 1, 4, 4, 64], strides = [1, 1, 1, 1, 1]} : vector<2x4x8x8x64xf32> to vector<2x1x4x4x64xf32>
    %144 = vector.shape_cast %143 : vector<2x1x4x4x64xf32> to vector<2x4x4x64xf32>
    %145 = vector.shape_cast %144 : vector<2x4x4x64xf32> to vector<32x64xf32>
    %146 = arith.truncf %145 : vector<32x64xf32> to vector<32x64xbf16>
    %c17 = arith.constant 17 : index
    %c0_57 = arith.constant 0 : index
    %c0_58 = arith.constant 0 : index
    %147 = vector.load %arg3[%c17, %c0_57, %c0_58] : memref<25x64x128xbf16, #tpu.memory_space<vmem>>, vector<1x64x128xbf16>
    %148 = vector.shape_cast %147 : vector<1x64x128xbf16> to vector<64x128xbf16>
    %cst_59 = arith.constant dense<0.000000e+00> : vector<32x128xf32>
    %149 = tpu.matmul %146, %148, %cst_59 {dimension_numbers = #tpu.dot_dimension_numbers<[1], [0], [0], [1], [0, 0, 1, 1], [], []>} : vector<32x64xbf16>, vector<64x128xbf16>, vector<32x128xf32> -> vector<32x128xf32>
    %150 = arith.addf %142, %149 : vector<32x128xf32>
    %151 = vector.extract_strided_slice %5 {offsets = [0, 3, 1, 1, 0], sizes = [2, 1, 4, 4, 64], strides = [1, 1, 1, 1, 1]} : vector<2x4x8x8x64xf32> to vector<2x1x4x4x64xf32>
    %152 = vector.shape_cast %151 : vector<2x1x4x4x64xf32> to vector<2x4x4x64xf32>
    %153 = vector.shape_cast %152 : vector<2x4x4x64xf32> to vector<32x64xf32>
    %154 = arith.truncf %153 : vector<32x64xf32> to vector<32x64xbf16>
    %c18 = arith.constant 18 : index
    %c0_60 = arith.constant 0 : index
    %c0_61 = arith.constant 0 : index
    %155 = vector.load %arg3[%c18, %c0_60, %c0_61] : memref<25x64x128xbf16, #tpu.memory_space<vmem>>, vector<1x64x128xbf16>
    %156 = vector.shape_cast %155 : vector<1x64x128xbf16> to vector<64x128xbf16>
    %cst_62 = arith.constant dense<0.000000e+00> : vector<32x128xf32>
    %157 = tpu.matmul %154, %156, %cst_62 {dimension_numbers = #tpu.dot_dimension_numbers<[1], [0], [0], [1], [0, 0, 1, 1], [], []>} : vector<32x64xbf16>, vector<64x128xbf16>, vector<32x128xf32> -> vector<32x128xf32>
    %158 = arith.addf %150, %157 : vector<32x128xf32>
    %159 = vector.extract_strided_slice %5 {offsets = [0, 2, 1, 2, 0], sizes = [2, 1, 4, 4, 64], strides = [1, 1, 1, 1, 1]} : vector<2x4x8x8x64xf32> to vector<2x1x4x4x64xf32>
    %160 = vector.shape_cast %159 : vector<2x1x4x4x64xf32> to vector<2x4x4x64xf32>
    %161 = vector.shape_cast %160 : vector<2x4x4x64xf32> to vector<32x64xf32>
    %162 = arith.truncf %161 : vector<32x64xf32> to vector<32x64xbf16>
    %c19 = arith.constant 19 : index
    %c0_63 = arith.constant 0 : index
    %c0_64 = arith.constant 0 : index
    %163 = vector.load %arg3[%c19, %c0_63, %c0_64] : memref<25x64x128xbf16, #tpu.memory_space<vmem>>, vector<1x64x128xbf16>
    %164 = vector.shape_cast %163 : vector<1x64x128xbf16> to vector<64x128xbf16>
    %cst_65 = arith.constant dense<0.000000e+00> : vector<32x128xf32>
    %165 = tpu.matmul %162, %164, %cst_65 {dimension_numbers = #tpu.dot_dimension_numbers<[1], [0], [0], [1], [0, 0, 1, 1], [], []>} : vector<32x64xbf16>, vector<64x128xbf16>, vector<32x128xf32> -> vector<32x128xf32>
    %166 = arith.addf %158, %165 : vector<32x128xf32>
    %167 = vector.extract_strided_slice %5 {offsets = [0, 0, 2, 0, 0], sizes = [2, 1, 4, 4, 64], strides = [1, 1, 1, 1, 1]} : vector<2x4x8x8x64xf32> to vector<2x1x4x4x64xf32>
    %168 = vector.shape_cast %167 : vector<2x1x4x4x64xf32> to vector<2x4x4x64xf32>
    %169 = vector.shape_cast %168 : vector<2x4x4x64xf32> to vector<32x64xf32>
    %170 = arith.truncf %169 : vector<32x64xf32> to vector<32x64xbf16>
    %c20 = arith.constant 20 : index
    %c0_66 = arith.constant 0 : index
    %c0_67 = arith.constant 0 : index
    %171 = vector.load %arg3[%c20, %c0_66, %c0_67] : memref<25x64x128xbf16, #tpu.memory_space<vmem>>, vector<1x64x128xbf16>
    %172 = vector.shape_cast %171 : vector<1x64x128xbf16> to vector<64x128xbf16>
    %cst_68 = arith.constant dense<0.000000e+00> : vector<32x128xf32>
    %173 = tpu.matmul %170, %172, %cst_68 {dimension_numbers = #tpu.dot_dimension_numbers<[1], [0], [0], [1], [0, 0, 1, 1], [], []>} : vector<32x64xbf16>, vector<64x128xbf16>, vector<32x128xf32> -> vector<32x128xf32>
    %174 = arith.addf %166, %173 : vector<32x128xf32>
    %175 = vector.extract_strided_slice %5 {offsets = [0, 1, 2, 0, 0], sizes = [2, 1, 4, 4, 64], strides = [1, 1, 1, 1, 1]} : vector<2x4x8x8x64xf32> to vector<2x1x4x4x64xf32>
    %176 = vector.shape_cast %175 : vector<2x1x4x4x64xf32> to vector<2x4x4x64xf32>
    %177 = vector.shape_cast %176 : vector<2x4x4x64xf32> to vector<32x64xf32>
    %178 = arith.truncf %177 : vector<32x64xf32> to vector<32x64xbf16>
    %c21 = arith.constant 21 : index
    %c0_69 = arith.constant 0 : index
    %c0_70 = arith.constant 0 : index
    %179 = vector.load %arg3[%c21, %c0_69, %c0_70] : memref<25x64x128xbf16, #tpu.memory_space<vmem>>, vector<1x64x128xbf16>
    %180 = vector.shape_cast %179 : vector<1x64x128xbf16> to vector<64x128xbf16>
    %cst_71 = arith.constant dense<0.000000e+00> : vector<32x128xf32>
    %181 = tpu.matmul %178, %180, %cst_71 {dimension_numbers = #tpu.dot_dimension_numbers<[1], [0], [0], [1], [0, 0, 1, 1], [], []>} : vector<32x64xbf16>, vector<64x128xbf16>, vector<32x128xf32> -> vector<32x128xf32>
    %182 = arith.addf %174, %181 : vector<32x128xf32>
    %183 = vector.extract_strided_slice %5 {offsets = [0, 0, 2, 1, 0], sizes = [2, 1, 4, 4, 64], strides = [1, 1, 1, 1, 1]} : vector<2x4x8x8x64xf32> to vector<2x1x4x4x64xf32>
    %184 = vector.shape_cast %183 : vector<2x1x4x4x64xf32> to vector<2x4x4x64xf32>
    %185 = vector.shape_cast %184 : vector<2x4x4x64xf32> to vector<32x64xf32>
    %186 = arith.truncf %185 : vector<32x64xf32> to vector<32x64xbf16>
    %c22 = arith.constant 22 : index
    %c0_72 = arith.constant 0 : index
    %c0_73 = arith.constant 0 : index
    %187 = vector.load %arg3[%c22, %c0_72, %c0_73] : memref<25x64x128xbf16, #tpu.memory_space<vmem>>, vector<1x64x128xbf16>
    %188 = vector.shape_cast %187 : vector<1x64x128xbf16> to vector<64x128xbf16>
    %cst_74 = arith.constant dense<0.000000e+00> : vector<32x128xf32>
    %189 = tpu.matmul %186, %188, %cst_74 {dimension_numbers = #tpu.dot_dimension_numbers<[1], [0], [0], [1], [0, 0, 1, 1], [], []>} : vector<32x64xbf16>, vector<64x128xbf16>, vector<32x128xf32> -> vector<32x128xf32>
    %190 = arith.addf %182, %189 : vector<32x128xf32>
    %191 = vector.extract_strided_slice %5 {offsets = [0, 1, 2, 1, 0], sizes = [2, 1, 4, 4, 64], strides = [1, 1, 1, 1, 1]} : vector<2x4x8x8x64xf32> to vector<2x1x4x4x64xf32>
    %192 = vector.shape_cast %191 : vector<2x1x4x4x64xf32> to vector<2x4x4x64xf32>
    %193 = vector.shape_cast %192 : vector<2x4x4x64xf32> to vector<32x64xf32>
    %194 = arith.truncf %193 : vector<32x64xf32> to vector<32x64xbf16>
    %c23 = arith.constant 23 : index
    %c0_75 = arith.constant 0 : index
    %c0_76 = arith.constant 0 : index
    %195 = vector.load %arg3[%c23, %c0_75, %c0_76] : memref<25x64x128xbf16, #tpu.memory_space<vmem>>, vector<1x64x128xbf16>
    %196 = vector.shape_cast %195 : vector<1x64x128xbf16> to vector<64x128xbf16>
    %cst_77 = arith.constant dense<0.000000e+00> : vector<32x128xf32>
    %197 = tpu.matmul %194, %196, %cst_77 {dimension_numbers = #tpu.dot_dimension_numbers<[1], [0], [0], [1], [0, 0, 1, 1], [], []>} : vector<32x64xbf16>, vector<64x128xbf16>, vector<32x128xf32> -> vector<32x128xf32>
    %198 = arith.addf %190, %197 : vector<32x128xf32>
    %199 = vector.extract_strided_slice %5 {offsets = [0, 0, 2, 2, 0], sizes = [2, 1, 4, 4, 64], strides = [1, 1, 1, 1, 1]} : vector<2x4x8x8x64xf32> to vector<2x1x4x4x64xf32>
    %200 = vector.shape_cast %199 : vector<2x1x4x4x64xf32> to vector<2x4x4x64xf32>
    %201 = vector.shape_cast %200 : vector<2x4x4x64xf32> to vector<32x64xf32>
    %202 = arith.truncf %201 : vector<32x64xf32> to vector<32x64xbf16>
    %c24 = arith.constant 24 : index
    %c0_78 = arith.constant 0 : index
    %c0_79 = arith.constant 0 : index
    %203 = vector.load %arg3[%c24, %c0_78, %c0_79] : memref<25x64x128xbf16, #tpu.memory_space<vmem>>, vector<1x64x128xbf16>
    %204 = vector.shape_cast %203 : vector<1x64x128xbf16> to vector<64x128xbf16>
    %cst_80 = arith.constant dense<0.000000e+00> : vector<32x128xf32>
    %205 = tpu.matmul %202, %204, %cst_80 {dimension_numbers = #tpu.dot_dimension_numbers<[1], [0], [0], [1], [0, 0, 1, 1], [], []>} : vector<32x64xbf16>, vector<64x128xbf16>, vector<32x128xf32> -> vector<32x128xf32>
    %206 = arith.addf %198, %205 : vector<32x128xf32>
    %c0_81 = arith.constant 0 : index
    %c0_82 = arith.constant 0 : index
    %207 = vector.load %arg4[%c0_81, %c0_82] : memref<32x128xf32, #tpu.memory_space<vmem>>, vector<32x128xf32>
    tpu.vector_store %arg4[%c0_81, %c0_82], %206 {strides = array<i32>} : memref<32x128xf32, #tpu.memory_space<vmem>>, vector<32x128xf32>,
    %cst_83 = arith.constant dense<0.000000e+00> : vector<128xf32>
    %208 = vector.multi_reduction <add>, %206, %cst_83 [0] : vector<32x128xf32> to vector<128xf32>
    %209 = vector.shape_cast %208 : vector<128xf32> to vector<1x128xf32>
    %210 = arith.mulf %206, %206 : vector<32x128xf32>
    %cst_84 = arith.constant dense<0.000000e+00> : vector<128xf32>
    %211 = vector.multi_reduction <add>, %210, %cst_84 [0] : vector<32x128xf32> to vector<128xf32>
    %212 = vector.shape_cast %211 : vector<128xf32> to vector<1x128xf32>
    %213 = tpu.concatenate %209, %212 in 0 : vector<1x128xf32>, vector<1x128xf32> -> vector<2x128xf32>
    %c0_85 = arith.constant 0 : index
    %c0_86 = arith.constant 0 : index
    %c0_87 = arith.constant 0 : index
    %214 = vector.load %arg5[%c0_85, %c0_86, %c0_87] : memref<1x2x128xf32, #tpu.memory_space<vmem>>, vector<1x2x128xf32>
    %215 = vector.shape_cast %214 : vector<1x2x128xf32> to vector<2x128xf32>
    %216 = vector.shape_cast %213 : vector<2x128xf32> to vector<1x2x128xf32>
    tpu.vector_store %arg5[%c0_85, %c0_86, %c0_87], %216 {strides = array<i32>} : memref<1x2x128xf32, #tpu.memory_space<vmem>>, vector<1x2x128xf32>,
    return
  }
  func.func @transform_0(%arg0: i32) -> (i32, i32) {
    %c0_i32 = arith.constant 0 : i32
    %c0_i32_0 = arith.constant 0 : i32
    return %arg0, %c0_i32 : i32, i32
  }
  func.func @transform_1(%arg0: i32) -> (i32, i32) {
    %c0_i32 = arith.constant 0 : i32
    %c0_i32_0 = arith.constant 0 : i32
    %c0_i32_1 = arith.constant 0 : i32
    return %c0_i32, %c0_i32_0 : i32, i32
  }
  func.func @transform_2(%arg0: i32) -> (i32, i32, i32) {
    %c0_i32 = arith.constant 0 : i32
    %c0_i32_0 = arith.constant 0 : i32
    %c0_i32_1 = arith.constant 0 : i32
    %c0_i32_2 = arith.constant 0 : i32
    return %c0_i32, %c0_i32_0, %c0_i32_1 : i32, i32, i32
  }
  func.func @transform_3(%arg0: i32) -> (i32, i32) {
    %c0_i32 = arith.constant 0 : i32
    %c0_i32_0 = arith.constant 0 : i32
    return %arg0, %c0_i32 : i32, i32
  }
  func.func @transform_4(%arg0: i32) -> (i32, i32, i32) {
    %c0_i32 = arith.constant 0 : i32
    %c0_i32_0 = arith.constant 0 : i32
    %c0_i32_1 = arith.constant 0 : i32
    return %arg0, %c0_i32, %c0_i32_0 : i32, i32, i32
  }
}

module attributes {stable_mosaic.version = 11 : i64} {
  func.func @_linear_sigmoid_kernel(%arg0: i32, %arg1: memref<2x2048xf32, #tpu.memory_space<vmem>>, %arg2: memref<2048x64xbf16, #tpu.memory_space<vmem>>, %arg3: memref<1x64xf32, #tpu.memory_space<vmem>>, %arg4: memref<2x64xf32, #tpu.memory_space<vmem>>) attributes {dimension_semantics = [#tpu.dimension_semantics<parallel>], iteration_bounds = array<i64: 1>, scalar_prefetch = 0 : i64, scratch_operands = 0 : i64, tpu.core_type = #tpu.core_type<tc>, window_params = [{transform_indices = @transform_0, window_bounds = array<i64: 2, 2048>}, {pipeline_mode = #tpu.pipeline_mode<synchronous>, transform_indices = @transform_1, window_bounds = array<i64: 2048, 64>}, {pipeline_mode = #tpu.pipeline_mode<synchronous>, transform_indices = @transform_2, window_bounds = array<i64: 1, 64>}, {transform_indices = @transform_3, window_bounds = array<i64: 2, 64>}]} {
    %c0 = arith.constant 0 : index
    %c0_0 = arith.constant 0 : index
    %0 = vector.load %arg1[%c0, %c0_0] : memref<2x2048xf32, #tpu.memory_space<vmem>>, vector<2x2048xf32>
    %1 = arith.truncf %0 : vector<2x2048xf32> to vector<2x2048xbf16>
    %c0_1 = arith.constant 0 : index
    %c0_2 = arith.constant 0 : index
    %2 = vector.load %arg2[%c0_1, %c0_2] : memref<2048x64xbf16, #tpu.memory_space<vmem>>, vector<2048x64xbf16>
    %cst = arith.constant dense<0.000000e+00> : vector<2x64xf32>
    %3 = tpu.matmul %1, %2, %cst {dimension_numbers = #tpu.dot_dimension_numbers<[1], [0], [0], [1], [0, 0, 1, 1], [], []>} : vector<2x2048xbf16>, vector<2048x64xbf16>, vector<2x64xf32> -> vector<2x64xf32>
    %c0_3 = arith.constant 0 : index
    %c0_4 = arith.constant 0 : index
    %4 = vector.load %arg3[%c0_3, %c0_4] : memref<1x64xf32, #tpu.memory_space<vmem>>, vector<1x64xf32>
    %5 = vector.broadcast %4 : vector<1x64xf32> to vector<2x64xf32>
    %6 = arith.addf %3, %5 : vector<2x64xf32>
    %cst_5 = arith.constant 0.000000e+00 : f32
    %7 = vector.broadcast %cst_5 : f32 to vector<2x64xf32>
    %8 = arith.subf %7, %6 : vector<2x64xf32>
    %9 = math.exp %8 : vector<2x64xf32>
    %cst_6 = arith.constant 1.000000e+00 : f32
    %10 = vector.broadcast %cst_6 : f32 to vector<2x64xf32>
    %11 = arith.addf %10, %9 : vector<2x64xf32>
    %cst_7 = arith.constant 1.000000e+00 : f32
    %12 = vector.broadcast %cst_7 : f32 to vector<2x64xf32>
    %13 = arith.divf %12, %11 : vector<2x64xf32>
    %c0_8 = arith.constant 0 : index
    %c0_9 = arith.constant 0 : index
    %14 = vector.load %arg4[%c0_8, %c0_9] : memref<2x64xf32, #tpu.memory_space<vmem>>, vector<2x64xf32>
    tpu.vector_store %arg4[%c0_8, %c0_9], %13 {strides = array<i32>} : memref<2x64xf32, #tpu.memory_space<vmem>>, vector<2x64xf32>,
    return
  }
  func.func @transform_0(%arg0: i32) -> (i32, i32) {
    %c0_i32 = arith.constant 0 : i32
    %c0_i32_0 = arith.constant 0 : i32
    return %arg0, %c0_i32 : i32, i32
  }
  func.func @transform_1(%arg0: i32) -> (i32, i32) {
    %c0_i32 = arith.constant 0 : i32
    %c0_i32_0 = arith.constant 0 : i32
    %c0_i32_1 = arith.constant 0 : i32
    return %c0_i32, %c0_i32_0 : i32, i32
  }
  func.func @transform_2(%arg0: i32) -> (i32, i32) {
    %c0_i32 = arith.constant 0 : i32
    %c0_i32_0 = arith.constant 0 : i32
    %c0_i32_1 = arith.constant 0 : i32
    return %c0_i32, %c0_i32_0 : i32, i32
  }
  func.func @transform_3(%arg0: i32) -> (i32, i32) {
    %c0_i32 = arith.constant 0 : i32
    %c0_i32_0 = arith.constant 0 : i32
    return %arg0, %c0_i32 : i32, i32
  }
}

</mosaic_0001>

<llo_original>
// kernel: model_d_forward.2
$region0: #{model_d_forward.2}
  #allocation0 [shape = 'u32[]', space=smem, size = 0x4, offset = 0x4, fixed_abs, tag = 'smem constant byte address 0x4 - core index']
  #allocation1 [shape = 'u32[144,128]{1,0:T(1,128)}', space=vmem, size = 0x12000, scoped, tag = 'internal scratch']
  %s0 = inlined_call_operand.vmem [shape: bf16[512,25], index: 0, kind: input, shape index: {}]
  %s1 = inlined_call_operand.vmem [shape: bf16[25,64], index: 1, kind: input, shape index: {}]
  %s2 = inlined_call_operand.vmem [shape: bf16[25,64,128], index: 2, kind: input, shape index: {}]
  %s3 = inlined_call_operand.vmem [shape: f32[32,128], index: 3, kind: output, shape index: {0}]
  %s4 = inlined_call_operand.vmem [shape: f32[1,2,128], index: 4, kind: output, shape index: {1}]
  %5 = xla_tuple %s3, %s4
  %s6 = sld [smem:[#allocation0]]
  $region30: #{model_d_forward.2} parent=0
    _
  %s8 = ssub.s32 1, %s6
  %s9 = scalar_select 0, %s8, %s6
  // Predicated region
  $region2: #{model_d_forward.2} parent=0 // pred_check
    _
  $region3: #{model_d_forward.2} parent=0 // pred_check_branch
    %11 = sbr.rel (0) target = $region5
  $region4: #{model_d_forward.2} parent=0 // pred_region
    _
  $region5: #{model_d_forward.2} parent=0 // pred_fallthru
    _
  // Predicated region
  $region6: #{model_d_forward.2} parent=0 // pred_check
    _
  $region7: #{model_d_forward.2} parent=0 // pred_check_branch
    %13 = sbr.rel (0) target = $region9
  $region8: #{model_d_forward.2} parent=0 // pred_region
    _
  $region9: #{model_d_forward.2} parent=0 // pred_fallthru
    _
  // Predicated region
  $region10: #{model_d_forward.2} parent=0 // pred_check
    _
  $region11: #{model_d_forward.2} parent=0 // pred_check_branch
    %15 = sbr.rel (0) target = $region13
  $region12: #{model_d_forward.2} parent=0 // pred_region
    _
  $region13: #{model_d_forward.2} parent=0 // pred_fallthru
    _
  %v17 = vld [vmem:[%s0] sm:$0xf]
  %v18 = vld [vmem:[%s0 + $0x4] sm:$0xf]
  %v19 = vld [vmem:[%s0 + $0x8] sm:$0xf]
  %v20 = vld [vmem:[%s0 + $0xc] sm:$0xf]
  %v21 = vld [vmem:[%s0 + $0x10] sm:$0xf]
  %v22 = vld [vmem:[%s0 + $0x14] sm:$0xf]
  %v23 = vld [vmem:[%s0 + $0x18] sm:$0xf]
  %v24 = vld [vmem:[%s0 + $0x1c] sm:$0xf]
  %v25 = vld [vmem:[%s0 + $0x20] sm:$0xf]
  %v26 = vld [vmem:[%s0 + $0x24] sm:$0xf]
  %v27 = vld [vmem:[%s0 + $0x28] sm:$0xf]
  %v28 = vld [vmem:[%s0 + $0x2c] sm:$0xf]
  %v29 = vld [vmem:[%s0 + $0x30] sm:$0xf]
  %v30 = vld [vmem:[%s0 + $0x34] sm:$0xf]
  %v31 = vld [vmem:[%s0 + $0x38] sm:$0xf]
  %v32 = vld [vmem:[%s0 + $0x3c] sm:$0xf]
  %v33 = vld [vmem:[%s0 + $0x40] sm:$0xf]
  %v34 = vld [vmem:[%s0 + $0x44] sm:$0xf]
  %v35 = vld [vmem:[%s0 + $0x48] sm:$0xf]
  %v36 = vld [vmem:[%s0 + $0x4c] sm:$0xf]
  %v37 = vld [vmem:[%s0 + $0x50] sm:$0xf]
  %v38 = vld [vmem:[%s0 + $0x54] sm:$0xf]
  %v39 = vld [vmem:[%s0 + $0x58] sm:$0xf]
  %v40 = vld [vmem:[%s0 + $0x5c] sm:$0xf]
  %v41 = vld [vmem:[%s0 + $0x60] sm:$0xf]
  %v42 = vld [vmem:[%s0 + $0x64] sm:$0xf]
  %v43 = vld [vmem:[%s0 + $0x68] sm:$0xf]
  %v44 = vld [vmem:[%s0 + $0x6c] sm:$0xf]
  %v45 = vld [vmem:[%s0 + $0x70] sm:$0xf]
  %v46 = vld [vmem:[%s0 + $0x74] sm:$0xf]
  %v47 = vld [vmem:[%s0 + $0x78] sm:$0xf]
  %v48 = vld [vmem:[%s0 + $0x7c] sm:$0xf]
  %v49 = vld [vmem:[%s0 + $0x80] sm:$0xf]
  %v50 = vld [vmem:[%s0 + $0x84] sm:$0xf]
  %v51 = vld [vmem:[%s0 + $0x88] sm:$0xf]
  %v52 = vld [vmem:[%s0 + $0x8c] sm:$0xf]
  %v53 = vld [vmem:[%s0 + $0x90] sm:$0xf]
  %v54 = vld [vmem:[%s0 + $0x94] sm:$0xf]
  %v55 = vld [vmem:[%s0 + $0x98] sm:$0xf]
  %v56 = vld [vmem:[%s0 + $0x9c] sm:$0xf]
  %v57 = vld [vmem:[%s0 + $0xa0] sm:$0xf]
  %v58 = vld [vmem:[%s0 + $0xa4] sm:$0xf]
  %v59 = vld [vmem:[%s0 + $0xa8] sm:$0xf]
  %v60 = vld [vmem:[%s0 + $0xac] sm:$0xf]
  %v61 = vld [vmem:[%s0 + $0xb0] sm:$0xf]
  %v62 = vld [vmem:[%s0 + $0xb4] sm:$0xf]
  %v63 = vld [vmem:[%s0 + $0xb8] sm:$0xf]
  %v64 = vld [vmem:[%s0 + $0xbc] sm:$0xf]
  %v65 = vld [vmem:[%s0 + $0xc0] sm:$0xf]
  %v66 = vld [vmem:[%s0 + $0xc4] sm:$0xf]
  %v67 = vld [vmem:[%s0 + $0xc8] sm:$0xf]
  %v68 = vld [vmem:[%s0 + $0xcc] sm:$0xf]
  %v69 = vld [vmem:[%s0 + $0xd0] sm:$0xf]
  %v70 = vld [vmem:[%s0 + $0xd4] sm:$0xf]
  %v71 = vld [vmem:[%s0 + $0xd8] sm:$0xf]
  %v72 = vld [vmem:[%s0 + $0xdc] sm:$0xf]
  %v73 = vld [vmem:[%s0 + $0xe0] sm:$0xf]
  %v74 = vld [vmem:[%s0 + $0xe4] sm:$0xf]
  %v75 = vld [vmem:[%s0 + $0xe8] sm:$0xf]
  %v76 = vld [vmem:[%s0 + $0xec] sm:$0xf]
  %v77 = vld [vmem:[%s0 + $0xf0] sm:$0xf]
  %v78 = vld [vmem:[%s0 + $0xf4] sm:$0xf]
  %v79 = vld [vmem:[%s0 + $0xf8] sm:$0xf]
  %v80 = vld [vmem:[%s0 + $0xfc] sm:$0xf]
  %v81 = vld [vmem:[%s1] sm:$0xf]
  %v82 = vld [vmem:[%s1 + $0x4] sm:$0xf]
  %v83 = vld [vmem:[%s1 + $0x8] sm:$0xf]
  %v84 = vld [vmem:[%s1 + $0xc] sm:$0x1]
  %v149 = vunpack.c.l.b16 %v17
  %v150 = vunpack.c.l.b16 %v18
  %v151 = vunpack.c.l.b16 %v19
  %v152 = vunpack.c.l.b16 %v20
  %v153 = vunpack.c.l.b16 %v21
  %v154 = vunpack.c.l.b16 %v22
  %v155 = vunpack.c.l.b16 %v23
  %v156 = vunpack.c.l.b16 %v24
  %v157 = vunpack.c.l.b16 %v25
  %v158 = vunpack.c.l.b16 %v26
  %v159 = vunpack.c.l.b16 %v27
  %v160 = vunpack.c.l.b16 %v28
  %v161 = vunpack.c.l.b16 %v29
  %v162 = vunpack.c.l.b16 %v30
  %v163 = vunpack.c.l.b16 %v31
  %v164 = vunpack.c.l.b16 %v32
  %v165 = vunpack.c.l.b16 %v33
  %v166 = vunpack.c.l.b16 %v34
  %v167 = vunpack.c.l.b16 %v35
  %v168 = vunpack.c.l.b16 %v36
  %v169 = vunpack.c.l.b16 %v37
  %v170 = vunpack.c.l.b16 %v38
  %v171 = vunpack.c.l.b16 %v39
  %v172 = vunpack.c.l.b16 %v40
  %v173 = vunpack.c.l.b16 %v41
  %v174 = vunpack.c.l.b16 %v42
  %v175 = vunpack.c.l.b16 %v43
  %v176 = vunpack.c.l.b16 %v44
  %v177 = vunpack.c.l.b16 %v45
  %v178 = vunpack.c.l.b16 %v46
  %v179 = vunpack.c.l.b16 %v47
  %v180 = vunpack.c.l.b16 %v48
  %v181 = vunpack.c.l.b16 %v49
  %v182 = vunpack.c.l.b16 %v50
  %v183 = vunpack.c.l.b16 %v51
  %v184 = vunpack.c.l.b16 %v52
  %v185 = vunpack.c.l.b16 %v53
  %v186 = vunpack.c.l.b16 %v54
  %v187 = vunpack.c.l.b16 %v55
  %v188 = vunpack.c.l.b16 %v56
  %v189 = vunpack.c.l.b16 %v57
  %v190 = vunpack.c.l.b16 %v58
  %v191 = vunpack.c.l.b16 %v59
  %v192 = vunpack.c.l.b16 %v60
  %v193 = vunpack.c.l.b16 %v61
  %v194 = vunpack.c.l.b16 %v62
  %v195 = vunpack.c.l.b16 %v63
  %v196 = vunpack.c.l.b16 %v64
  %v197 = vunpack.c.l.b16 %v65
  %v198 = vunpack.c.l.b16 %v66
  %v199 = vunpack.c.l.b16 %v67
  %v200 = vunpack.c.l.b16 %v68
  %v201 = vunpack.c.l.b16 %v69
  %v202 = vunpack.c.l.b16 %v70
  %v203 = vunpack.c.l.b16 %v71
  %v204 = vunpack.c.l.b16 %v72
  %v205 = vunpack.c.l.b16 %v73
  %v206 = vunpack.c.l.b16 %v74
  %v207 = vunpack.c.l.b16 %v75
  %v208 = vunpack.c.l.b16 %v76
  %v209 = vunpack.c.l.b16 %v77
  %v210 = vunpack.c.l.b16 %v78
  %v211 = vunpack.c.l.b16 %v79
  %v212 = vunpack.c.l.b16 %v80
  %v213 = vpack.c.b16 %v150, %v149
  %v214 = vpack.c.b16 %v152, %v151
  %v215 = vpack.c.b16 %v154, %v153
  %v216 = vpack.c.b16 %v156, %v155
  %v217 = vpack.c.b16 %v158, %v157
  %v218 = vpack.c.b16 %v160, %v159
  %v219 = vpack.c.b16 %v162, %v161
  %v220 = vpack.c.b16 %v164, %v163
  %v221 = vpack.c.b16 %v166, %v165
  %v222 = vpack.c.b16 %v168, %v167
  %v223 = vpack.c.b16 %v170, %v169
  %v224 = vpack.c.b16 %v172, %v171
  %v225 = vpack.c.b16 %v174, %v173
  %v226 = vpack.c.b16 %v176, %v175
  %v227 = vpack.c.b16 %v178, %v177
  %v228 = vpack.c.b16 %v180, %v179
  %v229 = vpack.c.b16 %v182, %v181
  %v230 = vpack.c.b16 %v184, %v183
  %v231 = vpack.c.b16 %v186, %v185
  %v232 = vpack.c.b16 %v188, %v187
  %v233 = vpack.c.b16 %v190, %v189
  %v234 = vpack.c.b16 %v192, %v191
  %v235 = vpack.c.b16 %v194, %v193
  %v236 = vpack.c.b16 %v196, %v195
  %v237 = vpack.c.b16 %v198, %v197
  %v238 = vpack.c.b16 %v200, %v199
  %v239 = vpack.c.b16 %v202, %v201
  %v240 = vpack.c.b16 %v204, %v203
  %v241 = vpack.c.b16 %v206, %v205
  %v242 = vpack.c.b16 %v208, %v207
  %v243 = vpack.c.b16 %v210, %v209
  %v244 = vpack.c.b16 %v212, %v211
  %v249 = vunpack.c.l.b16 %v81
  %v250 = vunpack.c.l.b16 %v82
  %v251 = vunpack.c.l.b16 %v83
  %v252 = vunpack.c.l.b16 %v84
  %v253 = vpack.c.b16 %v250, %v249
  %v254 = vpack.c.b16 %v252, %v251
  %vm256 = vcmask 203776
  %v258 = vsel %vm256, %v213, 0
  %v261 = vsel %vm256, %v214, 0
  %v264 = vsel %vm256, %v215, 0
  %v267 = vsel %vm256, %v216, 0
  %v270 = vsel %vm256, %v217, 0
  %v273 = vsel %vm256, %v218, 0
  %v276 = vsel %vm256, %v219, 0
  %v279 = vsel %vm256, %v220, 0
  %v282 = vsel %vm256, %v221, 0
  %v285 = vsel %vm256, %v222, 0
  %v288 = vsel %vm256, %v223, 0
  %v291 = vsel %vm256, %v224, 0
  %v294 = vsel %vm256, %v225, 0
  %v297 = vsel %vm256, %v226, 0
  %v300 = vsel %vm256, %v227, 0
  %v303 = vsel %vm256, %v228, 0
  %v306 = vsel %vm256, %v229, 0
  %v309 = vsel %vm256, %v230, 0
  %v312 = vsel %vm256, %v231, 0
  %v315 = vsel %vm256, %v232, 0
  %v318 = vsel %vm256, %v233, 0
  %v321 = vsel %vm256, %v234, 0
  %v324 = vsel %vm256, %v235, 0
  %v327 = vsel %vm256, %v236, 0
  %v330 = vsel %vm256, %v237, 0
  %v333 = vsel %vm256, %v238, 0
  %v336 = vsel %vm256, %v239, 0
  %v339 = vsel %vm256, %v240, 0
  %v342 = vsel %vm256, %v241, 0
  %v345 = vsel %vm256, %v242, 0
  %v348 = vsel %vm256, %v243, 0
  %v351 = vsel %vm256, %v244, 0
  %vm353 = vcmask 1043456
  %vm354 = vcmask 1044480
  %v355 = vsel %vm353, 4294967295, 65535
  %v356 = vsel %vm354, %v355, 0
  %v358 = vand.u32 %v254, %v356
  %360 = vmatprep.subr.bf16.mxu0 0
  %361 = vmatpush1.bf16.msra.mxu0 0
  %362 = vmatprep.subr.bf16.mxu0 0
  %363 = vmatpush1.bf16.msra.mxu0 0
  %364 = vmatprep.subr.bf16.mxu0 0
  %365 = vmatpush1.bf16.msra.mxu0 0
  %366 = vmatprep.subr.bf16.mxu0 0
  %367 = vmatpush1.bf16.msra.mxu0 0
  %368 = vmatprep.subr.bf16.mxu0 0
  %369 = vmatpush1.bf16.msra.mxu0 0
  %370 = vmatprep.subr.bf16.mxu0 0
  %371 = vmatpush1.bf16.msra.mxu0 0
  %372 = vmatprep.subr.bf16.mxu0 0
  %373 = vmatpush1.bf16.msra.mxu0 %v358
  %374 = vmatprep.subr.bf16.mxu0 0
  %375 = vmatpush1.bf16.msra.mxu0 %v253
  %376 = vmatprep.subr.bf16.mxu0 0
  %377 = vmatpush2.bf16.msra.mxu0 0
  %378 = vmatprep.subr.bf16.mxu0 0
  %379 = vmatpush2.bf16.msra.mxu0 0
  %380 = vmatprep.subr.bf16.mxu0 0
  %381 = vmatpush2.bf16.msra.mxu0 0
  %382 = vmatprep.subr.bf16.mxu0 0
  %383 = vmatpush2.bf16.msra.mxu0 0
  %384 = vmatprep.subr.bf16.mxu0 0
  %385 = vmatpush2.bf16.msra.mxu0 0
  %386 = vmatprep.subr.bf16.mxu0 0
  %387 = vmatpush2.bf16.msra.mxu0 0
  %388 = vmatprep.subr.bf16.mxu0 0
  %389 = vmatpush2.bf16.msra.mxu0 0
  %390 = vmatprep.subr.bf16.mxu0 0
  %391 = vmatpush2.bf16.msra.mxu0 0
  %392 = vmatprep.mubr.bf16.mxu0 0
  %393 = vmatmul.mubr.bf16.gmra.mxu0 %v258
  %v394 = vpop.f32.mrf.mxu0
  %v395 = vadd.f32 0.0, %v394
  %v396 = vpop.f32.mrf.mxu0
  %v397 = vpop.f32.mrf.mxu0
  %v398 = vadd.f32 0.0, %v397
  %v399 = vpop.f32.mrf.mxu0
  %400 = vmatprep.mubr.bf16.mxu0 0
  %401 = vmatmul.mubr.bf16.gmra.mxu0 %v261
  %v402 = vpop.f32.mrf.mxu0
  %v403 = vadd.f32 0.0, %v402
  %v404 = vpop.f32.mrf.mxu0
  %v405 = vpop.f32.mrf.mxu0
  %v406 = vadd.f32 0.0, %v405
  %v407 = vpop.f32.mrf.mxu0
  %408 = vmatprep.mubr.bf16.mxu0 0
  %409 = vmatmul.mubr.bf16.gmra.mxu0 %v264
  %v410 = vpop.f32.mrf.mxu0
  %v411 = vadd.f32 0.0, %v410
  %v412 = vpop.f32.mrf.mxu0
  %v413 = vpop.f32.mrf.mxu0
  %v414 = vadd.f32 0.0, %v413
  %v415 = vpop.f32.mrf.mxu0
  %416 = vmatprep.mubr.bf16.mxu0 0
  %417 = vmatmul.mubr.bf16.gmra.mxu0 %v267
  %v418 = vpop.f32.mrf.mxu0
  %v419 = vpop.f32.mrf.mxu0
  %v420 = vpop.f32.mrf.mxu0
  %v421 = vpop.f32.mrf.mxu0
  %422 = vmatprep.mubr.bf16.mxu0 0
  %423 = vmatmul.mubr.bf16.gmra.mxu0 %v270
  %v424 = vpop.f32.mrf.mxu0
  %v425 = vadd.f32 0.0, %v424
  %v426 = vpop.f32.mrf.mxu0
  %v427 = vpop.f32.mrf.mxu0
  %v428 = vadd.f32 0.0, %v427
  %v429 = vpop.f32.mrf.mxu0
  %430 = vmatprep.mubr.bf16.mxu0 0
  %431 = vmatmul.mubr.bf16.gmra.mxu0 %v273
  %v432 = vpop.f32.mrf.mxu0
  %v433 = vadd.f32 0.0, %v432
  %v434 = vpop.f32.mrf.mxu0
  %v435 = vpop.f32.mrf.mxu0
  %v436 = vadd.f32 0.0, %v435
  %v437 = vpop.f32.mrf.mxu0
  %438 = vmatprep.mubr.bf16.mxu0 0
  %439 = vmatmul.mubr.bf16.gmra.mxu0 %v276
  %v440 = vpop.f32.mrf.mxu0
  %v441 = vadd.f32 0.0, %v440
  %v442 = vpop.f32.mrf.mxu0
  %v443 = vpop.f32.mrf.mxu0
  %v444 = vadd.f32 0.0, %v443
  %v445 = vpop.f32.mrf.mxu0
  %446 = vmatprep.mubr.bf16.mxu0 0
  %447 = vmatmul.mubr.bf16.gmra.mxu0 %v279
  %v448 = vpop.f32.mrf.mxu0
  %v449 = vpop.f32.mrf.mxu0
  %v450 = vpop.f32.mrf.mxu0
  %v451 = vpop.f32.mrf.mxu0
  %452 = vmatprep.mubr.bf16.mxu0 0
  %453 = vmatmul.mubr.bf16.gmra.mxu0 %v282
  %v454 = vpop.f32.mrf.mxu0
  %v455 = vadd.f32 0.0, %v454
  %v456 = vpop.f32.mrf.mxu0
  %v457 = vpop.f32.mrf.mxu0
  %v458 = vadd.f32 0.0, %v457
  %v459 = vpop.f32.mrf.mxu0
  %460 = vmatprep.mubr.bf16.mxu0 0
  %461 = vmatmul.mubr.bf16.gmra.mxu0 %v285
  %v462 = vpop.f32.mrf.mxu0
  %v463 = vadd.f32 0.0, %v462
  %v464 = vpop.f32.mrf.mxu0
  %v465 = vpop.f32.mrf.mxu0
  %v466 = vadd.f32 0.0, %v465
  %v467 = vpop.f32.mrf.mxu0
  %468 = vmatprep.mubr.bf16.mxu0 0
  %469 = vmatmul.mubr.bf16.gmra.mxu0 %v288
  %v470 = vpop.f32.mrf.mxu0
  %v471 = vadd.f32 0.0, %v470
  %v472 = vpop.f32.mrf.mxu0
  %v473 = vpop.f32.mrf.mxu0
  %v474 = vpop.f32.mrf.mxu0
  %475 = vmatprep.mubr.bf16.mxu0 0
  %476 = vmatmul.mubr.bf16.gmra.mxu0 %v291
  %v477 = vpop.f32.mrf.mxu0
  %v478 = vpop.f32.mrf.mxu0
  %v479 = vpop.f32.mrf.mxu0
  %v480 = vpop.f32.mrf.mxu0
  %481 = vmatprep.mubr.bf16.mxu0 0
  %482 = vmatmul.mubr.bf16.gmra.mxu0 %v294
  %v483 = vpop.f32.mrf.mxu0
  %v484 = vadd.f32 0.0, %v483
  %v485 = vpop.f32.mrf.mxu0
  %v486 = vpop.f32.mrf.mxu0
  %v487 = vadd.f32 0.0, %v486
  %v488 = vpop.f32.mrf.mxu0
  %489 = vmatprep.mubr.bf16.mxu0 0
  %490 = vmatmul.mubr.bf16.gmra.mxu0 %v297
  %v491 = vpop.f32.mrf.mxu0
  %v492 = vadd.f32 0.0, %v491
  %v493 = vpop.f32.mrf.mxu0
  %v494 = vpop.f32.mrf.mxu0
  %v495 = vadd.f32 0.0, %v494
  %v496 = vpop.f32.mrf.mxu0
  %497 = vmatprep.mubr.bf16.mxu0 0
  %498 = vmatmul.mubr.bf16.gmra.mxu0 %v300
  %v499 = vpop.f32.mrf.mxu0
  %v500 = vadd.f32 0.0, %v499
  %v501 = vpop.f32.mrf.mxu0
  %v502 = vpop.f32.mrf.mxu0
  %v503 = vpop.f32.mrf.mxu0
  %504 = vmatprep.mubr.bf16.mxu0 0
  %505 = vmatmul.mubr.bf16.gmra.mxu0 %v303
  %v506 = vpop.f32.mrf.mxu0
  %v507 = vpop.f32.mrf.mxu0
  %v508 = vpop.f32.mrf.mxu0
  %v509 = vpop.f32.mrf.mxu0
  %510 = vmatprep.mubr.bf16.mxu0 0
  %511 = vmatmul.mubr.bf16.gmra.mxu0 %v306
  %v512 = vpop.f32.mrf.mxu0
  %v513 = vadd.f32 0.0, %v512
  %v514 = vpop.f32.mrf.mxu0
  %v515 = vpop.f32.mrf.mxu0
  %v516 = vadd.f32 0.0, %v515
  %v517 = vpop.f32.mrf.mxu0
  %518 = vmatprep.mubr.bf16.mxu0 0
  %519 = vmatmul.mubr.bf16.gmra.mxu0 %v309
  %v520 = vpop.f32.mrf.mxu0
  %v521 = vadd.f32 0.0, %v520
  %v522 = vpop.f32.mrf.mxu0
  %v523 = vpop.f32.mrf.mxu0
  %v524 = vadd.f32 0.0, %v523
  %v525 = vpop.f32.mrf.mxu0
  %526 = vmatprep.mubr.bf16.mxu0 0
  %527 = vmatmul.mubr.bf16.gmra.mxu0 %v312
  %v528 = vpop.f32.mrf.mxu0
  %v529 = vadd.f32 0.0, %v528
  %v530 = vpop.f32.mrf.mxu0
  %v531 = vpop.f32.mrf.mxu0
  %v532 = vadd.f32 0.0, %v531
  %v533 = vpop.f32.mrf.mxu0
  %534 = vmatprep.mubr.bf16.mxu0 0
  %535 = vmatmul.mubr.bf16.gmra.mxu0 %v315
  %v536 = vpop.f32.mrf.mxu0
  %v537 = vpop.f32.mrf.mxu0
  %v538 = vpop.f32.mrf.mxu0
  %v539 = vpop.f32.mrf.mxu0
  %540 = vmatprep.mubr.bf16.mxu0 0
  %541 = vmatmul.mubr.bf16.gmra.mxu0 %v318
  %v542 = vpop.f32.mrf.mxu0
  %v543 = vadd.f32 0.0, %v542
  %v544 = vpop.f32.mrf.mxu0
  %v545 = vpop.f32.mrf.mxu0
  %v546 = vadd.f32 0.0, %v545
  %v547 = vpop.f32.mrf.mxu0
  %548 = vmatprep.mubr.bf16.mxu0 0
  %549 = vmatmul.mubr.bf16.gmra.mxu0 %v321
  %v550 = vpop.f32.mrf.mxu0
  %v551 = vadd.f32 0.0, %v550
  %v552 = vpop.f32.mrf.mxu0
  %v553 = vpop.f32.mrf.mxu0
  %v554 = vadd.f32 0.0, %v553
  %v555 = vpop.f32.mrf.mxu0
  %556 = vmatprep.mubr.bf16.mxu0 0
  %557 = vmatmul.mubr.bf16.gmra.mxu0 %v324
  %v558 = vpop.f32.mrf.mxu0
  %v559 = vadd.f32 0.0, %v558
  %v560 = vpop.f32.mrf.mxu0
  %v561 = vpop.f32.mrf.mxu0
  %v562 = vadd.f32 0.0, %v561
  %v563 = vpop.f32.mrf.mxu0
  %564 = vmatprep.mubr.bf16.mxu0 0
  %565 = vmatmul.mubr.bf16.gmra.mxu0 %v327
  %v566 = vpop.f32.mrf.mxu0
  %v567 = vpop.f32.mrf.mxu0
  %v568 = vpop.f32.mrf.mxu0
  %v569 = vpop.f32.mrf.mxu0
  %570 = vmatprep.mubr.bf16.mxu0 0
  %571 = vmatmul.mubr.bf16.gmra.mxu0 %v330
  %v572 = vpop.f32.mrf.mxu0
  %v573 = vadd.f32 0.0, %v572
  %v574 = vpop.f32.mrf.mxu0
  %v575 = vpop.f32.mrf.mxu0
  %v576 = vadd.f32 0.0, %v575
  %v577 = vpop.f32.mrf.mxu0
  %578 = vmatprep.mubr.bf16.mxu0 0
  %579 = vmatmul.mubr.bf16.gmra.mxu0 %v333
  %v580 = vpop.f32.mrf.mxu0
  %v581 = vadd.f32 0.0, %v580
  %v582 = vpop.f32.mrf.mxu0
  %v583 = vpop.f32.mrf.mxu0
  %v584 = vadd.f32 0.0, %v583
  %v585 = vpop.f32.mrf.mxu0
  %586 = vmatprep.mubr.bf16.mxu0 0
  %587 = vmatmul.mubr.bf16.gmra.mxu0 %v336
  %v588 = vpop.f32.mrf.mxu0
  %v589 = vadd.f32 0.0, %v588
  %v590 = vpop.f32.mrf.mxu0
  %v591 = vpop.f32.mrf.mxu0
  %v592 = vpop.f32.mrf.mxu0
  %593 = vmatprep.mubr.bf16.mxu0 0
  %594 = vmatmul.mubr.bf16.gmra.mxu0 %v339
  %v595 = vpop.f32.mrf.mxu0
  %v596 = vpop.f32.mrf.mxu0
  %v597 = vpop.f32.mrf.mxu0
  %v598 = vpop.f32.mrf.mxu0
  %599 = vmatprep.mubr.bf16.mxu0 0
  %600 = vmatmul.mubr.bf16.gmra.mxu0 %v342
  %v601 = vpop.f32.mrf.mxu0
  %v602 = vadd.f32 0.0, %v601
  %v603 = vpop.f32.mrf.mxu0
  %v604 = vpop.f32.mrf.mxu0
  %v605 = vadd.f32 0.0, %v604
  %v606 = vpop.f32.mrf.mxu0
  %607 = vmatprep.mubr.bf16.mxu0 0
  %608 = vmatmul.mubr.bf16.gmra.mxu0 %v345
  %v609 = vpop.f32.mrf.mxu0
  %v610 = vadd.f32 0.0, %v609
  %v611 = vpop.f32.mrf.mxu0
  %v612 = vpop.f32.mrf.mxu0
  %v613 = vadd.f32 0.0, %v612
  %v614 = vpop.f32.mrf.mxu0
  %615 = vmatprep.mubr.bf16.mxu0 0
  %616 = vmatmul.mubr.bf16.gmra.mxu0 %v348
  %v617 = vpop.f32.mrf.mxu0
  %v618 = vadd.f32 0.0, %v617
  %v619 = vpop.f32.mrf.mxu0
  %v620 = vpop.f32.mrf.mxu0
  %v621 = vpop.f32.mrf.mxu0
  %622 = vmatprep.mubr.bf16.mxu0 0
  %623 = vmatmul.mubr.bf16.gmra.mxu0 %v351
  %v624 = vpop.f32.mrf.mxu0
  %v625 = vpop.f32.mrf.mxu0
  %v626 = vpop.f32.mrf.mxu0
  %v627 = vpop.f32.mrf.mxu0
  %628 = vdwg.mxu0
  %v629 = vmax.f32 %v395, 0.0
  %v630 = vmax.f32 %v398, 0.0
  %v631 = vmax.f32 %v403, 0.0
  %v632 = vmax.f32 %v406, 0.0
  %v633 = vmax.f32 %v411, 0.0
  %v634 = vmax.f32 %v414, 0.0
  %v635 = vmax.f32 %v425, 0.0
  %v636 = vmax.f32 %v428, 0.0
  %v637 = vmax.f32 %v433, 0.0
  %v638 = vmax.f32 %v436, 0.0
  %v639 = vmax.f32 %v441, 0.0
  %v640 = vmax.f32 %v444, 0.0
  %v641 = vmax.f32 %v455, 0.0
  %v642 = vmax.f32 %v458, 0.0
  %v643 = vmax.f32 %v463, 0.0
  %v644 = vmax.f32 %v466, 0.0
  %v645 = vmax.f32 %v471, 0.0
  %v646 = vmax.f32 %v484, 0.0
  %v647 = vmax.f32 %v487, 0.0
  %v648 = vmax.f32 %v492, 0.0
  %v649 = vmax.f32 %v495, 0.0
  %v650 = vmax.f32 %v500, 0.0
  %v651 = vmax.f32 %v513, 0.0
  %v652 = vmax.f32 %v516, 0.0
  %v653 = vmax.f32 %v521, 0.0
  %v654 = vmax.f32 %v524, 0.0
  %v655 = vmax.f32 %v529, 0.0
  %v656 = vmax.f32 %v532, 0.0
  %v657 = vmax.f32 %v543, 0.0
  %v658 = vmax.f32 %v546, 0.0
  %v659 = vmax.f32 %v551, 0.0
  %v660 = vmax.f32 %v554, 0.0
  %v661 = vmax.f32 %v559, 0.0
  %v662 = vmax.f32 %v562, 0.0
  %v663 = vmax.f32 %v573, 0.0
  %v664 = vmax.f32 %v576, 0.0
  %v665 = vmax.f32 %v581, 0.0
  %v666 = vmax.f32 %v584, 0.0
  %v667 = vmax.f32 %v589, 0.0
  %v668 = vmax.f32 %v602, 0.0
  %v669 = vmax.f32 %v605, 0.0
  %v670 = vmax.f32 %v610, 0.0
  %v671 = vmax.f32 %v613, 0.0
  %v672 = vmax.f32 %v618, 0.0
  %v681 = vcombine.low %v629, %v630
  %v682 = vcombine.low %v631, %v632
  %v683 = vcombine.low %v651, %v652
  %v684 = vcombine.low %v653, %v654
  %v689 = vpack.c.bf16 %v682, %v681
  %v690 = vpack.c.bf16 %v684, %v683
  %v691 = vld [vmem:[%s2] sm:$0xf]
  %v692 = vld [vmem:[%s2 + $0x4] sm:$0xf]
  %v693 = vld [vmem:[%s2 + $0x8] sm:$0xf]
  %v694 = vld [vmem:[%s2 + $0xc] sm:$0xf]
  %v695 = vld [vmem:[%s2 + $0x10] sm:$0xf]
  %v696 = vld [vmem:[%s2 + $0x14] sm:$0xf]
  %v697 = vld [vmem:[%s2 + $0x18] sm:$0xf]
  %v698 = vld [vmem:[%s2 + $0x1c] sm:$0xf]
  %v707 = vcombine.low %v635, %v636
  %v708 = vcombine.low %v637, %v638
  %v709 = vcombine.low %v657, %v658
  %v710 = vcombine.low %v659, %v660
  %v715 = vpack.c.bf16 %v708, %v707
  %v716 = vpack.c.bf16 %v710, %v709
  %s717 = scalar_lea.vmem %s2, 32
  %v718 = vld [vmem:[%s717] sm:$0xf]
  %v719 = vld [vmem:[%s717 + $0x4] sm:$0xf]
  %v720 = vld [vmem:[%s717 + $0x8] sm:$0xf]
  %v721 = vld [vmem:[%s717 + $0xc] sm:$0xf]
  %v722 = vld [vmem:[%s717 + $0x10] sm:$0xf]
  %v723 = vld [vmem:[%s717 + $0x14] sm:$0xf]
  %v724 = vld [vmem:[%s717 + $0x18] sm:$0xf]
  %v725 = vld [vmem:[%s717 + $0x1c] sm:$0xf]
  %v734 = vunpack.c.l.b16 %v718
  %v735 = vunpack.c.l.b16 %v719
  %v736 = vunpack.c.l.b16 %v720
  %v737 = vunpack.c.l.b16 %v721
  %v738 = vunpack.c.l.b16 %v722
  %v739 = vunpack.c.l.b16 %v723
  %v740 = vunpack.c.l.b16 %v724
  %v741 = vunpack.c.l.b16 %v725
  %v742 = vpack.c.b16 %v735, %v734
  %v743 = vpack.c.b16 %v737, %v736
  %v744 = vpack.c.b16 %v739, %v738
  %v745 = vpack.c.b16 %v741, %v740
  %vm750 = vcmask 523264
  %v752 = vsel %vm750, %v715, 0
  %v755 = vsel %vm750, %v716, 0
  %757 = vmatprep.subr.bf16.mxu0 0
  %758 = vmatpush1.bf16.msra.mxu0 0
  %759 = vmatprep.subr.bf16.mxu0 0
  %760 = vmatpush1.bf16.msra.mxu0 0
  %761 = vmatprep.subr.bf16.mxu0 0
  %762 = vmatpush1.bf16.msra.mxu0 0
  %763 = vmatprep.subr.bf16.mxu0 0
  %764 = vmatpush1.bf16.msra.mxu0 0
  %765 = vmatprep.subr.bf16.mxu0 0
  %766 = vmatpush1.bf16.msra.mxu0 %v745
  %767 = vmatprep.subr.bf16.mxu0 0
  %768 = vmatpush1.bf16.msra.mxu0 %v744
  %769 = vmatprep.subr.bf16.mxu0 0
  %770 = vmatpush1.bf16.msra.mxu0 %v743
  %771 = vmatprep.subr.bf16.mxu0 0
  %772 = vmatpush1.bf16.msra.mxu0 %v742
  %773 = vmatprep.subr.bf16.mxu0 0
  %774 = vmatpush2.bf16.msra.mxu0 0
  %775 = vmatprep.subr.bf16.mxu0 0
  %776 = vmatpush2.bf16.msra.mxu0 0
  %777 = vmatprep.subr.bf16.mxu0 0
  %778 = vmatpush2.bf16.msra.mxu0 0
  %779 = vmatprep.subr.bf16.mxu0 0
  %780 = vmatpush2.bf16.msra.mxu0 0
  %781 = vmatprep.subr.bf16.mxu0 0
  %782 = vmatpush2.bf16.msra.mxu0 0
  %783 = vmatprep.subr.bf16.mxu0 0
  %784 = vmatpush2.bf16.msra.mxu0 0
  %785 = vmatprep.subr.bf16.mxu0 0
  %786 = vmatpush2.bf16.msra.mxu0 0
  %787 = vmatprep.subr.bf16.mxu0 0
  %788 = vmatpush2.bf16.msra.mxu0 0
  %789 = vmatprep.mubr.bf16.mxu0 0
  %790 = vmatmul.mubr.bf16.gmra.mxu0 %v752
  %v791 = vpop.f32.mrf.mxu0
  %v792 = vadd.f32 0.0, %v791
  %v793 = vpop.f32.mrf.mxu0
  %v794 = vpop.f32.mrf.mxu0
  %v795 = vadd.f32 0.0, %v794
  %v796 = vpop.f32.mrf.mxu0
  %797 = vmatprep.mubr.bf16.mxu0 0
  %798 = vmatmul.mubr.bf16.gmra.mxu0 %v755
  %v799 = vpop.f32.mrf.mxu0
  %v800 = vadd.f32 0.0, %v799
  %v801 = vpop.f32.mrf.mxu0
  %v802 = vpop.f32.mrf.mxu0
  %v803 = vadd.f32 0.0, %v802
  %v804 = vpop.f32.mrf.mxu0
  %805 = vdwg.mxu0
  %v814 = vunpack.c.l.b16 %v691
  %v815 = vunpack.c.l.b16 %v692
  %v816 = vunpack.c.l.b16 %v693
  %v817 = vunpack.c.l.b16 %v694
  %v818 = vunpack.c.l.b16 %v695
  %v819 = vunpack.c.l.b16 %v696
  %v820 = vunpack.c.l.b16 %v697
  %v821 = vunpack.c.l.b16 %v698
  %v822 = vpack.c.b16 %v815, %v814
  %v823 = vpack.c.b16 %v817, %v816
  %v824 = vpack.c.b16 %v819, %v818
  %v825 = vpack.c.b16 %v821, %v820
  %v831 = vsel %vm750, %v689, 0
  %v834 = vsel %vm750, %v690, 0
  %836 = vmatprep.subr.bf16.mxu0 0
  %837 = vmatpush1.bf16.msra.mxu0 0
  %838 = vmatprep.subr.bf16.mxu0 0
  %839 = vmatpush1.bf16.msra.mxu0 0
  %840 = vmatprep.subr.bf16.mxu0 0
  %841 = vmatpush1.bf16.msra.mxu0 0
  %842 = vmatprep.subr.bf16.mxu0 0
  %843 = vmatpush1.bf16.msra.mxu0 0
  %844 = vmatprep.subr.bf16.mxu0 0
  %845 = vmatpush1.bf16.msra.mxu0 %v825
  %846 = vmatprep.subr.bf16.mxu0 0
  %847 = vmatpush1.bf16.msra.mxu0 %v824
  %848 = vmatprep.subr.bf16.mxu0 0
  %849 = vmatpush1.bf16.msra.mxu0 %v823
  %850 = vmatprep.subr.bf16.mxu0 0
  %851 = vmatpush1.bf16.msra.mxu0 %v822
  %852 = vmatprep.subr.bf16.mxu0 0
  %853 = vmatpush2.bf16.msra.mxu0 0
  %854 = vmatprep.subr.bf16.mxu0 0
  %855 = vmatpush2.bf16.msra.mxu0 0
  %856 = vmatprep.subr.bf16.mxu0 0
  %857 = vmatpush2.bf16.msra.mxu0 0
  %858 = vmatprep.subr.bf16.mxu0 0
  %859 = vmatpush2.bf16.msra.mxu0 0
  %860 = vmatprep.subr.bf16.mxu0 0
  %861 = vmatpush2.bf16.msra.mxu0 0
  %862 = vmatprep.subr.bf16.mxu0 0
  %863 = vmatpush2.bf16.msra.mxu0 0
  %864 = vmatprep.subr.bf16.mxu0 0
  %865 = vmatpush2.bf16.msra.mxu0 0
  %866 = vmatprep.subr.bf16.mxu0 0
  %867 = vmatpush2.bf16.msra.mxu0 0
  %868 = vmatprep.mubr.bf16.mxu0 0
  %869 = vmatmul.mubr.bf16.gmra.mxu0 %v831
  %v870 = vpop.f32.mrf.mxu0
  %v871 = vadd.f32 %v792, %v870
  %v872 = vpop.f32.mrf.mxu0
  %v873 = vpop.f32.mrf.mxu0
  %v874 = vadd.f32 %v795, %v873
  %v875 = vpop.f32.mrf.mxu0
  %876 = vmatprep.mubr.bf16.mxu0 0
  %877 = vmatmul.mubr.bf16.gmra.mxu0 %v834
  %v878 = vpop.f32.mrf.mxu0
  %v879 = vadd.f32 %v800, %v878
  %v880 = vpop.f32.mrf.mxu0
  %v881 = vpop.f32.mrf.mxu0
  %v882 = vadd.f32 %v803, %v881
  %v883 = vpop.f32.mrf.mxu0
  %884 = vdwg.mxu0
  %v885 = vcombine.high %v629, %v629
  %v886 = vcombine.high %v630, %v630
  %v887 = vcombine.high %v631, %v631
  %v888 = vcombine.high %v632, %v632
  %v889 = vcombine.high %v651, %v651
  %v890 = vcombine.high %v652, %v652
  %v891 = vcombine.high %v653, %v653
  %v892 = vcombine.high %v654, %v654
  %vm893 = vcmask 1042432
  %vm894 = vcmask 1046532
  %vm895 = vmor %vm893, %vm894
  %v896 = vrot.slane %v629, 5
  %v897 = vrot.slane %v896, 4
  %v898 = vrot.slane %v885, 5
  %v899 = vsel %vm895, %v897, %v898
  %v900 = vrot.slane %v630, 5
  %v901 = vrot.slane %v900, 4
  %v902 = vrot.slane %v886, 5
  %v903 = vsel %vm895, %v901, %v902
  %v904 = vrot.slane %v631, 5
  %v905 = vrot.slane %v904, 4
  %v906 = vrot.slane %v887, 5
  %v907 = vsel %vm895, %v905, %v906
  %v908 = vrot.slane %v632, 5
  %v909 = vrot.slane %v908, 4
  %v910 = vrot.slane %v888, 5
  %v911 = vsel %vm895, %v909, %v910
  %v912 = vrot.slane %v651, 5
  %v913 = vrot.slane %v912, 4
  %v914 = vrot.slane %v889, 5
  %v915 = vsel %vm895, %v913, %v914
  %v916 = vrot.slane %v652, 5
  %v917 = vrot.slane %v916, 4
  %v918 = vrot.slane %v890, 5
  %v919 = vsel %vm895, %v917, %v918
  %v920 = vrot.slane %v653, 5
  %v921 = vrot.slane %v920, 4
  %v922 = vrot.slane %v891, 5
  %v923 = vsel %vm895, %v921, %v922
  %v924 = vrot.slane %v654, 5
  %v925 = vrot.slane %v924, 4
  %v926 = vrot.slane %v892, 5
  %v927 = vsel %vm895, %v925, %v926
  %v928 = vcombine.low %v899, %v903
  %v929 = vcombine.low %v907, %v911
  %v930 = vcombine.low %v915, %v919
  %v931 = vcombine.low %v923, %v927
  %v936 = vpack.c.bf16 %v929, %v928
  %v937 = vpack.c.bf16 %v931, %v930
  %s938 = scalar_lea.vmem %s2, 64
  %v939 = vld [vmem:[%s938] sm:$0xf]
  %v940 = vld [vmem:[%s938 + $0x4] sm:$0xf]
  %v941 = vld [vmem:[%s938 + $0x8] sm:$0xf]
  %v942 = vld [vmem:[%s938 + $0xc] sm:$0xf]
  %v943 = vld [vmem:[%s938 + $0x10] sm:$0xf]
  %v944 = vld [vmem:[%s938 + $0x14] sm:$0xf]
  %v945 = vld [vmem:[%s938 + $0x18] sm:$0xf]
  %v946 = vld [vmem:[%s938 + $0x1c] sm:$0xf]
  %v955 = vunpack.c.l.b16 %v939
  %v956 = vunpack.c.l.b16 %v940
  %v957 = vunpack.c.l.b16 %v941
  %v958 = vunpack.c.l.b16 %v942
  %v959 = vunpack.c.l.b16 %v943
  %v960 = vunpack.c.l.b16 %v944
  %v961 = vunpack.c.l.b16 %v945
  %v962 = vunpack.c.l.b16 %v946
  %v963 = vpack.c.b16 %v956, %v955
  %v964 = vpack.c.b16 %v958, %v957
  %v965 = vpack.c.b16 %v960, %v959
  %v966 = vpack.c.b16 %v962, %v961
  %v972 = vsel %vm750, %v936, 0
  %v975 = vsel %vm750, %v937, 0
  %977 = vmatprep.subr.bf16.mxu0 0
  %978 = vmatpush1.bf16.msra.mxu0 0
  %979 = vmatprep.subr.bf16.mxu0 0
  %980 = vmatpush1.bf16.msra.mxu0 0
  %981 = vmatprep.subr.bf16.mxu0 0
  %982 = vmatpush1.bf16.msra.mxu0 0
  %983 = vmatprep.subr.bf16.mxu0 0
  %984 = vmatpush1.bf16.msra.mxu0 0
  %985 = vmatprep.subr.bf16.mxu0 0
  %986 = vmatpush1.bf16.msra.mxu0 %v966
  %987 = vmatprep.subr.bf16.mxu0 0
  %988 = vmatpush1.bf16.msra.mxu0 %v965
  %989 = vmatprep.subr.bf16.mxu0 0
  %990 = vmatpush1.bf16.msra.mxu0 %v964
  %991 = vmatprep.subr.bf16.mxu0 0
  %992 = vmatpush1.bf16.msra.mxu0 %v963
  %993 = vmatprep.subr.bf16.mxu0 0
  %994 = vmatpush2.bf16.msra.mxu0 0
  %995 = vmatprep.subr.bf16.mxu0 0
  %996 = vmatpush2.bf16.msra.mxu0 0
  %997 = vmatprep.subr.bf16.mxu0 0
  %998 = vmatpush2.bf16.msra.mxu0 0
  %999 = vmatprep.subr.bf16.mxu0 0
  %1000 = vmatpush2.bf16.msra.mxu0 0
  %1001 = vmatprep.subr.bf16.mxu0 0
  %1002 = vmatpush2.bf16.msra.mxu0 0
  %1003 = vmatprep.subr.bf16.mxu0 0
  %1004 = vmatpush2.bf16.msra.mxu0 0
  %1005 = vmatprep.subr.bf16.mxu0 0
  %1006 = vmatpush2.bf16.msra.mxu0 0
  %1007 = vmatprep.subr.bf16.mxu0 0
  %1008 = vmatpush2.bf16.msra.mxu0 0
  %1009 = vmatprep.mubr.bf16.mxu0 0
  %1010 = vmatmul.mubr.bf16.gmra.mxu0 %v972
  %v1011 = vpop.f32.mrf.mxu0
  %v1012 = vadd.f32 0.0, %v1011
  %v1013 = vpop.f32.mrf.mxu0
  %v1014 = vpop.f32.mrf.mxu0
  %v1015 = vadd.f32 0.0, %v1014
  %v1016 = vpop.f32.mrf.mxu0
  %1017 = vmatprep.mubr.bf16.mxu0 0
  %1018 = vmatmul.mubr.bf16.gmra.mxu0 %v975
  %v1019 = vpop.f32.mrf.mxu0
  %v1020 = vadd.f32 0.0, %v1019
  %v1021 = vpop.f32.mrf.mxu0
  %v1022 = vpop.f32.mrf.mxu0
  %v1023 = vadd.f32 0.0, %v1022
  %v1024 = vpop.f32.mrf.mxu0
  %1025 = vdwg.mxu0
  %v1026 = vadd.f32 %v871, %v1012
  %v1027 = vadd.f32 %v874, %v1015
  %v1028 = vadd.f32 %v879, %v1020
  %v1029 = vadd.f32 %v882, %v1023
  %v1030 = vcombine.high %v635, %v635
  %v1031 = vcombine.high %v636, %v636
  %v1032 = vcombine.high %v637, %v637
  %v1033 = vcombine.high %v638, %v638
  %v1034 = vcombine.high %v657, %v657
  %v1035 = vcombine.high %v658, %v658
  %v1036 = vcombine.high %v659, %v659
  %v1037 = vcombine.high %v660, %v660
  %v1038 = vrot.slane %v635, 5
  %v1039 = vrot.slane %v1038, 4
  %v1040 = vrot.slane %v1030, 5
  %v1041 = vsel %vm895, %v1039, %v1040
  %v1042 = vrot.slane %v636, 5
  %v1043 = vrot.slane %v1042, 4
  %v1044 = vrot.slane %v1031, 5
  %v1045 = vsel %vm895, %v1043, %v1044
  %v1046 = vrot.slane %v637, 5
  %v1047 = vrot.slane %v1046, 4
  %v1048 = vrot.slane %v1032, 5
  %v1049 = vsel %vm895, %v1047, %v1048
  %v1050 = vrot.slane %v638, 5
  %v1051 = vrot.slane %v1050, 4
  %v1052 = vrot.slane %v1033, 5
  %v1053 = vsel %vm895, %v1051, %v1052
  %v1054 = vrot.slane %v657, 5
  %v1055 = vrot.slane %v1054, 4
  %v1056 = vrot.slane %v1034, 5
  %v1057 = vsel %vm895, %v1055, %v1056
  %v1058 = vrot.slane %v658, 5
  %v1059 = vrot.slane %v1058, 4
  %v1060 = vrot.slane %v1035, 5
  %v1061 = vsel %vm895, %v1059, %v1060
  %v1062 = vrot.slane %v659, 5
  %v1063 = vrot.slane %v1062, 4
  %v1064 = vrot.slane %v1036, 5
  %v1065 = vsel %vm895, %v1063, %v1064
  %v1066 = vrot.slane %v660, 5
  %v1067 = vrot.slane %v1066, 4
  %v1068 = vrot.slane %v1037, 5
  %v1069 = vsel %vm895, %v1067, %v1068
  %v1070 = vcombine.low %v1041, %v1045
  %v1071 = vcombine.low %v1049, %v1053
  %v1072 = vcombine.low %v1057, %v1061
  %v1073 = vcombine.low %v1065, %v1069
  %v1078 = vpack.c.bf16 %v1071, %v1070
  %v1079 = vpack.c.bf16 %v1073, %v1072
  %s1080 = scalar_lea.vmem %s2, 96
  %v1081 = vld [vmem:[%s1080] sm:$0xf]
  %v1082 = vld [vmem:[%s1080 + $0x4] sm:$0xf]
  %v1083 = vld [vmem:[%s1080 + $0x8] sm:$0xf]
  %v1084 = vld [vmem:[%s1080 + $0xc] sm:$0xf]
  %v1085 = vld [vmem:[%s1080 + $0x10] sm:$0xf]
  %v1086 = vld [vmem:[%s1080 + $0x14] sm:$0xf]
  %v1087 = vld [vmem:[%s1080 + $0x18] sm:$0xf]
  %v1088 = vld [vmem:[%s1080 + $0x1c] sm:$0xf]
  %v1097 = vunpack.c.l.b16 %v1081
  %v1098 = vunpack.c.l.b16 %v1082
  %v1099 = vunpack.c.l.b16 %v1083
  %v1100 = vunpack.c.l.b16 %v1084
  %v1101 = vunpack.c.l.b16 %v1085
  %v1102 = vunpack.c.l.b16 %v1086
  %v1103 = vunpack.c.l.b16 %v1087
  %v1104 = vunpack.c.l.b16 %v1088
  %v1105 = vpack.c.b16 %v1098, %v1097
  %v1106 = vpack.c.b16 %v1100, %v1099
  %v1107 = vpack.c.b16 %v1102, %v1101
  %v1108 = vpack.c.b16 %v1104, %v1103
  %v1114 = vsel %vm750, %v1078, 0
  %v1117 = vsel %vm750, %v1079, 0
  %1119 = vmatprep.subr.bf16.mxu0 0
  %1120 = vmatpush1.bf16.msra.mxu0 0
  %1121 = vmatprep.subr.bf16.mxu0 0
  %1122 = vmatpush1.bf16.msra.mxu0 0
  %1123 = vmatprep.subr.bf16.mxu0 0
  %1124 = vmatpush1.bf16.msra.mxu0 0
  %1125 = vmatprep.subr.bf16.mxu0 0
  %1126 = vmatpush1.bf16.msra.mxu0 0
  %1127 = vmatprep.subr.bf16.mxu0 0
  %1128 = vmatpush1.bf16.msra.mxu0 %v1108
  %1129 = vmatprep.subr.bf16.mxu0 0
  %1130 = vmatpush1.bf16.msra.mxu0 %v1107
  %1131 = vmatprep.subr.bf16.mxu0 0
  %1132 = vmatpush1.bf16.msra.mxu0 %v1106
  %1133 = vmatprep.subr.bf16.mxu0 0
  %1134 = vmatpush1.bf16.msra.mxu0 %v1105
  %1135 = vmatprep.subr.bf16.mxu0 0
  %1136 = vmatpush2.bf16.msra.mxu0 0
  %1137 = vmatprep.subr.bf16.mxu0 0
  %1138 = vmatpush2.bf16.msra.mxu0 0
  %1139 = vmatprep.subr.bf16.mxu0 0
  %1140 = vmatpush2.bf16.msra.mxu0 0
  %1141 = vmatprep.subr.bf16.mxu0 0
  %1142 = vmatpush2.bf16.msra.mxu0 0
  %1143 = vmatprep.subr.bf16.mxu0 0
  %1144 = vmatpush2.bf16.msra.mxu0 0
  %1145 = vmatprep.subr.bf16.mxu0 0
  %1146 = vmatpush2.bf16.msra.mxu0 0
  %1147 = vmatprep.subr.bf16.mxu0 0
  %1148 = vmatpush2.bf16.msra.mxu0 0
  %1149 = vmatprep.subr.bf16.mxu0 0
  %1150 = vmatpush2.bf16.msra.mxu0 0
  %1151 = vmatprep.mubr.bf16.mxu0 0
  %1152 = vmatmul.mubr.bf16.gmra.mxu0 %v1114
  %v1153 = vpop.f32.mrf.mxu0
  %v1154 = vadd.f32 0.0, %v1153
  %v1155 = vpop.f32.mrf.mxu0
  %v1156 = vpop.f32.mrf.mxu0
  %v1157 = vadd.f32 0.0, %v1156
  %v1158 = vpop.f32.mrf.mxu0
  %1159 = vmatprep.mubr.bf16.mxu0 0
  %1160 = vmatmul.mubr.bf16.gmra.mxu0 %v1117
  %v1161 = vpop.f32.mrf.mxu0
  %v1162 = vadd.f32 0.0, %v1161
  %v1163 = vpop.f32.mrf.mxu0
  %v1164 = vpop.f32.mrf.mxu0
  %v1165 = vadd.f32 0.0, %v1164
  %v1166 = vpop.f32.mrf.mxu0
  %1167 = vdwg.mxu0
  %v1168 = vadd.f32 %v1026, %v1154
  %v1169 = vadd.f32 %v1027, %v1157
  %v1170 = vadd.f32 %v1028, %v1162
  %v1171 = vadd.f32 %v1029, %v1165
  %vm1172 = vcmask 1041408
  %vm1173 = vcmask 1045508
  %vm1174 = vmor %vm1172, %vm1173
  %v1175 = vrot.slane %v629, 6
  %v1176 = vrot.slane %v1175, 4
  %v1177 = vrot.slane %v885, 6
  %v1178 = vsel %vm1174, %v1176, %v1177
  %v1179 = vrot.slane %v630, 6
  %v1180 = vrot.slane %v1179, 4
  %v1181 = vrot.slane %v886, 6
  %v1182 = vsel %vm1174, %v1180, %v1181
  %v1183 = vrot.slane %v631, 6
  %v1184 = vrot.slane %v1183, 4
  %v1185 = vrot.slane %v887, 6
  %v1186 = vsel %vm1174, %v1184, %v1185
  %v1187 = vrot.slane %v632, 6
  %v1188 = vrot.slane %v1187, 4
  %v1189 = vrot.slane %v888, 6
  %v1190 = vsel %vm1174, %v1188, %v1189
  %v1191 = vrot.slane %v651, 6
  %v1192 = vrot.slane %v1191, 4
  %v1193 = vrot.slane %v889, 6
  %v1194 = vsel %vm1174, %v1192, %v1193
  %v1195 = vrot.slane %v652, 6
  %v1196 = vrot.slane %v1195, 4
  %v1197 = vrot.slane %v890, 6
  %v1198 = vsel %vm1174, %v1196, %v1197
  %v1199 = vrot.slane %v653, 6
  %v1200 = vrot.slane %v1199, 4
  %v1201 = vrot.slane %v891, 6
  %v1202 = vsel %vm1174, %v1200, %v1201
  %v1203 = vrot.slane %v654, 6
  %v1204 = vrot.slane %v1203, 4
  %v1205 = vrot.slane %v892, 6
  %v1206 = vsel %vm1174, %v1204, %v1205
  %v1207 = vcombine.low %v1178, %v1182
  %v1208 = vcombine.low %v1186, %v1190
  %v1209 = vcombine.low %v1194, %v1198
  %v1210 = vcombine.low %v1202, %v1206
  %v1215 = vpack.c.bf16 %v1208, %v1207
  %v1216 = vpack.c.bf16 %v1210, %v1209
  %s1217 = scalar_lea.vmem %s2, 128
  %v1218 = vld [vmem:[%s1217] sm:$0xf]
  %v1219 = vld [vmem:[%s1217 + $0x4] sm:$0xf]
  %v1220 = vld [vmem:[%s1217 + $0x8] sm:$0xf]
  %v1221 = vld [vmem:[%s1217 + $0xc] sm:$0xf]
  %v1222 = vld [vmem:[%s1217 + $0x10] sm:$0xf]
  %v1223 = vld [vmem:[%s1217 + $0x14] sm:$0xf]
  %v1224 = vld [vmem:[%s1217 + $0x18] sm:$0xf]
  %v1225 = vld [vmem:[%s1217 + $0x1c] sm:$0xf]
  %v1234 = vunpack.c.l.b16 %v1218
  %v1235 = vunpack.c.l.b16 %v1219
  %v1236 = vunpack.c.l.b16 %v1220
  %v1237 = vunpack.c.l.b16 %v1221
  %v1238 = vunpack.c.l.b16 %v1222
  %v1239 = vunpack.c.l.b16 %v1223
  %v1240 = vunpack.c.l.b16 %v1224
  %v1241 = vunpack.c.l.b16 %v1225
  %v1242 = vpack.c.b16 %v1235, %v1234
  %v1243 = vpack.c.b16 %v1237, %v1236
  %v1244 = vpack.c.b16 %v1239, %v1238
  %v1245 = vpack.c.b16 %v1241, %v1240
  %v1251 = vsel %vm750, %v1215, 0
  %v1254 = vsel %vm750, %v1216, 0
  %1256 = vmatprep.subr.bf16.mxu0 0
  %1257 = vmatpush1.bf16.msra.mxu0 0
  %1258 = vmatprep.subr.bf16.mxu0 0
  %1259 = vmatpush1.bf16.msra.mxu0 0
  %1260 = vmatprep.subr.bf16.mxu0 0
  %1261 = vmatpush1.bf16.msra.mxu0 0
  %1262 = vmatprep.subr.bf16.mxu0 0
  %1263 = vmatpush1.bf16.msra.mxu0 0
  %1264 = vmatprep.subr.bf16.mxu0 0
  %1265 = vmatpush1.bf16.msra.mxu0 %v1245
  %1266 = vmatprep.subr.bf16.mxu0 0
  %1267 = vmatpush1.bf16.msra.mxu0 %v1244
  %1268 = vmatprep.subr.bf16.mxu0 0
  %1269 = vmatpush1.bf16.msra.mxu0 %v1243
  %1270 = vmatprep.subr.bf16.mxu0 0
  %1271 = vmatpush1.bf16.msra.mxu0 %v1242
  %1272 = vmatprep.subr.bf16.mxu0 0
  %1273 = vmatpush2.bf16.msra.mxu0 0
  %1274 = vmatprep.subr.bf16.mxu0 0
  %1275 = vmatpush2.bf16.msra.mxu0 0
  %1276 = vmatprep.subr.bf16.mxu0 0
  %1277 = vmatpush2.bf16.msra.mxu0 0
  %1278 = vmatprep.subr.bf16.mxu0 0
  %1279 = vmatpush2.bf16.msra.mxu0 0
  %1280 = vmatprep.subr.bf16.mxu0 0
  %1281 = vmatpush2.bf16.msra.mxu0 0
  %1282 = vmatprep.subr.bf16.mxu0 0
  %1283 = vmatpush2.bf16.msra.mxu0 0
  %1284 = vmatprep.subr.bf16.mxu0 0
  %1285 = vmatpush2.bf16.msra.mxu0 0
  %1286 = vmatprep.subr.bf16.mxu0 0
  %1287 = vmatpush2.bf16.msra.mxu0 0
  %1288 = vmatprep.mubr.bf16.mxu0 0
  %1289 = vmatmul.mubr.bf16.gmra.mxu0 %v1251
  %v1290 = vpop.f32.mrf.mxu0
  %v1291 = vadd.f32 0.0, %v1290
  %v1292 = vpop.f32.mrf.mxu0
  %v1293 = vpop.f32.mrf.mxu0
  %v1294 = vadd.f32 0.0, %v1293
  %v1295 = vpop.f32.mrf.mxu0
  %1296 = vmatprep.mubr.bf16.mxu0 0
  %1297 = vmatmul.mubr.bf16.gmra.mxu0 %v1254
  %v1298 = vpop.f32.mrf.mxu0
  %v1299 = vadd.f32 0.0, %v1298
  %v1300 = vpop.f32.mrf.mxu0
  %v1301 = vpop.f32.mrf.mxu0
  %v1302 = vadd.f32 0.0, %v1301
  %v1303 = vpop.f32.mrf.mxu0
  %1304 = vdwg.mxu0
  %v1305 = vadd.f32 %v1168, %v1291
  %v1306 = vadd.f32 %v1169, %v1294
  %v1307 = vadd.f32 %v1170, %v1299
  %v1308 = vadd.f32 %v1171, %v1302
  %v1317 = vcombine.low %v641, %v642
  %v1318 = vcombine.low %v643, %v644
  %v1319 = vcombine.low %v663, %v664
  %v1320 = vcombine.low %v665, %v666
  %v1325 = vpack.c.bf16 %v1318, %v1317
  %v1326 = vpack.c.bf16 %v1320, %v1319
  %s1327 = scalar_lea.vmem %s2, 160
  %v1328 = vld [vmem:[%s1327] sm:$0xf]
  %v1329 = vld [vmem:[%s1327 + $0x4] sm:$0xf]
  %v1330 = vld [vmem:[%s1327 + $0x8] sm:$0xf]
  %v1331 = vld [vmem:[%s1327 + $0xc] sm:$0xf]
  %v1332 = vld [vmem:[%s1327 + $0x10] sm:$0xf]
  %v1333 = vld [vmem:[%s1327 + $0x14] sm:$0xf]
  %v1334 = vld [vmem:[%s1327 + $0x18] sm:$0xf]
  %v1335 = vld [vmem:[%s1327 + $0x1c] sm:$0xf]
  %v1344 = vunpack.c.l.b16 %v1328
  %v1345 = vunpack.c.l.b16 %v1329
  %v1346 = vunpack.c.l.b16 %v1330
  %v1347 = vunpack.c.l.b16 %v1331
  %v1348 = vunpack.c.l.b16 %v1332
  %v1349 = vunpack.c.l.b16 %v1333
  %v1350 = vunpack.c.l.b16 %v1334
  %v1351 = vunpack.c.l.b16 %v1335
  %v1352 = vpack.c.b16 %v1345, %v1344
  %v1353 = vpack.c.b16 %v1347, %v1346
  %v1354 = vpack.c.b16 %v1349, %v1348
  %v1355 = vpack.c.b16 %v1351, %v1350
  %v1361 = vsel %vm750, %v1325, 0
  %v1364 = vsel %vm750, %v1326, 0
  %1366 = vmatprep.subr.bf16.mxu0 0
  %1367 = vmatpush1.bf16.msra.mxu0 0
  %1368 = vmatprep.subr.bf16.mxu0 0
  %1369 = vmatpush1.bf16.msra.mxu0 0
  %1370 = vmatprep.subr.bf16.mxu0 0
  %1371 = vmatpush1.bf16.msra.mxu0 0
  %1372 = vmatprep.subr.bf16.mxu0 0
  %1373 = vmatpush1.bf16.msra.mxu0 0
  %1374 = vmatprep.subr.bf16.mxu0 0
  %1375 = vmatpush1.bf16.msra.mxu0 %v1355
  %1376 = vmatprep.subr.bf16.mxu0 0
  %1377 = vmatpush1.bf16.msra.mxu0 %v1354
  %1378 = vmatprep.subr.bf16.mxu0 0
  %1379 = vmatpush1.bf16.msra.mxu0 %v1353
  %1380 = vmatprep.subr.bf16.mxu0 0
  %1381 = vmatpush1.bf16.msra.mxu0 %v1352
  %1382 = vmatprep.subr.bf16.mxu0 0
  %1383 = vmatpush2.bf16.msra.mxu0 0
  %1384 = vmatprep.subr.bf16.mxu0 0
  %1385 = vmatpush2.bf16.msra.mxu0 0
  %1386 = vmatprep.subr.bf16.mxu0 0
  %1387 = vmatpush2.bf16.msra.mxu0 0
  %1388 = vmatprep.subr.bf16.mxu0 0
  %1389 = vmatpush2.bf16.msra.mxu0 0
  %1390 = vmatprep.subr.bf16.mxu0 0
  %1391 = vmatpush2.bf16.msra.mxu0 0
  %1392 = vmatprep.subr.bf16.mxu0 0
  %1393 = vmatpush2.bf16.msra.mxu0 0
  %1394 = vmatprep.subr.bf16.mxu0 0
  %1395 = vmatpush2.bf16.msra.mxu0 0
  %1396 = vmatprep.subr.bf16.mxu0 0
  %1397 = vmatpush2.bf16.msra.mxu0 0
  %1398 = vmatprep.mubr.bf16.mxu0 0
  %1399 = vmatmul.mubr.bf16.gmra.mxu0 %v1361
  %v1400 = vpop.f32.mrf.mxu0
  %v1401 = vadd.f32 0.0, %v1400
  %v1402 = vpop.f32.mrf.mxu0
  %v1403 = vpop.f32.mrf.mxu0
  %v1404 = vadd.f32 0.0, %v1403
  %v1405 = vpop.f32.mrf.mxu0
  %1406 = vmatprep.mubr.bf16.mxu0 0
  %1407 = vmatmul.mubr.bf16.gmra.mxu0 %v1364
  %v1408 = vpop.f32.mrf.mxu0
  %v1409 = vadd.f32 0.0, %v1408
  %v1410 = vpop.f32.mrf.mxu0
  %v1411 = vpop.f32.mrf.mxu0
  %v1412 = vadd.f32 0.0, %v1411
  %v1413 = vpop.f32.mrf.mxu0
  %1414 = vdwg.mxu0
  %v1415 = vadd.f32 %v1305, %v1401
  %v1416 = vadd.f32 %v1306, %v1404
  %v1417 = vadd.f32 %v1307, %v1409
  %v1418 = vadd.f32 %v1308, %v1412
  %v1427 = vcombine.low %v646, %v647
  %v1428 = vcombine.low %v648, %v649
  %v1429 = vcombine.low %v668, %v669
  %v1430 = vcombine.low %v670, %v671
  %v1435 = vpack.c.bf16 %v1428, %v1427
  %v1436 = vpack.c.bf16 %v1430, %v1429
  %s1437 = scalar_lea.vmem %s2, 192
  %v1438 = vld [vmem:[%s1437] sm:$0xf]
  %v1439 = vld [vmem:[%s1437 + $0x4] sm:$0xf]
  %v1440 = vld [vmem:[%s1437 + $0x8] sm:$0xf]
  %v1441 = vld [vmem:[%s1437 + $0xc] sm:$0xf]
  %v1442 = vld [vmem:[%s1437 + $0x10] sm:$0xf]
  %v1443 = vld [vmem:[%s1437 + $0x14] sm:$0xf]
  %v1444 = vld [vmem:[%s1437 + $0x18] sm:$0xf]
  %v1445 = vld [vmem:[%s1437 + $0x1c] sm:$0xf]
  %v1454 = vunpack.c.l.b16 %v1438
  %v1455 = vunpack.c.l.b16 %v1439
  %v1456 = vunpack.c.l.b16 %v1440
  %v1457 = vunpack.c.l.b16 %v1441
  %v1458 = vunpack.c.l.b16 %v1442
  %v1459 = vunpack.c.l.b16 %v1443
  %v1460 = vunpack.c.l.b16 %v1444
  %v1461 = vunpack.c.l.b16 %v1445
  %v1462 = vpack.c.b16 %v1455, %v1454
  %v1463 = vpack.c.b16 %v1457, %v1456
  %v1464 = vpack.c.b16 %v1459, %v1458
  %v1465 = vpack.c.b16 %v1461, %v1460
  %v1471 = vsel %vm750, %v1435, 0
  %v1474 = vsel %vm750, %v1436, 0
  %1476 = vmatprep.subr.bf16.mxu0 0
  %1477 = vmatpush1.bf16.msra.mxu0 0
  %1478 = vmatprep.subr.bf16.mxu0 0
  %1479 = vmatpush1.bf16.msra.mxu0 0
  %1480 = vmatprep.subr.bf16.mxu0 0
  %1481 = vmatpush1.bf16.msra.mxu0 0
  %1482 = vmatprep.subr.bf16.mxu0 0
  %1483 = vmatpush1.bf16.msra.mxu0 0
  %1484 = vmatprep.subr.bf16.mxu0 0
  %1485 = vmatpush1.bf16.msra.mxu0 %v1465
  %1486 = vmatprep.subr.bf16.mxu0 0
  %1487 = vmatpush1.bf16.msra.mxu0 %v1464
  %1488 = vmatprep.subr.bf16.mxu0 0
  %1489 = vmatpush1.bf16.msra.mxu0 %v1463
  %1490 = vmatprep.subr.bf16.mxu0 0
  %1491 = vmatpush1.bf16.msra.mxu0 %v1462
  %1492 = vmatprep.subr.bf16.mxu0 0
  %1493 = vmatpush2.bf16.msra.mxu0 0
  %1494 = vmatprep.subr.bf16.mxu0 0
  %1495 = vmatpush2.bf16.msra.mxu0 0
  %1496 = vmatprep.subr.bf16.mxu0 0
  %1497 = vmatpush2.bf16.msra.mxu0 0
  %1498 = vmatprep.subr.bf16.mxu0 0
  %1499 = vmatpush2.bf16.msra.mxu0 0
  %1500 = vmatprep.subr.bf16.mxu0 0
  %1501 = vmatpush2.bf16.msra.mxu0 0
  %1502 = vmatprep.subr.bf16.mxu0 0
  %1503 = vmatpush2.bf16.msra.mxu0 0
  %1504 = vmatprep.subr.bf16.mxu0 0
  %1505 = vmatpush2.bf16.msra.mxu0 0
  %1506 = vmatprep.subr.bf16.mxu0 0
  %1507 = vmatpush2.bf16.msra.mxu0 0
  %1508 = vmatprep.mubr.bf16.mxu0 0
  %1509 = vmatmul.mubr.bf16.gmra.mxu0 %v1471
  %v1510 = vpop.f32.mrf.mxu0
  %v1511 = vadd.f32 0.0, %v1510
  %v1512 = vpop.f32.mrf.mxu0
  %v1513 = vpop.f32.mrf.mxu0
  %v1514 = vadd.f32 0.0, %v1513
  %v1515 = vpop.f32.mrf.mxu0
  %1516 = vmatprep.mubr.bf16.mxu0 0
  %1517 = vmatmul.mubr.bf16.gmra.mxu0 %v1474
  %v1518 = vpop.f32.mrf.mxu0
  %v1519 = vadd.f32 0.0, %v1518
  %v1520 = vpop.f32.mrf.mxu0
  %v1521 = vpop.f32.mrf.mxu0
  %v1522 = vadd.f32 0.0, %v1521
  %v1523 = vpop.f32.mrf.mxu0
  %1524 = vdwg.mxu0
  %v1525 = vadd.f32 %v1415, %v1511
  %v1526 = vadd.f32 %v1416, %v1514
  %v1527 = vadd.f32 %v1417, %v1519
  %v1528 = vadd.f32 %v1418, %v1522
  %v1529 = vcombine.high %v641, %v641
  %v1530 = vcombine.high %v642, %v642
  %v1531 = vcombine.high %v643, %v643
  %v1532 = vcombine.high %v644, %v644
  %v1533 = vcombine.high %v663, %v663
  %v1534 = vcombine.high %v664, %v664
  %v1535 = vcombine.high %v665, %v665
  %v1536 = vcombine.high %v666, %v666
  %v1537 = vrot.slane %v641, 5
  %v1538 = vrot.slane %v1537, 4
  %v1539 = vrot.slane %v1529, 5
  %v1540 = vsel %vm895, %v1538, %v1539
  %v1541 = vrot.slane %v642, 5
  %v1542 = vrot.slane %v1541, 4
  %v1543 = vrot.slane %v1530, 5
  %v1544 = vsel %vm895, %v1542, %v1543
  %v1545 = vrot.slane %v643, 5
  %v1546 = vrot.slane %v1545, 4
  %v1547 = vrot.slane %v1531, 5
  %v1548 = vsel %vm895, %v1546, %v1547
  %v1549 = vrot.slane %v644, 5
  %v1550 = vrot.slane %v1549, 4
  %v1551 = vrot.slane %v1532, 5
  %v1552 = vsel %vm895, %v1550, %v1551
  %v1553 = vrot.slane %v663, 5
  %v1554 = vrot.slane %v1553, 4
  %v1555 = vrot.slane %v1533, 5
  %v1556 = vsel %vm895, %v1554, %v1555
  %v1557 = vrot.slane %v664, 5
  %v1558 = vrot.slane %v1557, 4
  %v1559 = vrot.slane %v1534, 5
  %v1560 = vsel %vm895, %v1558, %v1559
  %v1561 = vrot.slane %v665, 5
  %v1562 = vrot.slane %v1561, 4
  %v1563 = vrot.slane %v1535, 5
  %v1564 = vsel %vm895, %v1562, %v1563
  %v1565 = vrot.slane %v666, 5
  %v1566 = vrot.slane %v1565, 4
  %v1567 = vrot.slane %v1536, 5
  %v1568 = vsel %vm895, %v1566, %v1567
  %v1569 = vcombine.low %v1540, %v1544
  %v1570 = vcombine.low %v1548, %v1552
  %v1571 = vcombine.low %v1556, %v1560
  %v1572 = vcombine.low %v1564, %v1568
  %v1577 = vpack.c.bf16 %v1570, %v1569
  %v1578 = vpack.c.bf16 %v1572, %v1571
  %s1579 = scalar_lea.vmem %s2, 224
  %v1580 = vld [vmem:[%s1579] sm:$0xf]
  %v1581 = vld [vmem:[%s1579 + $0x4] sm:$0xf]
  %v1582 = vld [vmem:[%s1579 + $0x8] sm:$0xf]
  %v1583 = vld [vmem:[%s1579 + $0xc] sm:$0xf]
  %v1584 = vld [vmem:[%s1579 + $0x10] sm:$0xf]
  %v1585 = vld [vmem:[%s1579 + $0x14] sm:$0xf]
  %v1586 = vld [vmem:[%s1579 + $0x18] sm:$0xf]
  %v1587 = vld [vmem:[%s1579 + $0x1c] sm:$0xf]
  %v1596 = vunpack.c.l.b16 %v1580
  %v1597 = vunpack.c.l.b16 %v1581
  %v1598 = vunpack.c.l.b16 %v1582
  %v1599 = vunpack.c.l.b16 %v1583
  %v1600 = vunpack.c.l.b16 %v1584
  %v1601 = vunpack.c.l.b16 %v1585
  %v1602 = vunpack.c.l.b16 %v1586
  %v1603 = vunpack.c.l.b16 %v1587
  %v1604 = vpack.c.b16 %v1597, %v1596
  %v1605 = vpack.c.b16 %v1599, %v1598
  %v1606 = vpack.c.b16 %v1601, %v1600
  %v1607 = vpack.c.b16 %v1603, %v1602
  %v1613 = vsel %vm750, %v1577, 0
  %v1616 = vsel %vm750, %v1578, 0
  %1618 = vmatprep.subr.bf16.mxu0 0
  %1619 = vmatpush1.bf16.msra.mxu0 0
  %1620 = vmatprep.subr.bf16.mxu0 0
  %1621 = vmatpush1.bf16.msra.mxu0 0
  %1622 = vmatprep.subr.bf16.mxu0 0
  %1623 = vmatpush1.bf16.msra.mxu0 0
  %1624 = vmatprep.subr.bf16.mxu0 0
  %1625 = vmatpush1.bf16.msra.mxu0 0
  %1626 = vmatprep.subr.bf16.mxu0 0
  %1627 = vmatpush1.bf16.msra.mxu0 %v1607
  %1628 = vmatprep.subr.bf16.mxu0 0
  %1629 = vmatpush1.bf16.msra.mxu0 %v1606
  %1630 = vmatprep.subr.bf16.mxu0 0
  %1631 = vmatpush1.bf16.msra.mxu0 %v1605
  %1632 = vmatprep.subr.bf16.mxu0 0
  %1633 = vmatpush1.bf16.msra.mxu0 %v1604
  %1634 = vmatprep.subr.bf16.mxu0 0
  %1635 = vmatpush2.bf16.msra.mxu0 0
  %1636 = vmatprep.subr.bf16.mxu0 0
  %1637 = vmatpush2.bf16.msra.mxu0 0
  %1638 = vmatprep.subr.bf16.mxu0 0
  %1639 = vmatpush2.bf16.msra.mxu0 0
  %1640 = vmatprep.subr.bf16.mxu0 0
  %1641 = vmatpush2.bf16.msra.mxu0 0
  %1642 = vmatprep.subr.bf16.mxu0 0
  %1643 = vmatpush2.bf16.msra.mxu0 0
  %1644 = vmatprep.subr.bf16.mxu0 0
  %1645 = vmatpush2.bf16.msra.mxu0 0
  %1646 = vmatprep.subr.bf16.mxu0 0
  %1647 = vmatpush2.bf16.msra.mxu0 0
  %1648 = vmatprep.subr.bf16.mxu0 0
  %1649 = vmatpush2.bf16.msra.mxu0 0
  %1650 = vmatprep.mubr.bf16.mxu0 0
  %1651 = vmatmul.mubr.bf16.gmra.mxu0 %v1613
  %v1652 = vpop.f32.mrf.mxu0
  %v1653 = vadd.f32 0.0, %v1652
  %v1654 = vpop.f32.mrf.mxu0
  %v1655 = vpop.f32.mrf.mxu0
  %v1656 = vadd.f32 0.0, %v1655
  %v1657 = vpop.f32.mrf.mxu0
  %1658 = vmatprep.mubr.bf16.mxu0 0
  %1659 = vmatmul.mubr.bf16.gmra.mxu0 %v1616
  %v1660 = vpop.f32.mrf.mxu0
  %v1661 = vadd.f32 0.0, %v1660
  %v1662 = vpop.f32.mrf.mxu0
  %v1663 = vpop.f32.mrf.mxu0
  %v1664 = vadd.f32 0.0, %v1663
  %v1665 = vpop.f32.mrf.mxu0
  %1666 = vdwg.mxu0
  %v1667 = vadd.f32 %v1525, %v1653
  %v1668 = vadd.f32 %v1526, %v1656
  %v1669 = vadd.f32 %v1527, %v1661
  %v1670 = vadd.f32 %v1528, %v1664
  %v1671 = vcombine.high %v646, %v646
  %v1672 = vcombine.high %v647, %v647
  %v1673 = vcombine.high %v648, %v648
  %v1674 = vcombine.high %v649, %v649
  %v1675 = vcombine.high %v668, %v668
  %v1676 = vcombine.high %v669, %v669
  %v1677 = vcombine.high %v670, %v670
  %v1678 = vcombine.high %v671, %v671
  %v1679 = vrot.slane %v646, 5
  %v1680 = vrot.slane %v1679, 4
  %v1681 = vrot.slane %v1671, 5
  %v1682 = vsel %vm895, %v1680, %v1681
  %v1683 = vrot.slane %v647, 5
  %v1684 = vrot.slane %v1683, 4
  %v1685 = vrot.slane %v1672, 5
  %v1686 = vsel %vm895, %v1684, %v1685
  %v1687 = vrot.slane %v648, 5
  %v1688 = vrot.slane %v1687, 4
  %v1689 = vrot.slane %v1673, 5
  %v1690 = vsel %vm895, %v1688, %v1689
  %v1691 = vrot.slane %v649, 5
  %v1692 = vrot.slane %v1691, 4
  %v1693 = vrot.slane %v1674, 5
  %v1694 = vsel %vm895, %v1692, %v1693
  %v1695 = vrot.slane %v668, 5
  %v1696 = vrot.slane %v1695, 4
  %v1697 = vrot.slane %v1675, 5
  %v1698 = vsel %vm895, %v1696, %v1697
  %v1699 = vrot.slane %v669, 5
  %v1700 = vrot.slane %v1699, 4
  %v1701 = vrot.slane %v1676, 5
  %v1702 = vsel %vm895, %v1700, %v1701
  %v1703 = vrot.slane %v670, 5
  %v1704 = vrot.slane %v1703, 4
  %v1705 = vrot.slane %v1677, 5
  %v1706 = vsel %vm895, %v1704, %v1705
  %v1707 = vrot.slane %v671, 5
  %v1708 = vrot.slane %v1707, 4
  %v1709 = vrot.slane %v1678, 5
  %v1710 = vsel %vm895, %v1708, %v1709
  %v1711 = vcombine.low %v1682, %v1686
  %v1712 = vcombine.low %v1690, %v1694
  %v1713 = vcombine.low %v1698, %v1702
  %v1714 = vcombine.low %v1706, %v1710
  %v1719 = vpack.c.bf16 %v1712, %v1711
  %v1720 = vpack.c.bf16 %v1714, %v1713
  %s1721 = scalar_lea.vmem %s2, 256
  %v1722 = vld [vmem:[%s1721] sm:$0xf]
  %v1723 = vld [vmem:[%s1721 + $0x4] sm:$0xf]
  %v1724 = vld [vmem:[%s1721 + $0x8] sm:$0xf]
  %v1725 = vld [vmem:[%s1721 + $0xc] sm:$0xf]
  %v1726 = vld [vmem:[%s1721 + $0x10] sm:$0xf]
  %v1727 = vld [vmem:[%s1721 + $0x14] sm:$0xf]
  %v1728 = vld [vmem:[%s1721 + $0x18] sm:$0xf]
  %v1729 = vld [vmem:[%s1721 + $0x1c] sm:$0xf]
  %v1738 = vunpack.c.l.b16 %v1722
  %v1739 = vunpack.c.l.b16 %v1723
  %v1740 = vunpack.c.l.b16 %v1724
  %v1741 = vunpack.c.l.b16 %v1725
  %v1742 = vunpack.c.l.b16 %v1726
  %v1743 = vunpack.c.l.b16 %v1727
  %v1744 = vunpack.c.l.b16 %v1728
  %v1745 = vunpack.c.l.b16 %v1729
  %v1746 = vpack.c.b16 %v1739, %v1738
  %v1747 = vpack.c.b16 %v1741, %v1740
  %v1748 = vpack.c.b16 %v1743, %v1742
  %v1749 = vpack.c.b16 %v1745, %v1744
  %v1755 = vsel %vm750, %v1719, 0
  %v1758 = vsel %vm750, %v1720, 0
  %1760 = vmatprep.subr.bf16.mxu0 0
  %1761 = vmatpush1.bf16.msra.mxu0 0
  %1762 = vmatprep.subr.bf16.mxu0 0
  %1763 = vmatpush1.bf16.msra.mxu0 0
  %1764 = vmatprep.subr.bf16.mxu0 0
  %1765 = vmatpush1.bf16.msra.mxu0 0
  %1766 = vmatprep.subr.bf16.mxu0 0
  %1767 = vmatpush1.bf16.msra.mxu0 0
  %1768 = vmatprep.subr.bf16.mxu0 0
  %1769 = vmatpush1.bf16.msra.mxu0 %v1749
  %1770 = vmatprep.subr.bf16.mxu0 0
  %1771 = vmatpush1.bf16.msra.mxu0 %v1748
  %1772 = vmatprep.subr.bf16.mxu0 0
  %1773 = vmatpush1.bf16.msra.mxu0 %v1747
  %1774 = vmatprep.subr.bf16.mxu0 0
  %1775 = vmatpush1.bf16.msra.mxu0 %v1746
  %1776 = vmatprep.subr.bf16.mxu0 0
  %1777 = vmatpush2.bf16.msra.mxu0 0
  %1778 = vmatprep.subr.bf16.mxu0 0
  %1779 = vmatpush2.bf16.msra.mxu0 0
  %1780 = vmatprep.subr.bf16.mxu0 0
  %1781 = vmatpush2.bf16.msra.mxu0 0
  %1782 = vmatprep.subr.bf16.mxu0 0
  %1783 = vmatpush2.bf16.msra.mxu0 0
  %1784 = vmatprep.subr.bf16.mxu0 0
  %1785 = vmatpush2.bf16.msra.mxu0 0
  %1786 = vmatprep.subr.bf16.mxu0 0
  %1787 = vmatpush2.bf16.msra.mxu0 0
  %1788 = vmatprep.subr.bf16.mxu0 0
  %1789 = vmatpush2.bf16.msra.mxu0 0
  %1790 = vmatprep.subr.bf16.mxu0 0
  %1791 = vmatpush2.bf16.msra.mxu0 0
  %1792 = vmatprep.mubr.bf16.mxu0 0
  %1793 = vmatmul.mubr.bf16.gmra.mxu0 %v1755
  %v1794 = vpop.f32.mrf.mxu0
  %v1795 = vadd.f32 0.0, %v1794
  %v1796 = vpop.f32.mrf.mxu0
  %v1797 = vpop.f32.mrf.mxu0
  %v1798 = vadd.f32 0.0, %v1797
  %v1799 = vpop.f32.mrf.mxu0
  %1800 = vmatprep.mubr.bf16.mxu0 0
  %1801 = vmatmul.mubr.bf16.gmra.mxu0 %v1758
  %v1802 = vpop.f32.mrf.mxu0
  %v1803 = vadd.f32 0.0, %v1802
  %v1804 = vpop.f32.mrf.mxu0
  %v1805 = vpop.f32.mrf.mxu0
  %v1806 = vadd.f32 0.0, %v1805
  %v1807 = vpop.f32.mrf.mxu0
  %1808 = vdwg.mxu0
  %v1809 = vadd.f32 %v1667, %v1795
  %v1810 = vadd.f32 %v1668, %v1798
  %v1811 = vadd.f32 %v1669, %v1803
  %v1812 = vadd.f32 %v1670, %v1806
  %v1813 = vrot.slane %v641, 6
  %v1814 = vrot.slane %v1813, 4
  %v1815 = vrot.slane %v1529, 6
  %v1816 = vsel %vm1174, %v1814, %v1815
  %v1817 = vrot.slane %v642, 6
  %v1818 = vrot.slane %v1817, 4
  %v1819 = vrot.slane %v1530, 6
  %v1820 = vsel %vm1174, %v1818, %v1819
  %v1821 = vrot.slane %v643, 6
  %v1822 = vrot.slane %v1821, 4
  %v1823 = vrot.slane %v1531, 6
  %v1824 = vsel %vm1174, %v1822, %v1823
  %v1825 = vrot.slane %v644, 6
  %v1826 = vrot.slane %v1825, 4
  %v1827 = vrot.slane %v1532, 6
  %v1828 = vsel %vm1174, %v1826, %v1827
  %v1829 = vrot.slane %v663, 6
  %v1830 = vrot.slane %v1829, 4
  %v1831 = vrot.slane %v1533, 6
  %v1832 = vsel %vm1174, %v1830, %v1831
  %v1833 = vrot.slane %v664, 6
  %v1834 = vrot.slane %v1833, 4
  %v1835 = vrot.slane %v1534, 6
  %v1836 = vsel %vm1174, %v1834, %v1835
  %v1837 = vrot.slane %v665, 6
  %v1838 = vrot.slane %v1837, 4
  %v1839 = vrot.slane %v1535, 6
  %v1840 = vsel %vm1174, %v1838, %v1839
  %v1841 = vrot.slane %v666, 6
  %v1842 = vrot.slane %v1841, 4
  %v1843 = vrot.slane %v1536, 6
  %v1844 = vsel %vm1174, %v1842, %v1843
  %v1845 = vcombine.low %v1816, %v1820
  %v1846 = vcombine.low %v1824, %v1828
  %v1847 = vcombine.low %v1832, %v1836
  %v1848 = vcombine.low %v1840, %v1844
  %v1853 = vpack.c.bf16 %v1846, %v1845
  %v1854 = vpack.c.bf16 %v1848, %v1847
  %s1855 = scalar_lea.vmem %s2, 288
  %v1856 = vld [vmem:[%s1855] sm:$0xf]
  %v1857 = vld [vmem:[%s1855 + $0x4] sm:$0xf]
  %v1858 = vld [vmem:[%s1855 + $0x8] sm:$0xf]
  %v1859 = vld [vmem:[%s1855 + $0xc] sm:$0xf]
  %v1860 = vld [vmem:[%s1855 + $0x10] sm:$0xf]
  %v1861 = vld [vmem:[%s1855 + $0x14] sm:$0xf]
  %v1862 = vld [vmem:[%s1855 + $0x18] sm:$0xf]
  %v1863 = vld [vmem:[%s1855 + $0x1c] sm:$0xf]
  %v1872 = vunpack.c.l.b16 %v1856
  %v1873 = vunpack.c.l.b16 %v1857
  %v1874 = vunpack.c.l.b16 %v1858
  %v1875 = vunpack.c.l.b16 %v1859
  %v1876 = vunpack.c.l.b16 %v1860
  %v1877 = vunpack.c.l.b16 %v1861
  %v1878 = vunpack.c.l.b16 %v1862
  %v1879 = vunpack.c.l.b16 %v1863
  %v1880 = vpack.c.b16 %v1873, %v1872
  %v1881 = vpack.c.b16 %v1875, %v1874
  %v1882 = vpack.c.b16 %v1877, %v1876
  %v1883 = vpack.c.b16 %v1879, %v1878
  %v1889 = vsel %vm750, %v1853, 0
  %v1892 = vsel %vm750, %v1854, 0
  %1894 = vmatprep.subr.bf16.mxu0 0
  %1895 = vmatpush1.bf16.msra.mxu0 0
  %1896 = vmatprep.subr.bf16.mxu0 0
  %1897 = vmatpush1.bf16.msra.mxu0 0
  %1898 = vmatprep.subr.bf16.mxu0 0
  %1899 = vmatpush1.bf16.msra.mxu0 0
  %1900 = vmatprep.subr.bf16.mxu0 0
  %1901 = vmatpush1.bf16.msra.mxu0 0
  %1902 = vmatprep.subr.bf16.mxu0 0
  %1903 = vmatpush1.bf16.msra.mxu0 %v1883
  %1904 = vmatprep.subr.bf16.mxu0 0
  %1905 = vmatpush1.bf16.msra.mxu0 %v1882
  %1906 = vmatprep.subr.bf16.mxu0 0
  %1907 = vmatpush1.bf16.msra.mxu0 %v1881
  %1908 = vmatprep.subr.bf16.mxu0 0
  %1909 = vmatpush1.bf16.msra.mxu0 %v1880
  %1910 = vmatprep.subr.bf16.mxu0 0
  %1911 = vmatpush2.bf16.msra.mxu0 0
  %1912 = vmatprep.subr.bf16.mxu0 0
  %1913 = vmatpush2.bf16.msra.mxu0 0
  %1914 = vmatprep.subr.bf16.mxu0 0
  %1915 = vmatpush2.bf16.msra.mxu0 0
  %1916 = vmatprep.subr.bf16.mxu0 0
  %1917 = vmatpush2.bf16.msra.mxu0 0
  %1918 = vmatprep.subr.bf16.mxu0 0
  %1919 = vmatpush2.bf16.msra.mxu0 0
  %1920 = vmatprep.subr.bf16.mxu0 0
  %1921 = vmatpush2.bf16.msra.mxu0 0
  %1922 = vmatprep.subr.bf16.mxu0 0
  %1923 = vmatpush2.bf16.msra.mxu0 0
  %1924 = vmatprep.subr.bf16.mxu0 0
  %1925 = vmatpush2.bf16.msra.mxu0 0
  %1926 = vmatprep.mubr.bf16.mxu0 0
  %1927 = vmatmul.mubr.bf16.gmra.mxu0 %v1889
  %v1928 = vpop.f32.mrf.mxu0
  %v1929 = vadd.f32 0.0, %v1928
  %v1930 = vpop.f32.mrf.mxu0
  %v1931 = vpop.f32.mrf.mxu0
  %v1932 = vadd.f32 0.0, %v1931
  %v1933 = vpop.f32.mrf.mxu0
  %1934 = vmatprep.mubr.bf16.mxu0 0
  %1935 = vmatmul.mubr.bf16.gmra.mxu0 %v1892
  %v1936 = vpop.f32.mrf.mxu0
  %v1937 = vadd.f32 0.0, %v1936
  %v1938 = vpop.f32.mrf.mxu0
  %v1939 = vpop.f32.mrf.mxu0
  %v1940 = vadd.f32 0.0, %v1939
  %v1941 = vpop.f32.mrf.mxu0
  %1942 = vdwg.mxu0
  %v1943 = vadd.f32 %v1809, %v1929
  %v1944 = vadd.f32 %v1810, %v1932
  %v1945 = vadd.f32 %v1811, %v1937
  %v1946 = vadd.f32 %v1812, %v1940
  %v1949 = vcombine.low %v630, %v631
  %v1950 = vcombine.low %v632, %v633
  %v1951 = vcombine.low %v652, %v653
  %v1952 = vcombine.low %v654, %v655
  %v1957 = vpack.c.bf16 %v1950, %v1949
  %v1958 = vpack.c.bf16 %v1952, %v1951
  %s1959 = scalar_lea.vmem %s2, 320
  %v1960 = vld [vmem:[%s1959] sm:$0xf]
  %v1961 = vld [vmem:[%s1959 + $0x4] sm:$0xf]
  %v1962 = vld [vmem:[%s1959 + $0x8] sm:$0xf]
  %v1963 = vld [vmem:[%s1959 + $0xc] sm:$0xf]
  %v1964 = vld [vmem:[%s1959 + $0x10] sm:$0xf]
  %v1965 = vld [vmem:[%s1959 + $0x14] sm:$0xf]
  %v1966 = vld [vmem:[%s1959 + $0x18] sm:$0xf]
  %v1967 = vld [vmem:[%s1959 + $0x1c] sm:$0xf]
  %v1976 = vunpack.c.l.b16 %v1960
  %v1977 = vunpack.c.l.b16 %v1961
  %v1978 = vunpack.c.l.b16 %v1962
  %v1979 = vunpack.c.l.b16 %v1963
  %v1980 = vunpack.c.l.b16 %v1964
  %v1981 = vunpack.c.l.b16 %v1965
  %v1982 = vunpack.c.l.b16 %v1966
  %v1983 = vunpack.c.l.b16 %v1967
  %v1984 = vpack.c.b16 %v1977, %v1976
  %v1985 = vpack.c.b16 %v1979, %v1978
  %v1986 = vpack.c.b16 %v1981, %v1980
  %v1987 = vpack.c.b16 %v1983, %v1982
  %v1993 = vsel %vm750, %v1957, 0
  %v1996 = vsel %vm750, %v1958, 0
  %1998 = vmatprep.subr.bf16.mxu0 0
  %1999 = vmatpush1.bf16.msra.mxu0 0
  %2000 = vmatprep.subr.bf16.mxu0 0
  %2001 = vmatpush1.bf16.msra.mxu0 0
  %2002 = vmatprep.subr.bf16.mxu0 0
  %2003 = vmatpush1.bf16.msra.mxu0 0
  %2004 = vmatprep.subr.bf16.mxu0 0
  %2005 = vmatpush1.bf16.msra.mxu0 0
  %2006 = vmatprep.subr.bf16.mxu0 0
  %2007 = vmatpush1.bf16.msra.mxu0 %v1987
  %2008 = vmatprep.subr.bf16.mxu0 0
  %2009 = vmatpush1.bf16.msra.mxu0 %v1986
  %2010 = vmatprep.subr.bf16.mxu0 0
  %2011 = vmatpush1.bf16.msra.mxu0 %v1985
  %2012 = vmatprep.subr.bf16.mxu0 0
  %2013 = vmatpush1.bf16.msra.mxu0 %v1984
  %2014 = vmatprep.subr.bf16.mxu0 0
  %2015 = vmatpush2.bf16.msra.mxu0 0
  %2016 = vmatprep.subr.bf16.mxu0 0
  %2017 = vmatpush2.bf16.msra.mxu0 0
  %2018 = vmatprep.subr.bf16.mxu0 0
  %2019 = vmatpush2.bf16.msra.mxu0 0
  %2020 = vmatprep.subr.bf16.mxu0 0
  %2021 = vmatpush2.bf16.msra.mxu0 0
  %2022 = vmatprep.subr.bf16.mxu0 0
  %2023 = vmatpush2.bf16.msra.mxu0 0
  %2024 = vmatprep.subr.bf16.mxu0 0
  %2025 = vmatpush2.bf16.msra.mxu0 0
  %2026 = vmatprep.subr.bf16.mxu0 0
  %2027 = vmatpush2.bf16.msra.mxu0 0
  %2028 = vmatprep.subr.bf16.mxu0 0
  %2029 = vmatpush2.bf16.msra.mxu0 0
  %2030 = vmatprep.mubr.bf16.mxu0 0
  %2031 = vmatmul.mubr.bf16.gmra.mxu0 %v1993
  %v2032 = vpop.f32.mrf.mxu0
  %v2033 = vadd.f32 0.0, %v2032
  %v2034 = vpop.f32.mrf.mxu0
  %v2035 = vpop.f32.mrf.mxu0
  %v2036 = vadd.f32 0.0, %v2035
  %v2037 = vpop.f32.mrf.mxu0
  %2038 = vmatprep.mubr.bf16.mxu0 0
  %2039 = vmatmul.mubr.bf16.gmra.mxu0 %v1996
  %v2040 = vpop.f32.mrf.mxu0
  %v2041 = vadd.f32 0.0, %v2040
  %v2042 = vpop.f32.mrf.mxu0
  %v2043 = vpop.f32.mrf.mxu0
  %v2044 = vadd.f32 0.0, %v2043
  %v2045 = vpop.f32.mrf.mxu0
  %2046 = vdwg.mxu0
  %v2047 = vadd.f32 %v1943, %v2033
  %v2048 = vadd.f32 %v1944, %v2036
  %v2049 = vadd.f32 %v1945, %v2041
  %v2050 = vadd.f32 %v1946, %v2044
  %v2053 = vcombine.low %v636, %v637
  %v2054 = vcombine.low %v638, %v639
  %v2055 = vcombine.low %v658, %v659
  %v2056 = vcombine.low %v660, %v661
  %v2061 = vpack.c.bf16 %v2054, %v2053
  %v2062 = vpack.c.bf16 %v2056, %v2055
  %s2063 = scalar_lea.vmem %s2, 352
  %v2064 = vld [vmem:[%s2063] sm:$0xf]
  %v2065 = vld [vmem:[%s2063 + $0x4] sm:$0xf]
  %v2066 = vld [vmem:[%s2063 + $0x8] sm:$0xf]
  %v2067 = vld [vmem:[%s2063 + $0xc] sm:$0xf]
  %v2068 = vld [vmem:[%s2063 + $0x10] sm:$0xf]
  %v2069 = vld [vmem:[%s2063 + $0x14] sm:$0xf]
  %v2070 = vld [vmem:[%s2063 + $0x18] sm:$0xf]
  %v2071 = vld [vmem:[%s2063 + $0x1c] sm:$0xf]
  %v2080 = vunpack.c.l.b16 %v2064
  %v2081 = vunpack.c.l.b16 %v2065
  %v2082 = vunpack.c.l.b16 %v2066
  %v2083 = vunpack.c.l.b16 %v2067
  %v2084 = vunpack.c.l.b16 %v2068
  %v2085 = vunpack.c.l.b16 %v2069
  %v2086 = vunpack.c.l.b16 %v2070
  %v2087 = vunpack.c.l.b16 %v2071
  %v2088 = vpack.c.b16 %v2081, %v2080
  %v2089 = vpack.c.b16 %v2083, %v2082
  %v2090 = vpack.c.b16 %v2085, %v2084
  %v2091 = vpack.c.b16 %v2087, %v2086
  %v2097 = vsel %vm750, %v2061, 0
  %v2100 = vsel %vm750, %v2062, 0
  %2102 = vmatprep.subr.bf16.mxu0 0
  %2103 = vmatpush1.bf16.msra.mxu0 0
  %2104 = vmatprep.subr.bf16.mxu0 0
  %2105 = vmatpush1.bf16.msra.mxu0 0
  %2106 = vmatprep.subr.bf16.mxu0 0
  %2107 = vmatpush1.bf16.msra.mxu0 0
  %2108 = vmatprep.subr.bf16.mxu0 0
  %2109 = vmatpush1.bf16.msra.mxu0 0
  %2110 = vmatprep.subr.bf16.mxu0 0
  %2111 = vmatpush1.bf16.msra.mxu0 %v2091
  %2112 = vmatprep.subr.bf16.mxu0 0
  %2113 = vmatpush1.bf16.msra.mxu0 %v2090
  %2114 = vmatprep.subr.bf16.mxu0 0
  %2115 = vmatpush1.bf16.msra.mxu0 %v2089
  %2116 = vmatprep.subr.bf16.mxu0 0
  %2117 = vmatpush1.bf16.msra.mxu0 %v2088
  %2118 = vmatprep.subr.bf16.mxu0 0
  %2119 = vmatpush2.bf16.msra.mxu0 0
  %2120 = vmatprep.subr.bf16.mxu0 0
  %2121 = vmatpush2.bf16.msra.mxu0 0
  %2122 = vmatprep.subr.bf16.mxu0 0
  %2123 = vmatpush2.bf16.msra.mxu0 0
  %2124 = vmatprep.subr.bf16.mxu0 0
  %2125 = vmatpush2.bf16.msra.mxu0 0
  %2126 = vmatprep.subr.bf16.mxu0 0
  %2127 = vmatpush2.bf16.msra.mxu0 0
  %2128 = vmatprep.subr.bf16.mxu0 0
  %2129 = vmatpush2.bf16.msra.mxu0 0
  %2130 = vmatprep.subr.bf16.mxu0 0
  %2131 = vmatpush2.bf16.msra.mxu0 0
  %2132 = vmatprep.subr.bf16.mxu0 0
  %2133 = vmatpush2.bf16.msra.mxu0 0
  %2134 = vmatprep.mubr.bf16.mxu0 0
  %2135 = vmatmul.mubr.bf16.gmra.mxu0 %v2097
  %v2136 = vpop.f32.mrf.mxu0
  %v2137 = vadd.f32 0.0, %v2136
  %v2138 = vpop.f32.mrf.mxu0
  %v2139 = vpop.f32.mrf.mxu0
  %v2140 = vadd.f32 0.0, %v2139
  %v2141 = vpop.f32.mrf.mxu0
  %2142 = vmatprep.mubr.bf16.mxu0 0
  %2143 = vmatmul.mubr.bf16.gmra.mxu0 %v2100
  %v2144 = vpop.f32.mrf.mxu0
  %v2145 = vadd.f32 0.0, %v2144
  %v2146 = vpop.f32.mrf.mxu0
  %v2147 = vpop.f32.mrf.mxu0
  %v2148 = vadd.f32 0.0, %v2147
  %v2149 = vpop.f32.mrf.mxu0
  %2150 = vdwg.mxu0
  %v2151 = vadd.f32 %v2047, %v2137
  %v2152 = vadd.f32 %v2048, %v2140
  %v2153 = vadd.f32 %v2049, %v2145
  %v2154 = vadd.f32 %v2050, %v2148
  %v2155 = vcombine.high %v633, %v633
  %v2156 = vcombine.high %v655, %v655
  %v2157 = vrot.slane %v633, 5
  %v2158 = vrot.slane %v2157, 4
  %v2159 = vrot.slane %v2155, 5
  %v2160 = vsel %vm895, %v2158, %v2159
  %v2161 = vrot.slane %v655, 5
  %v2162 = vrot.slane %v2161, 4
  %v2163 = vrot.slane %v2156, 5
  %v2164 = vsel %vm895, %v2162, %v2163
  %v2165 = vcombine.low %v903, %v907
  %v2166 = vcombine.low %v911, %v2160
  %v2167 = vcombine.low %v919, %v923
  %v2168 = vcombine.low %v927, %v2164
  %v2173 = vpack.c.bf16 %v2166, %v2165
  %v2174 = vpack.c.bf16 %v2168, %v2167
  %s2175 = scalar_lea.vmem %s2, 384
  %v2176 = vld [vmem:[%s2175] sm:$0xf]
  %v2177 = vld [vmem:[%s2175 + $0x4] sm:$0xf]
  %v2178 = vld [vmem:[%s2175 + $0x8] sm:$0xf]
  %v2179 = vld [vmem:[%s2175 + $0xc] sm:$0xf]
  %v2180 = vld [vmem:[%s2175 + $0x10] sm:$0xf]
  %v2181 = vld [vmem:[%s2175 + $0x14] sm:$0xf]
  %v2182 = vld [vmem:[%s2175 + $0x18] sm:$0xf]
  %v2183 = vld [vmem:[%s2175 + $0x1c] sm:$0xf]
  %v2192 = vunpack.c.l.b16 %v2176
  %v2193 = vunpack.c.l.b16 %v2177
  %v2194 = vunpack.c.l.b16 %v2178
  %v2195 = vunpack.c.l.b16 %v2179
  %v2196 = vunpack.c.l.b16 %v2180
  %v2197 = vunpack.c.l.b16 %v2181
  %v2198 = vunpack.c.l.b16 %v2182
  %v2199 = vunpack.c.l.b16 %v2183
  %v2200 = vpack.c.b16 %v2193, %v2192
  %v2201 = vpack.c.b16 %v2195, %v2194
  %v2202 = vpack.c.b16 %v2197, %v2196
  %v2203 = vpack.c.b16 %v2199, %v2198
  %v2209 = vsel %vm750, %v2173, 0
  %v2212 = vsel %vm750, %v2174, 0
  %2214 = vmatprep.subr.bf16.mxu0 0
  %2215 = vmatpush1.bf16.msra.mxu0 0
  %2216 = vmatprep.subr.bf16.mxu0 0
  %2217 = vmatpush1.bf16.msra.mxu0 0
  %2218 = vmatprep.subr.bf16.mxu0 0
  %2219 = vmatpush1.bf16.msra.mxu0 0
  %2220 = vmatprep.subr.bf16.mxu0 0
  %2221 = vmatpush1.bf16.msra.mxu0 0
  %2222 = vmatprep.subr.bf16.mxu0 0
  %2223 = vmatpush1.bf16.msra.mxu0 %v2203
  %2224 = vmatprep.subr.bf16.mxu0 0
  %2225 = vmatpush1.bf16.msra.mxu0 %v2202
  %2226 = vmatprep.subr.bf16.mxu0 0
  %2227 = vmatpush1.bf16.msra.mxu0 %v2201
  %2228 = vmatprep.subr.bf16.mxu0 0
  %2229 = vmatpush1.bf16.msra.mxu0 %v2200
  %2230 = vmatprep.subr.bf16.mxu0 0
  %2231 = vmatpush2.bf16.msra.mxu0 0
  %2232 = vmatprep.subr.bf16.mxu0 0
  %2233 = vmatpush2.bf16.msra.mxu0 0
  %2234 = vmatprep.subr.bf16.mxu0 0
  %2235 = vmatpush2.bf16.msra.mxu0 0
  %2236 = vmatprep.subr.bf16.mxu0 0
  %2237 = vmatpush2.bf16.msra.mxu0 0
  %2238 = vmatprep.subr.bf16.mxu0 0
  %2239 = vmatpush2.bf16.msra.mxu0 0
  %2240 = vmatprep.subr.bf16.mxu0 0
  %2241 = vmatpush2.bf16.msra.mxu0 0
  %2242 = vmatprep.subr.bf16.mxu0 0
  %2243 = vmatpush2.bf16.msra.mxu0 0
  %2244 = vmatprep.subr.bf16.mxu0 0
  %2245 = vmatpush2.bf16.msra.mxu0 0
  %2246 = vmatprep.mubr.bf16.mxu0 0
  %2247 = vmatmul.mubr.bf16.gmra.mxu0 %v2209
  %v2248 = vpop.f32.mrf.mxu0
  %v2249 = vadd.f32 0.0, %v2248
  %v2250 = vpop.f32.mrf.mxu0
  %v2251 = vpop.f32.mrf.mxu0
  %v2252 = vadd.f32 0.0, %v2251
  %v2253 = vpop.f32.mrf.mxu0
  %2254 = vmatprep.mubr.bf16.mxu0 0
  %2255 = vmatmul.mubr.bf16.gmra.mxu0 %v2212
  %v2256 = vpop.f32.mrf.mxu0
  %v2257 = vadd.f32 0.0, %v2256
  %v2258 = vpop.f32.mrf.mxu0
  %v2259 = vpop.f32.mrf.mxu0
  %v2260 = vadd.f32 0.0, %v2259
  %v2261 = vpop.f32.mrf.mxu0
  %2262 = vdwg.mxu0
  %v2263 = vadd.f32 %v2151, %v2249
  %v2264 = vadd.f32 %v2152, %v2252
  %v2265 = vadd.f32 %v2153, %v2257
  %v2266 = vadd.f32 %v2154, %v2260
  %v2267 = vcombine.high %v639, %v639
  %v2268 = vcombine.high %v661, %v661
  %v2269 = vrot.slane %v639, 5
  %v2270 = vrot.slane %v2269, 4
  %v2271 = vrot.slane %v2267, 5
  %v2272 = vsel %vm895, %v2270, %v2271
  %v2273 = vrot.slane %v661, 5
  %v2274 = vrot.slane %v2273, 4
  %v2275 = vrot.slane %v2268, 5
  %v2276 = vsel %vm895, %v2274, %v2275
  %v2277 = vcombine.low %v1045, %v1049
  %v2278 = vcombine.low %v1053, %v2272
  %v2279 = vcombine.low %v1061, %v1065
  %v2280 = vcombine.low %v1069, %v2276
  %v2285 = vpack.c.bf16 %v2278, %v2277
  %v2286 = vpack.c.bf16 %v2280, %v2279
  %s2287 = scalar_lea.vmem %s2, 416
  %v2288 = vld [vmem:[%s2287] sm:$0xf]
  %v2289 = vld [vmem:[%s2287 + $0x4] sm:$0xf]
  %v2290 = vld [vmem:[%s2287 + $0x8] sm:$0xf]
  %v2291 = vld [vmem:[%s2287 + $0xc] sm:$0xf]
  %v2292 = vld [vmem:[%s2287 + $0x10] sm:$0xf]
  %v2293 = vld [vmem:[%s2287 + $0x14] sm:$0xf]
  %v2294 = vld [vmem:[%s2287 + $0x18] sm:$0xf]
  %v2295 = vld [vmem:[%s2287 + $0x1c] sm:$0xf]
  %v2304 = vunpack.c.l.b16 %v2288
  %v2305 = vunpack.c.l.b16 %v2289
  %v2306 = vunpack.c.l.b16 %v2290
  %v2307 = vunpack.c.l.b16 %v2291
  %v2308 = vunpack.c.l.b16 %v2292
  %v2309 = vunpack.c.l.b16 %v2293
  %v2310 = vunpack.c.l.b16 %v2294
  %v2311 = vunpack.c.l.b16 %v2295
  %v2312 = vpack.c.b16 %v2305, %v2304
  %v2313 = vpack.c.b16 %v2307, %v2306
  %v2314 = vpack.c.b16 %v2309, %v2308
  %v2315 = vpack.c.b16 %v2311, %v2310
  %v2321 = vsel %vm750, %v2285, 0
  %v2324 = vsel %vm750, %v2286, 0
  %2326 = vmatprep.subr.bf16.mxu0 0
  %2327 = vmatpush1.bf16.msra.mxu0 0
  %2328 = vmatprep.subr.bf16.mxu0 0
  %2329 = vmatpush1.bf16.msra.mxu0 0
  %2330 = vmatprep.subr.bf16.mxu0 0
  %2331 = vmatpush1.bf16.msra.mxu0 0
  %2332 = vmatprep.subr.bf16.mxu0 0
  %2333 = vmatpush1.bf16.msra.mxu0 0
  %2334 = vmatprep.subr.bf16.mxu0 0
  %2335 = vmatpush1.bf16.msra.mxu0 %v2315
  %2336 = vmatprep.subr.bf16.mxu0 0
  %2337 = vmatpush1.bf16.msra.mxu0 %v2314
  %2338 = vmatprep.subr.bf16.mxu0 0
  %2339 = vmatpush1.bf16.msra.mxu0 %v2313
  %2340 = vmatprep.subr.bf16.mxu0 0
  %2341 = vmatpush1.bf16.msra.mxu0 %v2312
  %2342 = vmatprep.subr.bf16.mxu0 0
  %2343 = vmatpush2.bf16.msra.mxu0 0
  %2344 = vmatprep.subr.bf16.mxu0 0
  %2345 = vmatpush2.bf16.msra.mxu0 0
  %2346 = vmatprep.subr.bf16.mxu0 0
  %2347 = vmatpush2.bf16.msra.mxu0 0
  %2348 = vmatprep.subr.bf16.mxu0 0
  %2349 = vmatpush2.bf16.msra.mxu0 0
  %2350 = vmatprep.subr.bf16.mxu0 0
  %2351 = vmatpush2.bf16.msra.mxu0 0
  %2352 = vmatprep.subr.bf16.mxu0 0
  %2353 = vmatpush2.bf16.msra.mxu0 0
  %2354 = vmatprep.subr.bf16.mxu0 0
  %2355 = vmatpush2.bf16.msra.mxu0 0
  %2356 = vmatprep.subr.bf16.mxu0 0
  %2357 = vmatpush2.bf16.msra.mxu0 0
  %2358 = vmatprep.mubr.bf16.mxu0 0
  %2359 = vmatmul.mubr.bf16.gmra.mxu0 %v2321
  %v2360 = vpop.f32.mrf.mxu0
  %v2361 = vadd.f32 0.0, %v2360
  %v2362 = vpop.f32.mrf.mxu0
  %v2363 = vpop.f32.mrf.mxu0
  %v2364 = vadd.f32 0.0, %v2363
  %v2365 = vpop.f32.mrf.mxu0
  %2366 = vmatprep.mubr.bf16.mxu0 0
  %2367 = vmatmul.mubr.bf16.gmra.mxu0 %v2324
  %v2368 = vpop.f32.mrf.mxu0
  %v2369 = vadd.f32 0.0, %v2368
  %v2370 = vpop.f32.mrf.mxu0
  %v2371 = vpop.f32.mrf.mxu0
  %v2372 = vadd.f32 0.0, %v2371
  %v2373 = vpop.f32.mrf.mxu0
  %2374 = vdwg.mxu0
  %v2375 = vadd.f32 %v2263, %v2361
  %v2376 = vadd.f32 %v2264, %v2364
  %v2377 = vadd.f32 %v2265, %v2369
  %v2378 = vadd.f32 %v2266, %v2372
  %v2379 = vrot.slane %v633, 6
  %v2380 = vrot.slane %v2379, 4
  %v2381 = vrot.slane %v2155, 6
  %v2382 = vsel %vm1174, %v2380, %v2381
  %v2383 = vrot.slane %v655, 6
  %v2384 = vrot.slane %v2383, 4
  %v2385 = vrot.slane %v2156, 6
  %v2386 = vsel %vm1174, %v2384, %v2385
  %v2387 = vcombine.low %v1182, %v1186
  %v2388 = vcombine.low %v1190, %v2382
  %v2389 = vcombine.low %v1198, %v1202
  %v2390 = vcombine.low %v1206, %v2386
  %v2395 = vpack.c.bf16 %v2388, %v2387
  %v2396 = vpack.c.bf16 %v2390, %v2389
  %s2397 = scalar_lea.vmem %s2, 448
  %v2398 = vld [vmem:[%s2397] sm:$0xf]
  %v2399 = vld [vmem:[%s2397 + $0x4] sm:$0xf]
  %v2400 = vld [vmem:[%s2397 + $0x8] sm:$0xf]
  %v2401 = vld [vmem:[%s2397 + $0xc] sm:$0xf]
  %v2402 = vld [vmem:[%s2397 + $0x10] sm:$0xf]
  %v2403 = vld [vmem:[%s2397 + $0x14] sm:$0xf]
  %v2404 = vld [vmem:[%s2397 + $0x18] sm:$0xf]
  %v2405 = vld [vmem:[%s2397 + $0x1c] sm:$0xf]
  %v2414 = vunpack.c.l.b16 %v2398
  %v2415 = vunpack.c.l.b16 %v2399
  %v2416 = vunpack.c.l.b16 %v2400
  %v2417 = vunpack.c.l.b16 %v2401
  %v2418 = vunpack.c.l.b16 %v2402
  %v2419 = vunpack.c.l.b16 %v2403
  %v2420 = vunpack.c.l.b16 %v2404
  %v2421 = vunpack.c.l.b16 %v2405
  %v2422 = vpack.c.b16 %v2415, %v2414
  %v2423 = vpack.c.b16 %v2417, %v2416
  %v2424 = vpack.c.b16 %v2419, %v2418
  %v2425 = vpack.c.b16 %v2421, %v2420
  %v2431 = vsel %vm750, %v2395, 0
  %v2434 = vsel %vm750, %v2396, 0
  %2436 = vmatprep.subr.bf16.mxu0 0
  %2437 = vmatpush1.bf16.msra.mxu0 0
  %2438 = vmatprep.subr.bf16.mxu0 0
  %2439 = vmatpush1.bf16.msra.mxu0 0
  %2440 = vmatprep.subr.bf16.mxu0 0
  %2441 = vmatpush1.bf16.msra.mxu0 0
  %2442 = vmatprep.subr.bf16.mxu0 0
  %2443 = vmatpush1.bf16.msra.mxu0 0
  %2444 = vmatprep.subr.bf16.mxu0 0
  %2445 = vmatpush1.bf16.msra.mxu0 %v2425
  %2446 = vmatprep.subr.bf16.mxu0 0
  %2447 = vmatpush1.bf16.msra.mxu0 %v2424
  %2448 = vmatprep.subr.bf16.mxu0 0
  %2449 = vmatpush1.bf16.msra.mxu0 %v2423
  %2450 = vmatprep.subr.bf16.mxu0 0
  %2451 = vmatpush1.bf16.msra.mxu0 %v2422
  %2452 = vmatprep.subr.bf16.mxu0 0
  %2453 = vmatpush2.bf16.msra.mxu0 0
  %2454 = vmatprep.subr.bf16.mxu0 0
  %2455 = vmatpush2.bf16.msra.mxu0 0
  %2456 = vmatprep.subr.bf16.mxu0 0
  %2457 = vmatpush2.bf16.msra.mxu0 0
  %2458 = vmatprep.subr.bf16.mxu0 0
  %2459 = vmatpush2.bf16.msra.mxu0 0
  %2460 = vmatprep.subr.bf16.mxu0 0
  %2461 = vmatpush2.bf16.msra.mxu0 0
  %2462 = vmatprep.subr.bf16.mxu0 0
  %2463 = vmatpush2.bf16.msra.mxu0 0
  %2464 = vmatprep.subr.bf16.mxu0 0
  %2465 = vmatpush2.bf16.msra.mxu0 0
  %2466 = vmatprep.subr.bf16.mxu0 0
  %2467 = vmatpush2.bf16.msra.mxu0 0
  %2468 = vmatprep.mubr.bf16.mxu0 0
  %2469 = vmatmul.mubr.bf16.gmra.mxu0 %v2431
  %v2470 = vpop.f32.mrf.mxu0
  %v2471 = vadd.f32 0.0, %v2470
  %v2472 = vpop.f32.mrf.mxu0
  %v2473 = vpop.f32.mrf.mxu0
  %v2474 = vadd.f32 0.0, %v2473
  %v2475 = vpop.f32.mrf.mxu0
  %2476 = vmatprep.mubr.bf16.mxu0 0
  %2477 = vmatmul.mubr.bf16.gmra.mxu0 %v2434
  %v2478 = vpop.f32.mrf.mxu0
  %v2479 = vadd.f32 0.0, %v2478
  %v2480 = vpop.f32.mrf.mxu0
  %v2481 = vpop.f32.mrf.mxu0
  %v2482 = vadd.f32 0.0, %v2481
  %v2483 = vpop.f32.mrf.mxu0
  %2484 = vdwg.mxu0
  %v2485 = vadd.f32 %v2375, %v2471
  %v2486 = vadd.f32 %v2376, %v2474
  %v2487 = vadd.f32 %v2377, %v2479
  %v2488 = vadd.f32 %v2378, %v2482
  %v2491 = vcombine.low %v642, %v643
  %v2492 = vcombine.low %v644, %v645
  %v2493 = vcombine.low %v664, %v665
  %v2494 = vcombine.low %v666, %v667
  %v2499 = vpack.c.bf16 %v2492, %v2491
  %v2500 = vpack.c.bf16 %v2494, %v2493
  %s2501 = scalar_lea.vmem %s2, 480
  %v2502 = vld [vmem:[%s2501] sm:$0xf]
  %v2503 = vld [vmem:[%s2501 + $0x4] sm:$0xf]
  %v2504 = vld [vmem:[%s2501 + $0x8] sm:$0xf]
  %v2505 = vld [vmem:[%s2501 + $0xc] sm:$0xf]
  %v2506 = vld [vmem:[%s2501 + $0x10] sm:$0xf]
  %v2507 = vld [vmem:[%s2501 + $0x14] sm:$0xf]
  %v2508 = vld [vmem:[%s2501 + $0x18] sm:$0xf]
  %v2509 = vld [vmem:[%s2501 + $0x1c] sm:$0xf]
  %v2518 = vunpack.c.l.b16 %v2502
  %v2519 = vunpack.c.l.b16 %v2503
  %v2520 = vunpack.c.l.b16 %v2504
  %v2521 = vunpack.c.l.b16 %v2505
  %v2522 = vunpack.c.l.b16 %v2506
  %v2523 = vunpack.c.l.b16 %v2507
  %v2524 = vunpack.c.l.b16 %v2508
  %v2525 = vunpack.c.l.b16 %v2509
  %v2526 = vpack.c.b16 %v2519, %v2518
  %v2527 = vpack.c.b16 %v2521, %v2520
  %v2528 = vpack.c.b16 %v2523, %v2522
  %v2529 = vpack.c.b16 %v2525, %v2524
  %v2535 = vsel %vm750, %v2499, 0
  %v2538 = vsel %vm750, %v2500, 0
  %2540 = vmatprep.subr.bf16.mxu0 0
  %2541 = vmatpush1.bf16.msra.mxu0 0
  %2542 = vmatprep.subr.bf16.mxu0 0
  %2543 = vmatpush1.bf16.msra.mxu0 0
  %2544 = vmatprep.subr.bf16.mxu0 0
  %2545 = vmatpush1.bf16.msra.mxu0 0
  %2546 = vmatprep.subr.bf16.mxu0 0
  %2547 = vmatpush1.bf16.msra.mxu0 0
  %2548 = vmatprep.subr.bf16.mxu0 0
  %2549 = vmatpush1.bf16.msra.mxu0 %v2529
  %2550 = vmatprep.subr.bf16.mxu0 0
  %2551 = vmatpush1.bf16.msra.mxu0 %v2528
  %2552 = vmatprep.subr.bf16.mxu0 0
  %2553 = vmatpush1.bf16.msra.mxu0 %v2527
  %2554 = vmatprep.subr.bf16.mxu0 0
  %2555 = vmatpush1.bf16.msra.mxu0 %v2526
  %2556 = vmatprep.subr.bf16.mxu0 0
  %2557 = vmatpush2.bf16.msra.mxu0 0
  %2558 = vmatprep.subr.bf16.mxu0 0
  %2559 = vmatpush2.bf16.msra.mxu0 0
  %2560 = vmatprep.subr.bf16.mxu0 0
  %2561 = vmatpush2.bf16.msra.mxu0 0
  %2562 = vmatprep.subr.bf16.mxu0 0
  %2563 = vmatpush2.bf16.msra.mxu0 0
  %2564 = vmatprep.subr.bf16.mxu0 0
  %2565 = vmatpush2.bf16.msra.mxu0 0
  %2566 = vmatprep.subr.bf16.mxu0 0
  %2567 = vmatpush2.bf16.msra.mxu0 0
  %2568 = vmatprep.subr.bf16.mxu0 0
  %2569 = vmatpush2.bf16.msra.mxu0 0
  %2570 = vmatprep.subr.bf16.mxu0 0
  %2571 = vmatpush2.bf16.msra.mxu0 0
  %2572 = vmatprep.mubr.bf16.mxu0 0
  %2573 = vmatmul.mubr.bf16.gmra.mxu0 %v2535
  %v2574 = vpop.f32.mrf.mxu0
  %v2575 = vadd.f32 0.0, %v2574
  %v2576 = vpop.f32.mrf.mxu0
  %v2577 = vpop.f32.mrf.mxu0
  %v2578 = vadd.f32 0.0, %v2577
  %v2579 = vpop.f32.mrf.mxu0
  %2580 = vmatprep.mubr.bf16.mxu0 0
  %2581 = vmatmul.mubr.bf16.gmra.mxu0 %v2538
  %v2582 = vpop.f32.mrf.mxu0
  %v2583 = vadd.f32 0.0, %v2582
  %v2584 = vpop.f32.mrf.mxu0
  %v2585 = vpop.f32.mrf.mxu0
  %v2586 = vadd.f32 0.0, %v2585
  %v2587 = vpop.f32.mrf.mxu0
  %2588 = vdwg.mxu0
  %v2589 = vadd.f32 %v2485, %v2575
  %v2590 = vadd.f32 %v2486, %v2578
  %v2591 = vadd.f32 %v2487, %v2583
  %v2592 = vadd.f32 %v2488, %v2586
  %v2595 = vcombine.low %v647, %v648
  %v2596 = vcombine.low %v649, %v650
  %v2597 = vcombine.low %v669, %v670
  %v2598 = vcombine.low %v671, %v672
  %v2603 = vpack.c.bf16 %v2596, %v2595
  %v2604 = vpack.c.bf16 %v2598, %v2597
  %s2605 = scalar_lea.vmem %s2, 512
  %v2606 = vld [vmem:[%s2605] sm:$0xf]
  %v2607 = vld [vmem:[%s2605 + $0x4] sm:$0xf]
  %v2608 = vld [vmem:[%s2605 + $0x8] sm:$0xf]
  %v2609 = vld [vmem:[%s2605 + $0xc] sm:$0xf]
  %v2610 = vld [vmem:[%s2605 + $0x10] sm:$0xf]
  %v2611 = vld [vmem:[%s2605 + $0x14] sm:$0xf]
  %v2612 = vld [vmem:[%s2605 + $0x18] sm:$0xf]
  %v2613 = vld [vmem:[%s2605 + $0x1c] sm:$0xf]
  %v2622 = vunpack.c.l.b16 %v2606
  %v2623 = vunpack.c.l.b16 %v2607
  %v2624 = vunpack.c.l.b16 %v2608
  %v2625 = vunpack.c.l.b16 %v2609
  %v2626 = vunpack.c.l.b16 %v2610
  %v2627 = vunpack.c.l.b16 %v2611
  %v2628 = vunpack.c.l.b16 %v2612
  %v2629 = vunpack.c.l.b16 %v2613
  %v2630 = vpack.c.b16 %v2623, %v2622
  %v2631 = vpack.c.b16 %v2625, %v2624
  %v2632 = vpack.c.b16 %v2627, %v2626
  %v2633 = vpack.c.b16 %v2629, %v2628
  %v2639 = vsel %vm750, %v2603, 0
  %v2642 = vsel %vm750, %v2604, 0
  %2644 = vmatprep.subr.bf16.mxu0 0
  %2645 = vmatpush1.bf16.msra.mxu0 0
  %2646 = vmatprep.subr.bf16.mxu0 0
  %2647 = vmatpush1.bf16.msra.mxu0 0
  %2648 = vmatprep.subr.bf16.mxu0 0
  %2649 = vmatpush1.bf16.msra.mxu0 0
  %2650 = vmatprep.subr.bf16.mxu0 0
  %2651 = vmatpush1.bf16.msra.mxu0 0
  %2652 = vmatprep.subr.bf16.mxu0 0
  %2653 = vmatpush1.bf16.msra.mxu0 %v2633
  %2654 = vmatprep.subr.bf16.mxu0 0
  %2655 = vmatpush1.bf16.msra.mxu0 %v2632
  %2656 = vmatprep.subr.bf16.mxu0 0
  %2657 = vmatpush1.bf16.msra.mxu0 %v2631
  %2658 = vmatprep.subr.bf16.mxu0 0
  %2659 = vmatpush1.bf16.msra.mxu0 %v2630
  %2660 = vmatprep.subr.bf16.mxu0 0
  %2661 = vmatpush2.bf16.msra.mxu0 0
  %2662 = vmatprep.subr.bf16.mxu0 0
  %2663 = vmatpush2.bf16.msra.mxu0 0
  %2664 = vmatprep.subr.bf16.mxu0 0
  %2665 = vmatpush2.bf16.msra.mxu0 0
  %2666 = vmatprep.subr.bf16.mxu0 0
  %2667 = vmatpush2.bf16.msra.mxu0 0
  %2668 = vmatprep.subr.bf16.mxu0 0
  %2669 = vmatpush2.bf16.msra.mxu0 0
  %2670 = vmatprep.subr.bf16.mxu0 0
  %2671 = vmatpush2.bf16.msra.mxu0 0
  %2672 = vmatprep.subr.bf16.mxu0 0
  %2673 = vmatpush2.bf16.msra.mxu0 0
  %2674 = vmatprep.subr.bf16.mxu0 0
  %2675 = vmatpush2.bf16.msra.mxu0 0
  %2676 = vmatprep.mubr.bf16.mxu0 0
  %2677 = vmatmul.mubr.bf16.gmra.mxu0 %v2639
  %v2678 = vpop.f32.mrf.mxu0
  %v2679 = vadd.f32 0.0, %v2678
  %v2680 = vpop.f32.mrf.mxu0
  %v2681 = vpop.f32.mrf.mxu0
  %v2682 = vadd.f32 0.0, %v2681
  %v2683 = vpop.f32.mrf.mxu0
  %2684 = vmatprep.mubr.bf16.mxu0 0
  %2685 = vmatmul.mubr.bf16.gmra.mxu0 %v2642
  %v2686 = vpop.f32.mrf.mxu0
  %v2687 = vadd.f32 0.0, %v2686
  %v2688 = vpop.f32.mrf.mxu0
  %v2689 = vpop.f32.mrf.mxu0
  %v2690 = vadd.f32 0.0, %v2689
  %v2691 = vpop.f32.mrf.mxu0
  %2692 = vdwg.mxu0
  %v2693 = vadd.f32 %v2589, %v2679
  %v2694 = vadd.f32 %v2590, %v2682
  %v2695 = vadd.f32 %v2591, %v2687
  %v2696 = vadd.f32 %v2592, %v2690
  %v2697 = vcombine.high %v645, %v645
  %v2698 = vcombine.high %v667, %v667
  %v2699 = vrot.slane %v645, 5
  %v2700 = vrot.slane %v2699, 4
  %v2701 = vrot.slane %v2697, 5
  %v2702 = vsel %vm895, %v2700, %v2701
  %v2703 = vrot.slane %v667, 5
  %v2704 = vrot.slane %v2703, 4
  %v2705 = vrot.slane %v2698, 5
  %v2706 = vsel %vm895, %v2704, %v2705
  %v2707 = vcombine.low %v1544, %v1548
  %v2708 = vcombine.low %v1552, %v2702
  %v2709 = vcombine.low %v1560, %v1564
  %v2710 = vcombine.low %v1568, %v2706
  %v2715 = vpack.c.bf16 %v2708, %v2707
  %v2716 = vpack.c.bf16 %v2710, %v2709
  %s2717 = scalar_lea.vmem %s2, 544
  %v2718 = vld [vmem:[%s2717] sm:$0xf]
  %v2719 = vld [vmem:[%s2717 + $0x4] sm:$0xf]
  %v2720 = vld [vmem:[%s2717 + $0x8] sm:$0xf]
  %v2721 = vld [vmem:[%s2717 + $0xc] sm:$0xf]
  %v2722 = vld [vmem:[%s2717 + $0x10] sm:$0xf]
  %v2723 = vld [vmem:[%s2717 + $0x14] sm:$0xf]
  %v2724 = vld [vmem:[%s2717 + $0x18] sm:$0xf]
  %v2725 = vld [vmem:[%s2717 + $0x1c] sm:$0xf]
  %v2734 = vunpack.c.l.b16 %v2718
  %v2735 = vunpack.c.l.b16 %v2719
  %v2736 = vunpack.c.l.b16 %v2720
  %v2737 = vunpack.c.l.b16 %v2721
  %v2738 = vunpack.c.l.b16 %v2722
  %v2739 = vunpack.c.l.b16 %v2723
  %v2740 = vunpack.c.l.b16 %v2724
  %v2741 = vunpack.c.l.b16 %v2725
  %v2742 = vpack.c.b16 %v2735, %v2734
  %v2743 = vpack.c.b16 %v2737, %v2736
  %v2744 = vpack.c.b16 %v2739, %v2738
  %v2745 = vpack.c.b16 %v2741, %v2740
  %v2751 = vsel %vm750, %v2715, 0
  %v2754 = vsel %vm750, %v2716, 0
  %2756 = vmatprep.subr.bf16.mxu0 0
  %2757 = vmatpush1.bf16.msra.mxu0 0
  %2758 = vmatprep.subr.bf16.mxu0 0
  %2759 = vmatpush1.bf16.msra.mxu0 0
  %2760 = vmatprep.subr.bf16.mxu0 0
  %2761 = vmatpush1.bf16.msra.mxu0 0
  %2762 = vmatprep.subr.bf16.mxu0 0
  %2763 = vmatpush1.bf16.msra.mxu0 0
  %2764 = vmatprep.subr.bf16.mxu0 0
  %2765 = vmatpush1.bf16.msra.mxu0 %v2745
  %2766 = vmatprep.subr.bf16.mxu0 0
  %2767 = vmatpush1.bf16.msra.mxu0 %v2744
  %2768 = vmatprep.subr.bf16.mxu0 0
  %2769 = vmatpush1.bf16.msra.mxu0 %v2743
  %2770 = vmatprep.subr.bf16.mxu0 0
  %2771 = vmatpush1.bf16.msra.mxu0 %v2742
  %2772 = vmatprep.subr.bf16.mxu0 0
  %2773 = vmatpush2.bf16.msra.mxu0 0
  %2774 = vmatprep.subr.bf16.mxu0 0
  %2775 = vmatpush2.bf16.msra.mxu0 0
  %2776 = vmatprep.subr.bf16.mxu0 0
  %2777 = vmatpush2.bf16.msra.mxu0 0
  %2778 = vmatprep.subr.bf16.mxu0 0
  %2779 = vmatpush2.bf16.msra.mxu0 0
  %2780 = vmatprep.subr.bf16.mxu0 0
  %2781 = vmatpush2.bf16.msra.mxu0 0
  %2782 = vmatprep.subr.bf16.mxu0 0
  %2783 = vmatpush2.bf16.msra.mxu0 0
  %2784 = vmatprep.subr.bf16.mxu0 0
  %2785 = vmatpush2.bf16.msra.mxu0 0
  %2786 = vmatprep.subr.bf16.mxu0 0
  %2787 = vmatpush2.bf16.msra.mxu0 0
  %2788 = vmatprep.mubr.bf16.mxu0 0
  %2789 = vmatmul.mubr.bf16.gmra.mxu0 %v2751
  %v2790 = vpop.f32.mrf.mxu0
  %v2791 = vadd.f32 0.0, %v2790
  %v2792 = vpop.f32.mrf.mxu0
  %v2793 = vpop.f32.mrf.mxu0
  %v2794 = vadd.f32 0.0, %v2793
  %v2795 = vpop.f32.mrf.mxu0
  %2796 = vmatprep.mubr.bf16.mxu0 0
  %2797 = vmatmul.mubr.bf16.gmra.mxu0 %v2754
  %v2798 = vpop.f32.mrf.mxu0
  %v2799 = vadd.f32 0.0, %v2798
  %v2800 = vpop.f32.mrf.mxu0
  %v2801 = vpop.f32.mrf.mxu0
  %v2802 = vadd.f32 0.0, %v2801
  %v2803 = vpop.f32.mrf.mxu0
  %2804 = vdwg.mxu0
  %v2805 = vadd.f32 %v2693, %v2791
  %v2806 = vadd.f32 %v2694, %v2794
  %v2807 = vadd.f32 %v2695, %v2799
  %v2808 = vadd.f32 %v2696, %v2802
  %v2809 = vcombine.high %v650, %v650
  %v2810 = vcombine.high %v672, %v672
  %v2811 = vrot.slane %v650, 5
  %v2812 = vrot.slane %v2811, 4
  %v2813 = vrot.slane %v2809, 5
  %v2814 = vsel %vm895, %v2812, %v2813
  %v2815 = vrot.slane %v672, 5
  %v2816 = vrot.slane %v2815, 4
  %v2817 = vrot.slane %v2810, 5
  %v2818 = vsel %vm895, %v2816, %v2817
  %v2819 = vcombine.low %v1686, %v1690
  %v2820 = vcombine.low %v1694, %v2814
  %v2821 = vcombine.low %v1702, %v1706
  %v2822 = vcombine.low %v1710, %v2818
  %v2827 = vpack.c.bf16 %v2820, %v2819
  %v2828 = vpack.c.bf16 %v2822, %v2821
  %s2829 = scalar_lea.vmem %s2, 576
  %v2830 = vld [vmem:[%s2829] sm:$0xf]
  %v2831 = vld [vmem:[%s2829 + $0x4] sm:$0xf]
  %v2832 = vld [vmem:[%s2829 + $0x8] sm:$0xf]
  %v2833 = vld [vmem:[%s2829 + $0xc] sm:$0xf]
  %v2834 = vld [vmem:[%s2829 + $0x10] sm:$0xf]
  %v2835 = vld [vmem:[%s2829 + $0x14] sm:$0xf]
  %v2836 = vld [vmem:[%s2829 + $0x18] sm:$0xf]
  %v2837 = vld [vmem:[%s2829 + $0x1c] sm:$0xf]
  %v2846 = vunpack.c.l.b16 %v2830
  %v2847 = vunpack.c.l.b16 %v2831
  %v2848 = vunpack.c.l.b16 %v2832
  %v2849 = vunpack.c.l.b16 %v2833
  %v2850 = vunpack.c.l.b16 %v2834
  %v2851 = vunpack.c.l.b16 %v2835
  %v2852 = vunpack.c.l.b16 %v2836
  %v2853 = vunpack.c.l.b16 %v2837
  %v2854 = vpack.c.b16 %v2847, %v2846
  %v2855 = vpack.c.b16 %v2849, %v2848
  %v2856 = vpack.c.b16 %v2851, %v2850
  %v2857 = vpack.c.b16 %v2853, %v2852
  %v2863 = vsel %vm750, %v2827, 0
  %v2866 = vsel %vm750, %v2828, 0
  %2868 = vmatprep.subr.bf16.mxu0 0
  %2869 = vmatpush1.bf16.msra.mxu0 0
  %2870 = vmatprep.subr.bf16.mxu0 0
  %2871 = vmatpush1.bf16.msra.mxu0 0
  %2872 = vmatprep.subr.bf16.mxu0 0
  %2873 = vmatpush1.bf16.msra.mxu0 0
  %2874 = vmatprep.subr.bf16.mxu0 0
  %2875 = vmatpush1.bf16.msra.mxu0 0
  %2876 = vmatprep.subr.bf16.mxu0 0
  %2877 = vmatpush1.bf16.msra.mxu0 %v2857
  %2878 = vmatprep.subr.bf16.mxu0 0
  %2879 = vmatpush1.bf16.msra.mxu0 %v2856
  %2880 = vmatprep.subr.bf16.mxu0 0
  %2881 = vmatpush1.bf16.msra.mxu0 %v2855
  %2882 = vmatprep.subr.bf16.mxu0 0
  %2883 = vmatpush1.bf16.msra.mxu0 %v2854
  %2884 = vmatprep.subr.bf16.mxu0 0
  %2885 = vmatpush2.bf16.msra.mxu0 0
  %2886 = vmatprep.subr.bf16.mxu0 0
  %2887 = vmatpush2.bf16.msra.mxu0 0
  %2888 = vmatprep.subr.bf16.mxu0 0
  %2889 = vmatpush2.bf16.msra.mxu0 0
  %2890 = vmatprep.subr.bf16.mxu0 0
  %2891 = vmatpush2.bf16.msra.mxu0 0
  %2892 = vmatprep.subr.bf16.mxu0 0
  %2893 = vmatpush2.bf16.msra.mxu0 0
  %2894 = vmatprep.subr.bf16.mxu0 0
  %2895 = vmatpush2.bf16.msra.mxu0 0
  %2896 = vmatprep.subr.bf16.mxu0 0
  %2897 = vmatpush2.bf16.msra.mxu0 0
  %2898 = vmatprep.subr.bf16.mxu0 0
  %2899 = vmatpush2.bf16.msra.mxu0 0
  %2900 = vmatprep.mubr.bf16.mxu0 0
  %2901 = vmatmul.mubr.bf16.gmra.mxu0 %v2863
  %v2902 = vpop.f32.mrf.mxu0
  %v2903 = vadd.f32 0.0, %v2902
  %v2904 = vpop.f32.mrf.mxu0
  %v2905 = vpop.f32.mrf.mxu0
  %v2906 = vadd.f32 0.0, %v2905
  %v2907 = vpop.f32.mrf.mxu0
  %2908 = vmatprep.mubr.bf16.mxu0 0
  %2909 = vmatmul.mubr.bf16.gmra.mxu0 %v2866
  %v2910 = vpop.f32.mrf.mxu0
  %v2911 = vadd.f32 0.0, %v2910
  %v2912 = vpop.f32.mrf.mxu0
  %v2913 = vpop.f32.mrf.mxu0
  %v2914 = vadd.f32 0.0, %v2913
  %v2915 = vpop.f32.mrf.mxu0
  %2916 = vdwg.mxu0
  %v2917 = vadd.f32 %v2805, %v2903
  %v2918 = vadd.f32 %v2806, %v2906
  %v2919 = vadd.f32 %v2807, %v2911
  %v2920 = vadd.f32 %v2808, %v2914
  %v2921 = vrot.slane %v645, 6
  %v2922 = vrot.slane %v2921, 4
  %v2923 = vrot.slane %v2697, 6
  %v2924 = vsel %vm1174, %v2922, %v2923
  %v2925 = vrot.slane %v667, 6
  %v2926 = vrot.slane %v2925, 4
  %v2927 = vrot.slane %v2698, 6
  %v2928 = vsel %vm1174, %v2926, %v2927
  %v2929 = vcombine.low %v1820, %v1824
  %v2930 = vcombine.low %v1828, %v2924
  %v2931 = vcombine.low %v1836, %v1840
  %v2932 = vcombine.low %v1844, %v2928
  %v2937 = vpack.c.bf16 %v2930, %v2929
  %v2938 = vpack.c.bf16 %v2932, %v2931
  %s2939 = scalar_lea.vmem %s2, 608
  %v2940 = vld [vmem:[%s2939] sm:$0xf]
  %v2941 = vld [vmem:[%s2939 + $0x4] sm:$0xf]
  %v2942 = vld [vmem:[%s2939 + $0x8] sm:$0xf]
  %v2943 = vld [vmem:[%s2939 + $0xc] sm:$0xf]
  %v2944 = vld [vmem:[%s2939 + $0x10] sm:$0xf]
  %v2945 = vld [vmem:[%s2939 + $0x14] sm:$0xf]
  %v2946 = vld [vmem:[%s2939 + $0x18] sm:$0xf]
  %v2947 = vld [vmem:[%s2939 + $0x1c] sm:$0xf]
  %v2956 = vunpack.c.l.b16 %v2940
  %v2957 = vunpack.c.l.b16 %v2941
  %v2958 = vunpack.c.l.b16 %v2942
  %v2959 = vunpack.c.l.b16 %v2943
  %v2960 = vunpack.c.l.b16 %v2944
  %v2961 = vunpack.c.l.b16 %v2945
  %v2962 = vunpack.c.l.b16 %v2946
  %v2963 = vunpack.c.l.b16 %v2947
  %v2964 = vpack.c.b16 %v2957, %v2956
  %v2965 = vpack.c.b16 %v2959, %v2958
  %v2966 = vpack.c.b16 %v2961, %v2960
  %v2967 = vpack.c.b16 %v2963, %v2962
  %v2973 = vsel %vm750, %v2937, 0
  %v2976 = vsel %vm750, %v2938, 0
  %2978 = vmatprep.subr.bf16.mxu0 0
  %2979 = vmatpush1.bf16.msra.mxu0 0
  %2980 = vmatprep.subr.bf16.mxu0 0
  %2981 = vmatpush1.bf16.msra.mxu0 0
  %2982 = vmatprep.subr.bf16.mxu0 0
  %2983 = vmatpush1.bf16.msra.mxu0 0
  %2984 = vmatprep.subr.bf16.mxu0 0
  %2985 = vmatpush1.bf16.msra.mxu0 0
  %2986 = vmatprep.subr.bf16.mxu0 0
  %2987 = vmatpush1.bf16.msra.mxu0 %v2967
  %2988 = vmatprep.subr.bf16.mxu0 0
  %2989 = vmatpush1.bf16.msra.mxu0 %v2966
  %2990 = vmatprep.subr.bf16.mxu0 0
  %2991 = vmatpush1.bf16.msra.mxu0 %v2965
  %2992 = vmatprep.subr.bf16.mxu0 0
  %2993 = vmatpush1.bf16.msra.mxu0 %v2964
  %2994 = vmatprep.subr.bf16.mxu0 0
  %2995 = vmatpush2.bf16.msra.mxu0 0
  %2996 = vmatprep.subr.bf16.mxu0 0
  %2997 = vmatpush2.bf16.msra.mxu0 0
  %2998 = vmatprep.subr.bf16.mxu0 0
  %2999 = vmatpush2.bf16.msra.mxu0 0
  %3000 = vmatprep.subr.bf16.mxu0 0
  %3001 = vmatpush2.bf16.msra.mxu0 0
  %3002 = vmatprep.subr.bf16.mxu0 0
  %3003 = vmatpush2.bf16.msra.mxu0 0
  %3004 = vmatprep.subr.bf16.mxu0 0
  %3005 = vmatpush2.bf16.msra.mxu0 0
  %3006 = vmatprep.subr.bf16.mxu0 0
  %3007 = vmatpush2.bf16.msra.mxu0 0
  %3008 = vmatprep.subr.bf16.mxu0 0
  %3009 = vmatpush2.bf16.msra.mxu0 0
  %3010 = vmatprep.mubr.bf16.mxu0 0
  %3011 = vmatmul.mubr.bf16.gmra.mxu0 %v2973
  %v3012 = vpop.f32.mrf.mxu0
  %v3013 = vadd.f32 0.0, %v3012
  %v3014 = vpop.f32.mrf.mxu0
  %v3015 = vpop.f32.mrf.mxu0
  %v3016 = vadd.f32 0.0, %v3015
  %v3017 = vpop.f32.mrf.mxu0
  %3018 = vmatprep.mubr.bf16.mxu0 0
  %3019 = vmatmul.mubr.bf16.gmra.mxu0 %v2976
  %v3020 = vpop.f32.mrf.mxu0
  %v3021 = vadd.f32 0.0, %v3020
  %v3022 = vpop.f32.mrf.mxu0
  %v3023 = vpop.f32.mrf.mxu0
  %v3024 = vadd.f32 0.0, %v3023
  %v3025 = vpop.f32.mrf.mxu0
  %3026 = vdwg.mxu0
  %v3027 = vadd.f32 %v2917, %v3013
  %v3028 = vadd.f32 %v2918, %v3016
  %v3029 = vadd.f32 %v2919, %v3021
  %v3030 = vadd.f32 %v2920, %v3024
  %v3033 = vcombine.low %v633, %v634
  %v3034 = vcombine.low %v655, %v656
  %v3037 = vpack.c.bf16 %v3033, %v682
  %v3038 = vpack.c.bf16 %v3034, %v684
  %s3039 = scalar_lea.vmem %s2, 640
  %v3040 = vld [vmem:[%s3039] sm:$0xf]
  %v3041 = vld [vmem:[%s3039 + $0x4] sm:$0xf]
  %v3042 = vld [vmem:[%s3039 + $0x8] sm:$0xf]
  %v3043 = vld [vmem:[%s3039 + $0xc] sm:$0xf]
  %v3044 = vld [vmem:[%s3039 + $0x10] sm:$0xf]
  %v3045 = vld [vmem:[%s3039 + $0x14] sm:$0xf]
  %v3046 = vld [vmem:[%s3039 + $0x18] sm:$0xf]
  %v3047 = vld [vmem:[%s3039 + $0x1c] sm:$0xf]
  %v3056 = vunpack.c.l.b16 %v3040
  %v3057 = vunpack.c.l.b16 %v3041
  %v3058 = vunpack.c.l.b16 %v3042
  %v3059 = vunpack.c.l.b16 %v3043
  %v3060 = vunpack.c.l.b16 %v3044
  %v3061 = vunpack.c.l.b16 %v3045
  %v3062 = vunpack.c.l.b16 %v3046
  %v3063 = vunpack.c.l.b16 %v3047
  %v3064 = vpack.c.b16 %v3057, %v3056
  %v3065 = vpack.c.b16 %v3059, %v3058
  %v3066 = vpack.c.b16 %v3061, %v3060
  %v3067 = vpack.c.b16 %v3063, %v3062
  %v3073 = vsel %vm750, %v3037, 0
  %v3076 = vsel %vm750, %v3038, 0
  %3078 = vmatprep.subr.bf16.mxu0 0
  %3079 = vmatpush1.bf16.msra.mxu0 0
  %3080 = vmatprep.subr.bf16.mxu0 0
  %3081 = vmatpush1.bf16.msra.mxu0 0
  %3082 = vmatprep.subr.bf16.mxu0 0
  %3083 = vmatpush1.bf16.msra.mxu0 0
  %3084 = vmatprep.subr.bf16.mxu0 0
  %3085 = vmatpush1.bf16.msra.mxu0 0
  %3086 = vmatprep.subr.bf16.mxu0 0
  %3087 = vmatpush1.bf16.msra.mxu0 %v3067
  %3088 = vmatprep.subr.bf16.mxu0 0
  %3089 = vmatpush1.bf16.msra.mxu0 %v3066
  %3090 = vmatprep.subr.bf16.mxu0 0
  %3091 = vmatpush1.bf16.msra.mxu0 %v3065
  %3092 = vmatprep.subr.bf16.mxu0 0
  %3093 = vmatpush1.bf16.msra.mxu0 %v3064
  %3094 = vmatprep.subr.bf16.mxu0 0
  %3095 = vmatpush2.bf16.msra.mxu0 0
  %3096 = vmatprep.subr.bf16.mxu0 0
  %3097 = vmatpush2.bf16.msra.mxu0 0
  %3098 = vmatprep.subr.bf16.mxu0 0
  %3099 = vmatpush2.bf16.msra.mxu0 0
  %3100 = vmatprep.subr.bf16.mxu0 0
  %3101 = vmatpush2.bf16.msra.mxu0 0
  %3102 = vmatprep.subr.bf16.mxu0 0
  %3103 = vmatpush2.bf16.msra.mxu0 0
  %3104 = vmatprep.subr.bf16.mxu0 0
  %3105 = vmatpush2.bf16.msra.mxu0 0
  %3106 = vmatprep.subr.bf16.mxu0 0
  %3107 = vmatpush2.bf16.msra.mxu0 0
  %3108 = vmatprep.subr.bf16.mxu0 0
  %3109 = vmatpush2.bf16.msra.mxu0 0
  %3110 = vmatprep.mubr.bf16.mxu0 0
  %3111 = vmatmul.mubr.bf16.gmra.mxu0 %v3073
  %v3112 = vpop.f32.mrf.mxu0
  %v3113 = vadd.f32 0.0, %v3112
  %v3114 = vpop.f32.mrf.mxu0
  %v3115 = vpop.f32.mrf.mxu0
  %v3116 = vadd.f32 0.0, %v3115
  %v3117 = vpop.f32.mrf.mxu0
  %3118 = vmatprep.mubr.bf16.mxu0 0
  %3119 = vmatmul.mubr.bf16.gmra.mxu0 %v3076
  %v3120 = vpop.f32.mrf.mxu0
  %v3121 = vadd.f32 0.0, %v3120
  %v3122 = vpop.f32.mrf.mxu0
  %v3123 = vpop.f32.mrf.mxu0
  %v3124 = vadd.f32 0.0, %v3123
  %v3125 = vpop.f32.mrf.mxu0
  %3126 = vdwg.mxu0
  %v3127 = vadd.f32 %v3027, %v3113
  %v3128 = vadd.f32 %v3028, %v3116
  %v3129 = vadd.f32 %v3029, %v3121
  %v3130 = vadd.f32 %v3030, %v3124
  %v3133 = vcombine.low %v639, %v640
  %v3134 = vcombine.low %v661, %v662
  %v3137 = vpack.c.bf16 %v3133, %v708
  %v3138 = vpack.c.bf16 %v3134, %v710
  %s3139 = scalar_lea.vmem %s2, 672
  %v3140 = vld [vmem:[%s3139] sm:$0xf]
  %v3141 = vld [vmem:[%s3139 + $0x4] sm:$0xf]
  %v3142 = vld [vmem:[%s3139 + $0x8] sm:$0xf]
  %v3143 = vld [vmem:[%s3139 + $0xc] sm:$0xf]
  %v3144 = vld [vmem:[%s3139 + $0x10] sm:$0xf]
  %v3145 = vld [vmem:[%s3139 + $0x14] sm:$0xf]
  %v3146 = vld [vmem:[%s3139 + $0x18] sm:$0xf]
  %v3147 = vld [vmem:[%s3139 + $0x1c] sm:$0xf]
  %v3156 = vunpack.c.l.b16 %v3140
  %v3157 = vunpack.c.l.b16 %v3141
  %v3158 = vunpack.c.l.b16 %v3142
  %v3159 = vunpack.c.l.b16 %v3143
  %v3160 = vunpack.c.l.b16 %v3144
  %v3161 = vunpack.c.l.b16 %v3145
  %v3162 = vunpack.c.l.b16 %v3146
  %v3163 = vunpack.c.l.b16 %v3147
  %v3164 = vpack.c.b16 %v3157, %v3156
  %v3165 = vpack.c.b16 %v3159, %v3158
  %v3166 = vpack.c.b16 %v3161, %v3160
  %v3167 = vpack.c.b16 %v3163, %v3162
  %v3173 = vsel %vm750, %v3137, 0
  %v3176 = vsel %vm750, %v3138, 0
  %3178 = vmatprep.subr.bf16.mxu0 0
  %3179 = vmatpush1.bf16.msra.mxu0 0
  %3180 = vmatprep.subr.bf16.mxu0 0
  %3181 = vmatpush1.bf16.msra.mxu0 0
  %3182 = vmatprep.subr.bf16.mxu0 0
  %3183 = vmatpush1.bf16.msra.mxu0 0
  %3184 = vmatprep.subr.bf16.mxu0 0
  %3185 = vmatpush1.bf16.msra.mxu0 0
  %3186 = vmatprep.subr.bf16.mxu0 0
  %3187 = vmatpush1.bf16.msra.mxu0 %v3167
  %3188 = vmatprep.subr.bf16.mxu0 0
  %3189 = vmatpush1.bf16.msra.mxu0 %v3166
  %3190 = vmatprep.subr.bf16.mxu0 0
  %3191 = vmatpush1.bf16.msra.mxu0 %v3165
  %3192 = vmatprep.subr.bf16.mxu0 0
  %3193 = vmatpush1.bf16.msra.mxu0 %v3164
  %3194 = vmatprep.subr.bf16.mxu0 0
  %3195 = vmatpush2.bf16.msra.mxu0 0
  %3196 = vmatprep.subr.bf16.mxu0 0
  %3197 = vmatpush2.bf16.msra.mxu0 0
  %3198 = vmatprep.subr.bf16.mxu0 0
  %3199 = vmatpush2.bf16.msra.mxu0 0
  %3200 = vmatprep.subr.bf16.mxu0 0
  %3201 = vmatpush2.bf16.msra.mxu0 0
  %3202 = vmatprep.subr.bf16.mxu0 0
  %3203 = vmatpush2.bf16.msra.mxu0 0
  %3204 = vmatprep.subr.bf16.mxu0 0
  %3205 = vmatpush2.bf16.msra.mxu0 0
  %3206 = vmatprep.subr.bf16.mxu0 0
  %3207 = vmatpush2.bf16.msra.mxu0 0
  %3208 = vmatprep.subr.bf16.mxu0 0
  %3209 = vmatpush2.bf16.msra.mxu0 0
  %3210 = vmatprep.mubr.bf16.mxu0 0
  %3211 = vmatmul.mubr.bf16.gmra.mxu0 %v3173
  %v3212 = vpop.f32.mrf.mxu0
  %v3213 = vadd.f32 0.0, %v3212
  %v3214 = vpop.f32.mrf.mxu0
  %v3215 = vpop.f32.mrf.mxu0
  %v3216 = vadd.f32 0.0, %v3215
  %v3217 = vpop.f32.mrf.mxu0
  %3218 = vmatprep.mubr.bf16.mxu0 0
  %3219 = vmatmul.mubr.bf16.gmra.mxu0 %v3176
  %v3220 = vpop.f32.mrf.mxu0
  %v3221 = vadd.f32 0.0, %v3220
  %v3222 = vpop.f32.mrf.mxu0
  %v3223 = vpop.f32.mrf.mxu0
  %v3224 = vadd.f32 0.0, %v3223
  %v3225 = vpop.f32.mrf.mxu0
  %3226 = vdwg.mxu0
  %v3227 = vadd.f32 %v3127, %v3213
  %v3228 = vadd.f32 %v3128, %v3216
  %v3229 = vadd.f32 %v3129, %v3221
  %v3230 = vadd.f32 %v3130, %v3224
  %v3231 = vcombine.high %v634, %v634
  %v3232 = vcombine.high %v656, %v656
  %v3233 = vrot.slane %v634, 5
  %v3234 = vrot.slane %v3233, 4
  %v3235 = vrot.slane %v3231, 5
  %v3236 = vsel %vm895, %v3234, %v3235
  %v3237 = vrot.slane %v656, 5
  %v3238 = vrot.slane %v3237, 4
  %v3239 = vrot.slane %v3232, 5
  %v3240 = vsel %vm895, %v3238, %v3239
  %v3241 = vcombine.low %v2160, %v3236
  %v3242 = vcombine.low %v2164, %v3240
  %v3245 = vpack.c.bf16 %v3241, %v929
  %v3246 = vpack.c.bf16 %v3242, %v931
  %s3247 = scalar_lea.vmem %s2, 704
  %v3248 = vld [vmem:[%s3247] sm:$0xf]
  %v3249 = vld [vmem:[%s3247 + $0x4] sm:$0xf]
  %v3250 = vld [vmem:[%s3247 + $0x8] sm:$0xf]
  %v3251 = vld [vmem:[%s3247 + $0xc] sm:$0xf]
  %v3252 = vld [vmem:[%s3247 + $0x10] sm:$0xf]
  %v3253 = vld [vmem:[%s3247 + $0x14] sm:$0xf]
  %v3254 = vld [vmem:[%s3247 + $0x18] sm:$0xf]
  %v3255 = vld [vmem:[%s3247 + $0x1c] sm:$0xf]
  %v3264 = vunpack.c.l.b16 %v3248
  %v3265 = vunpack.c.l.b16 %v3249
  %v3266 = vunpack.c.l.b16 %v3250
  %v3267 = vunpack.c.l.b16 %v3251
  %v3268 = vunpack.c.l.b16 %v3252
  %v3269 = vunpack.c.l.b16 %v3253
  %v3270 = vunpack.c.l.b16 %v3254
  %v3271 = vunpack.c.l.b16 %v3255
  %v3272 = vpack.c.b16 %v3265, %v3264
  %v3273 = vpack.c.b16 %v3267, %v3266
  %v3274 = vpack.c.b16 %v3269, %v3268
  %v3275 = vpack.c.b16 %v3271, %v3270
  %v3281 = vsel %vm750, %v3245, 0
  %v3284 = vsel %vm750, %v3246, 0
  %3286 = vmatprep.subr.bf16.mxu0 0
  %3287 = vmatpush1.bf16.msra.mxu0 0
  %3288 = vmatprep.subr.bf16.mxu0 0
  %3289 = vmatpush1.bf16.msra.mxu0 0
  %3290 = vmatprep.subr.bf16.mxu0 0
  %3291 = vmatpush1.bf16.msra.mxu0 0
  %3292 = vmatprep.subr.bf16.mxu0 0
  %3293 = vmatpush1.bf16.msra.mxu0 0
  %3294 = vmatprep.subr.bf16.mxu0 0
  %3295 = vmatpush1.bf16.msra.mxu0 %v3275
  %3296 = vmatprep.subr.bf16.mxu0 0
  %3297 = vmatpush1.bf16.msra.mxu0 %v3274
  %3298 = vmatprep.subr.bf16.mxu0 0
  %3299 = vmatpush1.bf16.msra.mxu0 %v3273
  %3300 = vmatprep.subr.bf16.mxu0 0
  %3301 = vmatpush1.bf16.msra.mxu0 %v3272
  %3302 = vmatprep.subr.bf16.mxu0 0
  %3303 = vmatpush2.bf16.msra.mxu0 0
  %3304 = vmatprep.subr.bf16.mxu0 0
  %3305 = vmatpush2.bf16.msra.mxu0 0
  %3306 = vmatprep.subr.bf16.mxu0 0
  %3307 = vmatpush2.bf16.msra.mxu0 0
  %3308 = vmatprep.subr.bf16.mxu0 0
  %3309 = vmatpush2.bf16.msra.mxu0 0
  %3310 = vmatprep.subr.bf16.mxu0 0
  %3311 = vmatpush2.bf16.msra.mxu0 0
  %3312 = vmatprep.subr.bf16.mxu0 0
  %3313 = vmatpush2.bf16.msra.mxu0 0
  %3314 = vmatprep.subr.bf16.mxu0 0
  %3315 = vmatpush2.bf16.msra.mxu0 0
  %3316 = vmatprep.subr.bf16.mxu0 0
  %3317 = vmatpush2.bf16.msra.mxu0 0
  %3318 = vmatprep.mubr.bf16.mxu0 0
  %3319 = vmatmul.mubr.bf16.gmra.mxu0 %v3281
  %v3320 = vpop.f32.mrf.mxu0
  %v3321 = vadd.f32 0.0, %v3320
  %v3322 = vpop.f32.mrf.mxu0
  %v3323 = vpop.f32.mrf.mxu0
  %v3324 = vadd.f32 0.0, %v3323
  %v3325 = vpop.f32.mrf.mxu0
  %3326 = vmatprep.mubr.bf16.mxu0 0
  %3327 = vmatmul.mubr.bf16.gmra.mxu0 %v3284
  %v3328 = vpop.f32.mrf.mxu0
  %v3329 = vadd.f32 0.0, %v3328
  %v3330 = vpop.f32.mrf.mxu0
  %v3331 = vpop.f32.mrf.mxu0
  %v3332 = vadd.f32 0.0, %v3331
  %v3333 = vpop.f32.mrf.mxu0
  %3334 = vdwg.mxu0
  %v3335 = vadd.f32 %v3227, %v3321
  %v3336 = vadd.f32 %v3228, %v3324
  %v3337 = vadd.f32 %v3229, %v3329
  %v3338 = vadd.f32 %v3230, %v3332
  %v3339 = vcombine.high %v640, %v640
  %v3340 = vcombine.high %v662, %v662
  %v3341 = vrot.slane %v640, 5
  %v3342 = vrot.slane %v3341, 4
  %v3343 = vrot.slane %v3339, 5
  %v3344 = vsel %vm895, %v3342, %v3343
  %v3345 = vrot.slane %v662, 5
  %v3346 = vrot.slane %v3345, 4
  %v3347 = vrot.slane %v3340, 5
  %v3348 = vsel %vm895, %v3346, %v3347
  %v3349 = vcombine.low %v2272, %v3344
  %v3350 = vcombine.low %v2276, %v3348
  %v3353 = vpack.c.bf16 %v3349, %v1071
  %v3354 = vpack.c.bf16 %v3350, %v1073
  %s3355 = scalar_lea.vmem %s2, 736
  %v3356 = vld [vmem:[%s3355] sm:$0xf]
  %v3357 = vld [vmem:[%s3355 + $0x4] sm:$0xf]
  %v3358 = vld [vmem:[%s3355 + $0x8] sm:$0xf]
  %v3359 = vld [vmem:[%s3355 + $0xc] sm:$0xf]
  %v3360 = vld [vmem:[%s3355 + $0x10] sm:$0xf]
  %v3361 = vld [vmem:[%s3355 + $0x14] sm:$0xf]
  %v3362 = vld [vmem:[%s3355 + $0x18] sm:$0xf]
  %v3363 = vld [vmem:[%s3355 + $0x1c] sm:$0xf]
  %v3372 = vunpack.c.l.b16 %v3356
  %v3373 = vunpack.c.l.b16 %v3357
  %v3374 = vunpack.c.l.b16 %v3358
  %v3375 = vunpack.c.l.b16 %v3359
  %v3376 = vunpack.c.l.b16 %v3360
  %v3377 = vunpack.c.l.b16 %v3361
  %v3378 = vunpack.c.l.b16 %v3362
  %v3379 = vunpack.c.l.b16 %v3363
  %v3380 = vpack.c.b16 %v3373, %v3372
  %v3381 = vpack.c.b16 %v3375, %v3374
  %v3382 = vpack.c.b16 %v3377, %v3376
  %v3383 = vpack.c.b16 %v3379, %v3378
  %v3389 = vsel %vm750, %v3353, 0
  %v3392 = vsel %vm750, %v3354, 0
  %3394 = vmatprep.subr.bf16.mxu0 0
  %3395 = vmatpush1.bf16.msra.mxu0 0
  %3396 = vmatprep.subr.bf16.mxu0 0
  %3397 = vmatpush1.bf16.msra.mxu0 0
  %3398 = vmatprep.subr.bf16.mxu0 0
  %3399 = vmatpush1.bf16.msra.mxu0 0
  %3400 = vmatprep.subr.bf16.mxu0 0
  %3401 = vmatpush1.bf16.msra.mxu0 0
  %3402 = vmatprep.subr.bf16.mxu0 0
  %3403 = vmatpush1.bf16.msra.mxu0 %v3383
  %3404 = vmatprep.subr.bf16.mxu0 0
  %3405 = vmatpush1.bf16.msra.mxu0 %v3382
  %3406 = vmatprep.subr.bf16.mxu0 0
  %3407 = vmatpush1.bf16.msra.mxu0 %v3381
  %3408 = vmatprep.subr.bf16.mxu0 0
  %3409 = vmatpush1.bf16.msra.mxu0 %v3380
  %3410 = vmatprep.subr.bf16.mxu0 0
  %3411 = vmatpush2.bf16.msra.mxu0 0
  %3412 = vmatprep.subr.bf16.mxu0 0
  %3413 = vmatpush2.bf16.msra.mxu0 0
  %3414 = vmatprep.subr.bf16.mxu0 0
  %3415 = vmatpush2.bf16.msra.mxu0 0
  %3416 = vmatprep.subr.bf16.mxu0 0
  %3417 = vmatpush2.bf16.msra.mxu0 0
  %3418 = vmatprep.subr.bf16.mxu0 0
  %3419 = vmatpush2.bf16.msra.mxu0 0
  %3420 = vmatprep.subr.bf16.mxu0 0
  %3421 = vmatpush2.bf16.msra.mxu0 0
  %3422 = vmatprep.subr.bf16.mxu0 0
  %3423 = vmatpush2.bf16.msra.mxu0 0
  %3424 = vmatprep.subr.bf16.mxu0 0
  %3425 = vmatpush2.bf16.msra.mxu0 0
  %3426 = vmatprep.mubr.bf16.mxu0 0
  %3427 = vmatmul.mubr.bf16.gmra.mxu0 %v3389
  %v3428 = vpop.f32.mrf.mxu0
  %v3429 = vadd.f32 0.0, %v3428
  %v3430 = vpop.f32.mrf.mxu0
  %v3431 = vpop.f32.mrf.mxu0
  %v3432 = vadd.f32 0.0, %v3431
  %v3433 = vpop.f32.mrf.mxu0
  %3434 = vmatprep.mubr.bf16.mxu0 0
  %3435 = vmatmul.mubr.bf16.gmra.mxu0 %v3392
  %v3436 = vpop.f32.mrf.mxu0
  %v3437 = vadd.f32 0.0, %v3436
  %v3438 = vpop.f32.mrf.mxu0
  %v3439 = vpop.f32.mrf.mxu0
  %v3440 = vadd.f32 0.0, %v3439
  %v3441 = vpop.f32.mrf.mxu0
  %3442 = vdwg.mxu0
  %v3443 = vadd.f32 %v3335, %v3429
  %v3444 = vadd.f32 %v3336, %v3432
  %v3445 = vadd.f32 %v3337, %v3437
  %v3446 = vadd.f32 %v3338, %v3440
  %v3447 = vrot.slane %v634, 6
  %v3448 = vrot.slane %v3447, 4
  %v3449 = vrot.slane %v3231, 6
  %v3450 = vsel %vm1174, %v3448, %v3449
  %v3451 = vrot.slane %v656, 6
  %v3452 = vrot.slane %v3451, 4
  %v3453 = vrot.slane %v3232, 6
  %v3454 = vsel %vm1174, %v3452, %v3453
  %v3455 = vcombine.low %v2382, %v3450
  %v3456 = vcombine.low %v2386, %v3454
  %v3459 = vpack.c.bf16 %v3455, %v1208
  %v3460 = vpack.c.bf16 %v3456, %v1210
  %s3461 = scalar_lea.vmem %s2, 768
  %v3462 = vld [vmem:[%s3461] sm:$0xf]
  %v3463 = vld [vmem:[%s3461 + $0x4] sm:$0xf]
  %v3464 = vld [vmem:[%s3461 + $0x8] sm:$0xf]
  %v3465 = vld [vmem:[%s3461 + $0xc] sm:$0xf]
  %v3466 = vld [vmem:[%s3461 + $0x10] sm:$0xf]
  %v3467 = vld [vmem:[%s3461 + $0x14] sm:$0xf]
  %v3468 = vld [vmem:[%s3461 + $0x18] sm:$0xf]
  %v3469 = vld [vmem:[%s3461 + $0x1c] sm:$0xf]
  %v3478 = vunpack.c.l.b16 %v3462
  %v3479 = vunpack.c.l.b16 %v3463
  %v3480 = vunpack.c.l.b16 %v3464
  %v3481 = vunpack.c.l.b16 %v3465
  %v3482 = vunpack.c.l.b16 %v3466
  %v3483 = vunpack.c.l.b16 %v3467
  %v3484 = vunpack.c.l.b16 %v3468
  %v3485 = vunpack.c.l.b16 %v3469
  %v3486 = vpack.c.b16 %v3479, %v3478
  %v3487 = vpack.c.b16 %v3481, %v3480
  %v3488 = vpack.c.b16 %v3483, %v3482
  %v3489 = vpack.c.b16 %v3485, %v3484
  %v3495 = vsel %vm750, %v3459, 0
  %v3498 = vsel %vm750, %v3460, 0
  %3500 = vmatprep.subr.bf16.mxu0 0
  %3501 = vmatpush1.bf16.msra.mxu0 0
  %3502 = vmatprep.subr.bf16.mxu0 0
  %3503 = vmatpush1.bf16.msra.mxu0 0
  %3504 = vmatprep.subr.bf16.mxu0 0
  %3505 = vmatpush1.bf16.msra.mxu0 0
  %3506 = vmatprep.subr.bf16.mxu0 0
  %3507 = vmatpush1.bf16.msra.mxu0 0
  %3508 = vmatprep.subr.bf16.mxu0 0
  %3509 = vmatpush1.bf16.msra.mxu0 %v3489
  %3510 = vmatprep.subr.bf16.mxu0 0
  %3511 = vmatpush1.bf16.msra.mxu0 %v3488
  %3512 = vmatprep.subr.bf16.mxu0 0
  %3513 = vmatpush1.bf16.msra.mxu0 %v3487
  %3514 = vmatprep.subr.bf16.mxu0 0
  %3515 = vmatpush1.bf16.msra.mxu0 %v3486
  %3516 = vmatprep.subr.bf16.mxu0 0
  %3517 = vmatpush2.bf16.msra.mxu0 0
  %3518 = vmatprep.subr.bf16.mxu0 0
  %3519 = vmatpush2.bf16.msra.mxu0 0
  %3520 = vmatprep.subr.bf16.mxu0 0
  %3521 = vmatpush2.bf16.msra.mxu0 0
  %3522 = vmatprep.subr.bf16.mxu0 0
  %3523 = vmatpush2.bf16.msra.mxu0 0
  %3524 = vmatprep.subr.bf16.mxu0 0
  %3525 = vmatpush2.bf16.msra.mxu0 0
  %3526 = vmatprep.subr.bf16.mxu0 0
  %3527 = vmatpush2.bf16.msra.mxu0 0
  %3528 = vmatprep.subr.bf16.mxu0 0
  %3529 = vmatpush2.bf16.msra.mxu0 0
  %3530 = vmatprep.subr.bf16.mxu0 0
  %3531 = vmatpush2.bf16.msra.mxu0 0
  %3532 = vmatprep.mubr.bf16.mxu0 0
  %3533 = vmatmul.mubr.bf16.gmra.mxu0 %v3495
  %v3534 = vpop.f32.mrf.mxu0
  %v3535 = vadd.f32 0.0, %v3534
  %v3536 = vpop.f32.mrf.mxu0
  %v3537 = vpop.f32.mrf.mxu0
  %v3538 = vadd.f32 0.0, %v3537
  %v3539 = vpop.f32.mrf.mxu0
  %3540 = vmatprep.mubr.bf16.mxu0 0
  %3541 = vmatmul.mubr.bf16.gmra.mxu0 %v3498
  %v3542 = vpop.f32.mrf.mxu0
  %v3543 = vadd.f32 0.0, %v3542
  %v3544 = vpop.f32.mrf.mxu0
  %v3545 = vpop.f32.mrf.mxu0
  %v3546 = vadd.f32 0.0, %v3545
  %v3547 = vpop.f32.mrf.mxu0
  %3548 = vdwg.mxu0
  %v3549 = vadd.f32 %v3443, %v3535
  %v3550 = vadd.f32 %v3444, %v3538
  %v3551 = vadd.f32 %v3445, %v3543
  %v3552 = vadd.f32 %v3446, %v3546
  %3553 = vst [vmem:[%s3] sm:$0xff] %v3549
  %3554 = vst [vmem:[%s3 + $0x8] sm:$0xff] %v3550
  %3555 = vst [vmem:[%s3 + $0x10] sm:$0xff] %v3551
  %3556 = vst [vmem:[%s3 + $0x18] sm:$0xff] %v3552
  %v3557 = vadd.f32 %v3549, %v3550
  %v3558 = vadd.f32 %v3557, %v3551
  %v3559 = vadd.f32 %v3558, %v3552
  %v3560 = vrot.slane %v3559, 4
  %v3561 = vadd.f32 %v3559, %v3560
  %v3562 = vrot.slane %v3561, 2
  %v3563 = vadd.f32 %v3561, %v3562
  %v3564 = vrot.slane %v3563, 1
  %v3565 = vadd.f32 %v3563, %v3564
  %v3566 = vmul.f32 %v3549, %v3549
  %v3567 = vmul.f32 %v3550, %v3550
  %v3568 = vmul.f32 %v3551, %v3551
  %v3569 = vmul.f32 %v3552, %v3552
  %v3570 = vadd.f32 %v3566, %v3567
  %v3571 = vadd.f32 %v3570, %v3568
  %v3572 = vadd.f32 %v3571, %v3569
  %v3573 = vrot.slane %v3572, 4
  %v3574 = vadd.f32 %v3572, %v3573
  %v3575 = vrot.slane %v3574, 2
  %v3576 = vadd.f32 %v3574, %v3575
  %v3577 = vrot.slane %v3576, 1
  %v3578 = vadd.f32 %v3576, %v3577
  %vm3579 = vcmask 1040384
  %v3580 = vsel %vm3579, %v3565, %v3578
  %3581 = vst [vmem:[%s4] sm:$0x3] %v3580
  // Predicated region
  $region14: #{model_d_forward.2} parent=0 // pred_check
    _
  $region15: #{model_d_forward.2} parent=0 // pred_check_branch
    %3583 = sbr.rel (0) target = $region17
  $region16: #{model_d_forward.2} parent=0 // pred_region
    _
  $region17: #{model_d_forward.2} parent=0 // pred_fallthru
    _
  // Predicated region
  $region18: #{model_d_forward.2} parent=0 // pred_check
    _
  $region19: #{model_d_forward.2} parent=0 // pred_check_branch
    %3585 = sbr.rel (0) target = $region21
  $region20: #{model_d_forward.2} parent=0 // pred_region
    _
  $region21: #{model_d_forward.2} parent=0 // pred_fallthru
    _
  // Predicated region
  $region22: #{model_d_forward.2} parent=0 // pred_check
    _
  $region23: #{model_d_forward.2} parent=0 // pred_check_branch
    %3587 = sbr.rel (0) target = $region25
  $region24: #{model_d_forward.2} parent=0 // pred_region
    _
  $region25: #{model_d_forward.2} parent=0 // pred_fallthru
    _
  // Predicated region
  $region26: #{model_d_forward.2} parent=0 // pred_check
    _
  $region27: #{model_d_forward.2} parent=0 // pred_check_branch
    %3589 = sbr.rel (0) target = $region29
  $region28: #{model_d_forward.2} parent=0 // pred_region
    _
  $region29: #{model_d_forward.2} parent=0 // pred_fallthru
    _

// kernel: model_d_forward.3
$region0: #{model_d_forward.3}
  #allocation0 [shape = 'u32[]', space=smem, size = 0x4, offset = 0x4, fixed_abs, tag = 'smem constant byte address 0x4 - core index']
  #allocation1 [shape = 'u32[144,128]{1,0:T(1,128)}', space=vmem, size = 0x12000, scoped, tag = 'internal scratch']
  %s0 = inlined_call_operand.vmem [shape: f32[2,2048], index: 0, kind: input, shape index: {}]
  %s1 = inlined_call_operand.vmem [shape: bf16[2048,64], index: 1, kind: input, shape index: {}]
  %s2 = inlined_call_operand.vmem [shape: f32[1,64], index: 2, kind: input, shape index: {}]
  %s3 = inlined_call_operand.hbm [shape: f32[2,64], index: 3, kind: output, shape index: {}]
  %s4 = sld [smem:[#allocation0]]
  $region22: #{model_d_forward.3} parent=0
    _
  %s6 = ssub.s32 1, %s4
  %s7 = scalar_select 0, %s6, %s4
  $region1: #{model_d_forward.3} parent=0
    #allocation2 [shape = 'u8[1024]{0}', space=vmem, size = 0x400, scoped, tag = 'output window, operand 0, single buffered']
    #allocation3 [shape = 's32[1]{0}', space=sflag, size = 0x4, scoped, tag = 'scoped memory for model_d_forward.3']
    %8 = vsyncpa [#allocation3], 0
    // Predicated region
    $region2: #{model_d_forward.3} parent=1 // pred_check
      _
    $region3: #{model_d_forward.3} parent=1 // pred_check_branch
      %10 = sbr.rel (0) target = $region5
    $region4: #{model_d_forward.3} parent=1 // pred_region
      _
    $region5: #{model_d_forward.3} parent=1 // pred_fallthru
      _
    // Predicated region
    $region6: #{model_d_forward.3} parent=1 // pred_check
      _
    $region7: #{model_d_forward.3} parent=1 // pred_check_branch
      %12 = sbr.rel (0) target = $region9
    $region8: #{model_d_forward.3} parent=1 // pred_region
      _
    $region9: #{model_d_forward.3} parent=1 // pred_fallthru
      _
    // Predicated region
    $region10: #{model_d_forward.3} parent=1 // pred_check
      _
    $region11: #{model_d_forward.3} parent=1 // pred_check_branch
      %14 = sbr.rel (0) target = $region13
    $region12: #{model_d_forward.3} parent=1 // pred_region
      _
    $region13: #{model_d_forward.3} parent=1 // pred_fallthru
      _
    %v16 = vld [vmem:[%s0] sm:$0xff]
    %v17 = vld [vmem:[%s0 + $0x8] sm:$0xff]
    %v18 = vld [vmem:[%s0 + $0x10] sm:$0xff]
    %v19 = vld [vmem:[%s0 + $0x18] sm:$0xff]
    %v24 = vcombine.high %v16, %v16
    %v26 = vunpack.c.l.s4 1983009808
    %v27 = vunpack.c.0.s8 %v26
    %v28 = vlaneseq
    %v29 = vshrl.u32 %v28, 7
    %v30 = vsub.s32 %v27, %v29
    %v31 = vrot.slane %v16, %v30
    %v33 = vunpack.c.l.s4 1983009808
    %v34 = vunpack.c.0.s8 %v33
    %v35 = vlaneseq
    %v36 = vshrl.u32 %v35, 7
    %v37 = vsub.s32 %v34, %v36
    %v38 = vrot.slane %v24, %v37
    %v39 = vcombine.high %v31, %v31
    %v40 = vcombine.high %v38, %v38
    %v41 = vcombine.high %v17, %v17
    %v43 = vunpack.c.l.s4 1983009808
    %v44 = vunpack.c.0.s8 %v43
    %v45 = vlaneseq
    %v46 = vshrl.u32 %v45, 7
    %v47 = vsub.s32 %v44, %v46
    %v48 = vrot.slane %v17, %v47
    %v50 = vunpack.c.l.s4 1983009808
    %v51 = vunpack.c.0.s8 %v50
    %v52 = vlaneseq
    %v53 = vshrl.u32 %v52, 7
    %v54 = vsub.s32 %v51, %v53
    %v55 = vrot.slane %v41, %v54
    %v56 = vcombine.high %v48, %v48
    %v57 = vcombine.high %v55, %v55
    %v58 = vcombine.high %v18, %v18
    %v60 = vunpack.c.l.s4 1983009808
    %v61 = vunpack.c.0.s8 %v60
    %v62 = vlaneseq
    %v63 = vshrl.u32 %v62, 7
    %v64 = vsub.s32 %v61, %v63
    %v65 = vrot.slane %v18, %v64
    %v67 = vunpack.c.l.s4 1983009808
    %v68 = vunpack.c.0.s8 %v67
    %v69 = vlaneseq
    %v70 = vshrl.u32 %v69, 7
    %v71 = vsub.s32 %v68, %v70
    %v72 = vrot.slane %v58, %v71
    %v73 = vcombine.high %v65, %v65
    %v74 = vcombine.high %v72, %v72
    %v75 = vcombine.high %v19, %v19
    %v77 = vunpack.c.l.s4 1983009808
    %v78 = vunpack.c.0.s8 %v77
    %v79 = vlaneseq
    %v80 = vshrl.u32 %v79, 7
    %v81 = vsub.s32 %v78, %v80
    %v82 = vrot.slane %v19, %v81
    %v84 = vunpack.c.l.s4 1983009808
    %v85 = vunpack.c.0.s8 %v84
    %v86 = vlaneseq
    %v87 = vshrl.u32 %v86, 7
    %v88 = vsub.s32 %v85, %v87
    %v89 = vrot.slane %v75, %v88
    %v90 = vcombine.high %v82, %v82
    %v91 = vcombine.high %v89, %v89
    %v108 = vpack.c.bf16 %v31, %v31
    %v109 = vpack.c.bf16 %v39, %v39
    %v110 = vpack.c.bf16 %v38, %v38
    %v111 = vpack.c.bf16 %v40, %v40
    %v112 = vpack.c.bf16 %v48, %v48
    %v113 = vpack.c.bf16 %v56, %v56
    %v114 = vpack.c.bf16 %v55, %v55
    %v115 = vpack.c.bf16 %v57, %v57
    %v116 = vpack.c.bf16 %v65, %v65
    %v117 = vpack.c.bf16 %v73, %v73
    %v118 = vpack.c.bf16 %v72, %v72
    %v119 = vpack.c.bf16 %v74, %v74
    %v120 = vpack.c.bf16 %v82, %v82
    %v121 = vpack.c.bf16 %v90, %v90
    %v122 = vpack.c.bf16 %v89, %v89
    %v123 = vpack.c.bf16 %v91, %v91
    %v124 = vld [vmem:[%s1] sm:$0xf]
    %v125 = vld [vmem:[%s1 + $0x4] sm:$0xf]
    %v126 = vld [vmem:[%s1 + $0x8] sm:$0xf]
    %v127 = vld [vmem:[%s1 + $0xc] sm:$0xf]
    %v128 = vld [vmem:[%s1 + $0x10] sm:$0xf]
    %v129 = vld [vmem:[%s1 + $0x14] sm:$0xf]
    %v130 = vld [vmem:[%s1 + $0x18] sm:$0xf]
    %v131 = vld [vmem:[%s1 + $0x1c] sm:$0xf]
    %v132 = vld [vmem:[%s1 + $0x20] sm:$0xf]
    %v133 = vld [vmem:[%s1 + $0x24] sm:$0xf]
    %v134 = vld [vmem:[%s1 + $0x28] sm:$0xf]
    %v135 = vld [vmem:[%s1 + $0x2c] sm:$0xf]
    %v136 = vld [vmem:[%s1 + $0x30] sm:$0xf]
    %v137 = vld [vmem:[%s1 + $0x34] sm:$0xf]
    %v138 = vld [vmem:[%s1 + $0x38] sm:$0xf]
    %v139 = vld [vmem:[%s1 + $0x3c] sm:$0xf]
    %v140 = vld [vmem:[%s1 + $0x40] sm:$0xf]
    %v141 = vld [vmem:[%s1 + $0x44] sm:$0xf]
    %v142 = vld [vmem:[%s1 + $0x48] sm:$0xf]
    %v143 = vld [vmem:[%s1 + $0x4c] sm:$0xf]
    %v144 = vld [vmem:[%s1 + $0x50] sm:$0xf]
    %v145 = vld [vmem:[%s1 + $0x54] sm:$0xf]
    %v146 = vld [vmem:[%s1 + $0x58] sm:$0xf]
    %v147 = vld [vmem:[%s1 + $0x5c] sm:$0xf]
    %v148 = vld [vmem:[%s1 + $0x60] sm:$0xf]
    %v149 = vld [vmem:[%s1 + $0x64] sm:$0xf]
    %v150 = vld [vmem:[%s1 + $0x68] sm:$0xf]
    %v151 = vld [vmem:[%s1 + $0x6c] sm:$0xf]
    %v152 = vld [vmem:[%s1 + $0x70] sm:$0xf]
    %v153 = vld [vmem:[%s1 + $0x74] sm:$0xf]
    %v154 = vld [vmem:[%s1 + $0x78] sm:$0xf]
    %v155 = vld [vmem:[%s1 + $0x7c] sm:$0xf]
    %v156 = vld [vmem:[%s1 + $0x80] sm:$0xf]
    %v157 = vld [vmem:[%s1 + $0x84] sm:$0xf]
    %v158 = vld [vmem:[%s1 + $0x88] sm:$0xf]
    %v159 = vld [vmem:[%s1 + $0x8c] sm:$0xf]
    %v160 = vld [vmem:[%s1 + $0x90] sm:$0xf]
    %v161 = vld [vmem:[%s1 + $0x94] sm:$0xf]
    %v162 = vld [vmem:[%s1 + $0x98] sm:$0xf]
    %v163 = vld [vmem:[%s1 + $0x9c] sm:$0xf]
    %v164 = vld [vmem:[%s1 + $0xa0] sm:$0xf]
    %v165 = vld [vmem:[%s1 + $0xa4] sm:$0xf]
    %v166 = vld [vmem:[%s1 + $0xa8] sm:$0xf]
    %v167 = vld [vmem:[%s1 + $0xac] sm:$0xf]
    %v168 = vld [vmem:[%s1 + $0xb0] sm:$0xf]
    %v169 = vld [vmem:[%s1 + $0xb4] sm:$0xf]
    %v170 = vld [vmem:[%s1 + $0xb8] sm:$0xf]
    %v171 = vld [vmem:[%s1 + $0xbc] sm:$0xf]
    %v172 = vld [vmem:[%s1 + $0xc0] sm:$0xf]
    %v173 = vld [vmem:[%s1 + $0xc4] sm:$0xf]
    %v174 = vld [vmem:[%s1 + $0xc8] sm:$0xf]
    %v175 = vld [vmem:[%s1 + $0xcc] sm:$0xf]
    %v176 = vld [vmem:[%s1 + $0xd0] sm:$0xf]
    %v177 = vld [vmem:[%s1 + $0xd4] sm:$0xf]
    %v178 = vld [vmem:[%s1 + $0xd8] sm:$0xf]
    %v179 = vld [vmem:[%s1 + $0xdc] sm:$0xf]
    %v180 = vld [vmem:[%s1 + $0xe0] sm:$0xf]
    %v181 = vld [vmem:[%s1 + $0xe4] sm:$0xf]
    %v182 = vld [vmem:[%s1 + $0xe8] sm:$0xf]
    %v183 = vld [vmem:[%s1 + $0xec] sm:$0xf]
    %v184 = vld [vmem:[%s1 + $0xf0] sm:$0xf]
    %v185 = vld [vmem:[%s1 + $0xf4] sm:$0xf]
    %v186 = vld [vmem:[%s1 + $0xf8] sm:$0xf]
    %v187 = vld [vmem:[%s1 + $0xfc] sm:$0xf]
    %v188 = vld [vmem:[%s1 + $0x100] sm:$0xf]
    %v189 = vld [vmem:[%s1 + $0x104] sm:$0xf]
    %v190 = vld [vmem:[%s1 + $0x108] sm:$0xf]
    %v191 = vld [vmem:[%s1 + $0x10c] sm:$0xf]
    %v192 = vld [vmem:[%s1 + $0x110] sm:$0xf]
    %v193 = vld [vmem:[%s1 + $0x114] sm:$0xf]
    %v194 = vld [vmem:[%s1 + $0x118] sm:$0xf]
    %v195 = vld [vmem:[%s1 + $0x11c] sm:$0xf]
    %v196 = vld [vmem:[%s1 + $0x120] sm:$0xf]
    %v197 = vld [vmem:[%s1 + $0x124] sm:$0xf]
    %v198 = vld [vmem:[%s1 + $0x128] sm:$0xf]
    %v199 = vld [vmem:[%s1 + $0x12c] sm:$0xf]
    %v200 = vld [vmem:[%s1 + $0x130] sm:$0xf]
    %v201 = vld [vmem:[%s1 + $0x134] sm:$0xf]
    %v202 = vld [vmem:[%s1 + $0x138] sm:$0xf]
    %v203 = vld [vmem:[%s1 + $0x13c] sm:$0xf]
    %v204 = vld [vmem:[%s1 + $0x140] sm:$0xf]
    %v205 = vld [vmem:[%s1 + $0x144] sm:$0xf]
    %v206 = vld [vmem:[%s1 + $0x148] sm:$0xf]
    %v207 = vld [vmem:[%s1 + $0x14c] sm:$0xf]
    %v208 = vld [vmem:[%s1 + $0x150] sm:$0xf]
    %v209 = vld [vmem:[%s1 + $0x154] sm:$0xf]
    %v210 = vld [vmem:[%s1 + $0x158] sm:$0xf]
    %v211 = vld [vmem:[%s1 + $0x15c] sm:$0xf]
    %v212 = vld [vmem:[%s1 + $0x160] sm:$0xf]
    %v213 = vld [vmem:[%s1 + $0x164] sm:$0xf]
    %v214 = vld [vmem:[%s1 + $0x168] sm:$0xf]
    %v215 = vld [vmem:[%s1 + $0x16c] sm:$0xf]
    %v216 = vld [vmem:[%s1 + $0x170] sm:$0xf]
    %v217 = vld [vmem:[%s1 + $0x174] sm:$0xf]
    %v218 = vld [vmem:[%s1 + $0x178] sm:$0xf]
    %v219 = vld [vmem:[%s1 + $0x17c] sm:$0xf]
    %v220 = vld [vmem:[%s1 + $0x180] sm:$0xf]
    %v221 = vld [vmem:[%s1 + $0x184] sm:$0xf]
    %v222 = vld [vmem:[%s1 + $0x188] sm:$0xf]
    %v223 = vld [vmem:[%s1 + $0x18c] sm:$0xf]
    %v224 = vld [vmem:[%s1 + $0x190] sm:$0xf]
    %v225 = vld [vmem:[%s1 + $0x194] sm:$0xf]
    %v226 = vld [vmem:[%s1 + $0x198] sm:$0xf]
    %v227 = vld [vmem:[%s1 + $0x19c] sm:$0xf]
    %v228 = vld [vmem:[%s1 + $0x1a0] sm:$0xf]
    %v229 = vld [vmem:[%s1 + $0x1a4] sm:$0xf]
    %v230 = vld [vmem:[%s1 + $0x1a8] sm:$0xf]
    %v231 = vld [vmem:[%s1 + $0x1ac] sm:$0xf]
    %v232 = vld [vmem:[%s1 + $0x1b0] sm:$0xf]
    %v233 = vld [vmem:[%s1 + $0x1b4] sm:$0xf]
    %v234 = vld [vmem:[%s1 + $0x1b8] sm:$0xf]
    %v235 = vld [vmem:[%s1 + $0x1bc] sm:$0xf]
    %v236 = vld [vmem:[%s1 + $0x1c0] sm:$0xf]
    %v237 = vld [vmem:[%s1 + $0x1c4] sm:$0xf]
    %v238 = vld [vmem:[%s1 + $0x1c8] sm:$0xf]
    %v239 = vld [vmem:[%s1 + $0x1cc] sm:$0xf]
    %v240 = vld [vmem:[%s1 + $0x1d0] sm:$0xf]
    %v241 = vld [vmem:[%s1 + $0x1d4] sm:$0xf]
    %v242 = vld [vmem:[%s1 + $0x1d8] sm:$0xf]
    %v243 = vld [vmem:[%s1 + $0x1dc] sm:$0xf]
    %v244 = vld [vmem:[%s1 + $0x1e0] sm:$0xf]
    %v245 = vld [vmem:[%s1 + $0x1e4] sm:$0xf]
    %v246 = vld [vmem:[%s1 + $0x1e8] sm:$0xf]
    %v247 = vld [vmem:[%s1 + $0x1ec] sm:$0xf]
    %v248 = vld [vmem:[%s1 + $0x1f0] sm:$0xf]
    %v249 = vld [vmem:[%s1 + $0x1f4] sm:$0xf]
    %v250 = vld [vmem:[%s1 + $0x1f8] sm:$0xf]
    %v251 = vld [vmem:[%s1 + $0x1fc] sm:$0xf]
    %v252 = vld [vmem:[%s1 + $0x200] sm:$0xf]
    %v253 = vld [vmem:[%s1 + $0x204] sm:$0xf]
    %v254 = vld [vmem:[%s1 + $0x208] sm:$0xf]
    %v255 = vld [vmem:[%s1 + $0x20c] sm:$0xf]
    %v256 = vld [vmem:[%s1 + $0x210] sm:$0xf]
    %v257 = vld [vmem:[%s1 + $0x214] sm:$0xf]
    %v258 = vld [vmem:[%s1 + $0x218] sm:$0xf]
    %v259 = vld [vmem:[%s1 + $0x21c] sm:$0xf]
    %v260 = vld [vmem:[%s1 + $0x220] sm:$0xf]
    %v261 = vld [vmem:[%s1 + $0x224] sm:$0xf]
    %v262 = vld [vmem:[%s1 + $0x228] sm:$0xf]
    %v263 = vld [vmem:[%s1 + $0x22c] sm:$0xf]
    %v264 = vld [vmem:[%s1 + $0x230] sm:$0xf]
    %v265 = vld [vmem:[%s1 + $0x234] sm:$0xf]
    %v266 = vld [vmem:[%s1 + $0x238] sm:$0xf]
    %v267 = vld [vmem:[%s1 + $0x23c] sm:$0xf]
    %v268 = vld [vmem:[%s1 + $0x240] sm:$0xf]
    %v269 = vld [vmem:[%s1 + $0x244] sm:$0xf]
    %v270 = vld [vmem:[%s1 + $0x248] sm:$0xf]
    %v271 = vld [vmem:[%s1 + $0x24c] sm:$0xf]
    %v272 = vld [vmem:[%s1 + $0x250] sm:$0xf]
    %v273 = vld [vmem:[%s1 + $0x254] sm:$0xf]
    %v274 = vld [vmem:[%s1 + $0x258] sm:$0xf]
    %v275 = vld [vmem:[%s1 + $0x25c] sm:$0xf]
    %v276 = vld [vmem:[%s1 + $0x260] sm:$0xf]
    %v277 = vld [vmem:[%s1 + $0x264] sm:$0xf]
    %v278 = vld [vmem:[%s1 + $0x268] sm:$0xf]
    %v279 = vld [vmem:[%s1 + $0x26c] sm:$0xf]
    %v280 = vld [vmem:[%s1 + $0x270] sm:$0xf]
    %v281 = vld [vmem:[%s1 + $0x274] sm:$0xf]
    %v282 = vld [vmem:[%s1 + $0x278] sm:$0xf]
    %v283 = vld [vmem:[%s1 + $0x27c] sm:$0xf]
    %v284 = vld [vmem:[%s1 + $0x280] sm:$0xf]
    %v285 = vld [vmem:[%s1 + $0x284] sm:$0xf]
    %v286 = vld [vmem:[%s1 + $0x288] sm:$0xf]
    %v287 = vld [vmem:[%s1 + $0x28c] sm:$0xf]
    %v288 = vld [vmem:[%s1 + $0x290] sm:$0xf]
    %v289 = vld [vmem:[%s1 + $0x294] sm:$0xf]
    %v290 = vld [vmem:[%s1 + $0x298] sm:$0xf]
    %v291 = vld [vmem:[%s1 + $0x29c] sm:$0xf]
    %v292 = vld [vmem:[%s1 + $0x2a0] sm:$0xf]
    %v293 = vld [vmem:[%s1 + $0x2a4] sm:$0xf]
    %v294 = vld [vmem:[%s1 + $0x2a8] sm:$0xf]
    %v295 = vld [vmem:[%s1 + $0x2ac] sm:$0xf]
    %v296 = vld [vmem:[%s1 + $0x2b0] sm:$0xf]
    %v297 = vld [vmem:[%s1 + $0x2b4] sm:$0xf]
    %v298 = vld [vmem:[%s1 + $0x2b8] sm:$0xf]
    %v299 = vld [vmem:[%s1 + $0x2bc] sm:$0xf]
    %v300 = vld [vmem:[%s1 + $0x2c0] sm:$0xf]
    %v301 = vld [vmem:[%s1 + $0x2c4] sm:$0xf]
    %v302 = vld [vmem:[%s1 + $0x2c8] sm:$0xf]
    %v303 = vld [vmem:[%s1 + $0x2cc] sm:$0xf]
    %v304 = vld [vmem:[%s1 + $0x2d0] sm:$0xf]
    %v305 = vld [vmem:[%s1 + $0x2d4] sm:$0xf]
    %v306 = vld [vmem:[%s1 + $0x2d8] sm:$0xf]
    %v307 = vld [vmem:[%s1 + $0x2dc] sm:$0xf]
    %v308 = vld [vmem:[%s1 + $0x2e0] sm:$0xf]
    %v309 = vld [vmem:[%s1 + $0x2e4] sm:$0xf]
    %v310 = vld [vmem:[%s1 + $0x2e8] sm:$0xf]
    %v311 = vld [vmem:[%s1 + $0x2ec] sm:$0xf]
    %v312 = vld [vmem:[%s1 + $0x2f0] sm:$0xf]
    %v313 = vld [vmem:[%s1 + $0x2f4] sm:$0xf]
    %v314 = vld [vmem:[%s1 + $0x2f8] sm:$0xf]
    %v315 = vld [vmem:[%s1 + $0x2fc] sm:$0xf]
    %v316 = vld [vmem:[%s1 + $0x300] sm:$0xf]
    %v317 = vld [vmem:[%s1 + $0x304] sm:$0xf]
    %v318 = vld [vmem:[%s1 + $0x308] sm:$0xf]
    %v319 = vld [vmem:[%s1 + $0x30c] sm:$0xf]
    %v320 = vld [vmem:[%s1 + $0x310] sm:$0xf]
    %v321 = vld [vmem:[%s1 + $0x314] sm:$0xf]
    %v322 = vld [vmem:[%s1 + $0x318] sm:$0xf]
    %v323 = vld [vmem:[%s1 + $0x31c] sm:$0xf]
    %v324 = vld [vmem:[%s1 + $0x320] sm:$0xf]
    %v325 = vld [vmem:[%s1 + $0x324] sm:$0xf]
    %v326 = vld [vmem:[%s1 + $0x328] sm:$0xf]
    %v327 = vld [vmem:[%s1 + $0x32c] sm:$0xf]
    %v328 = vld [vmem:[%s1 + $0x330] sm:$0xf]
    %v329 = vld [vmem:[%s1 + $0x334] sm:$0xf]
    %v330 = vld [vmem:[%s1 + $0x338] sm:$0xf]
    %v331 = vld [vmem:[%s1 + $0x33c] sm:$0xf]
    %v332 = vld [vmem:[%s1 + $0x340] sm:$0xf]
    %v333 = vld [vmem:[%s1 + $0x344] sm:$0xf]
    %v334 = vld [vmem:[%s1 + $0x348] sm:$0xf]
    %v335 = vld [vmem:[%s1 + $0x34c] sm:$0xf]
    %v336 = vld [vmem:[%s1 + $0x350] sm:$0xf]
    %v337 = vld [vmem:[%s1 + $0x354] sm:$0xf]
    %v338 = vld [vmem:[%s1 + $0x358] sm:$0xf]
    %v339 = vld [vmem:[%s1 + $0x35c] sm:$0xf]
    %v340 = vld [vmem:[%s1 + $0x360] sm:$0xf]
    %v341 = vld [vmem:[%s1 + $0x364] sm:$0xf]
    %v342 = vld [vmem:[%s1 + $0x368] sm:$0xf]
    %v343 = vld [vmem:[%s1 + $0x36c] sm:$0xf]
    %v344 = vld [vmem:[%s1 + $0x370] sm:$0xf]
    %v345 = vld [vmem:[%s1 + $0x374] sm:$0xf]
    %v346 = vld [vmem:[%s1 + $0x378] sm:$0xf]
    %v347 = vld [vmem:[%s1 + $0x37c] sm:$0xf]
    %v348 = vld [vmem:[%s1 + $0x380] sm:$0xf]
    %v349 = vld [vmem:[%s1 + $0x384] sm:$0xf]
    %v350 = vld [vmem:[%s1 + $0x388] sm:$0xf]
    %v351 = vld [vmem:[%s1 + $0x38c] sm:$0xf]
    %v352 = vld [vmem:[%s1 + $0x390] sm:$0xf]
    %v353 = vld [vmem:[%s1 + $0x394] sm:$0xf]
    %v354 = vld [vmem:[%s1 + $0x398] sm:$0xf]
    %v355 = vld [vmem:[%s1 + $0x39c] sm:$0xf]
    %v356 = vld [vmem:[%s1 + $0x3a0] sm:$0xf]
    %v357 = vld [vmem:[%s1 + $0x3a4] sm:$0xf]
    %v358 = vld [vmem:[%s1 + $0x3a8] sm:$0xf]
    %v359 = vld [vmem:[%s1 + $0x3ac] sm:$0xf]
    %v360 = vld [vmem:[%s1 + $0x3b0] sm:$0xf]
    %v361 = vld [vmem:[%s1 + $0x3b4] sm:$0xf]
    %v362 = vld [vmem:[%s1 + $0x3b8] sm:$0xf]
    %v363 = vld [vmem:[%s1 + $0x3bc] sm:$0xf]
    %v364 = vld [vmem:[%s1 + $0x3c0] sm:$0xf]
    %v365 = vld [vmem:[%s1 + $0x3c4] sm:$0xf]
    %v366 = vld [vmem:[%s1 + $0x3c8] sm:$0xf]
    %v367 = vld [vmem:[%s1 + $0x3cc] sm:$0xf]
    %v368 = vld [vmem:[%s1 + $0x3d0] sm:$0xf]
    %v369 = vld [vmem:[%s1 + $0x3d4] sm:$0xf]
    %v370 = vld [vmem:[%s1 + $0x3d8] sm:$0xf]
    %v371 = vld [vmem:[%s1 + $0x3dc] sm:$0xf]
    %v372 = vld [vmem:[%s1 + $0x3e0] sm:$0xf]
    %v373 = vld [vmem:[%s1 + $0x3e4] sm:$0xf]
    %v374 = vld [vmem:[%s1 + $0x3e8] sm:$0xf]
    %v375 = vld [vmem:[%s1 + $0x3ec] sm:$0xf]
    %v376 = vld [vmem:[%s1 + $0x3f0] sm:$0xf]
    %v377 = vld [vmem:[%s1 + $0x3f4] sm:$0xf]
    %v378 = vld [vmem:[%s1 + $0x3f8] sm:$0xf]
    %v379 = vld [vmem:[%s1 + $0x3fc] sm:$0xf]
    %v380 = vld [vmem:[%s2] sm:$0x1]
    %v382 = vlaneseq
    %v383 = vshrl.u32 %v382, 7
    %v384 = vsub.s32 0, %v383
    %v385 = vrot.slane %v380, %v384
    %v643 = vunpack.c.l.b16 %v124
    %v644 = vunpack.c.l.b16 %v125
    %v645 = vunpack.c.l.b16 %v126
    %v646 = vunpack.c.l.b16 %v127
    %v647 = vunpack.c.l.b16 %v128
    %v648 = vunpack.c.l.b16 %v129
    %v649 = vunpack.c.l.b16 %v130
    %v650 = vunpack.c.l.b16 %v131
    %v651 = vunpack.c.l.b16 %v132
    %v652 = vunpack.c.l.b16 %v133
    %v653 = vunpack.c.l.b16 %v134
    %v654 = vunpack.c.l.b16 %v135
    %v655 = vunpack.c.l.b16 %v136
    %v656 = vunpack.c.l.b16 %v137
    %v657 = vunpack.c.l.b16 %v138
    %v658 = vunpack.c.l.b16 %v139
    %v659 = vunpack.c.l.b16 %v140
    %v660 = vunpack.c.l.b16 %v141
    %v661 = vunpack.c.l.b16 %v142
    %v662 = vunpack.c.l.b16 %v143
    %v663 = vunpack.c.l.b16 %v144
    %v664 = vunpack.c.l.b16 %v145
    %v665 = vunpack.c.l.b16 %v146
    %v666 = vunpack.c.l.b16 %v147
    %v667 = vunpack.c.l.b16 %v148
    %v668 = vunpack.c.l.b16 %v149
    %v669 = vunpack.c.l.b16 %v150
    %v670 = vunpack.c.l.b16 %v151
    %v671 = vunpack.c.l.b16 %v152
    %v672 = vunpack.c.l.b16 %v153
    %v673 = vunpack.c.l.b16 %v154
    %v674 = vunpack.c.l.b16 %v155
    %v675 = vunpack.c.l.b16 %v156
    %v676 = vunpack.c.l.b16 %v157
    %v677 = vunpack.c.l.b16 %v158
    %v678 = vunpack.c.l.b16 %v159
    %v679 = vunpack.c.l.b16 %v160
    %v680 = vunpack.c.l.b16 %v161
    %v681 = vunpack.c.l.b16 %v162
    %v682 = vunpack.c.l.b16 %v163
    %v683 = vunpack.c.l.b16 %v164
    %v684 = vunpack.c.l.b16 %v165
    %v685 = vunpack.c.l.b16 %v166
    %v686 = vunpack.c.l.b16 %v167
    %v687 = vunpack.c.l.b16 %v168
    %v688 = vunpack.c.l.b16 %v169
    %v689 = vunpack.c.l.b16 %v170
    %v690 = vunpack.c.l.b16 %v171
    %v691 = vunpack.c.l.b16 %v172
    %v692 = vunpack.c.l.b16 %v173
    %v693 = vunpack.c.l.b16 %v174
    %v694 = vunpack.c.l.b16 %v175
    %v695 = vunpack.c.l.b16 %v176
    %v696 = vunpack.c.l.b16 %v177
    %v697 = vunpack.c.l.b16 %v178
    %v698 = vunpack.c.l.b16 %v179
    %v699 = vunpack.c.l.b16 %v180
    %v700 = vunpack.c.l.b16 %v181
    %v701 = vunpack.c.l.b16 %v182
    %v702 = vunpack.c.l.b16 %v183
    %v703 = vunpack.c.l.b16 %v184
    %v704 = vunpack.c.l.b16 %v185
    %v705 = vunpack.c.l.b16 %v186
    %v706 = vunpack.c.l.b16 %v187
    %v707 = vunpack.c.l.b16 %v188
    %v708 = vunpack.c.l.b16 %v189
    %v709 = vunpack.c.l.b16 %v190
    %v710 = vunpack.c.l.b16 %v191
    %v711 = vunpack.c.l.b16 %v192
    %v712 = vunpack.c.l.b16 %v193
    %v713 = vunpack.c.l.b16 %v194
    %v714 = vunpack.c.l.b16 %v195
    %v715 = vunpack.c.l.b16 %v196
    %v716 = vunpack.c.l.b16 %v197
    %v717 = vunpack.c.l.b16 %v198
    %v718 = vunpack.c.l.b16 %v199
    %v719 = vunpack.c.l.b16 %v200
    %v720 = vunpack.c.l.b16 %v201
    %v721 = vunpack.c.l.b16 %v202
    %v722 = vunpack.c.l.b16 %v203
    %v723 = vunpack.c.l.b16 %v204
    %v724 = vunpack.c.l.b16 %v205
    %v725 = vunpack.c.l.b16 %v206
    %v726 = vunpack.c.l.b16 %v207
    %v727 = vunpack.c.l.b16 %v208
    %v728 = vunpack.c.l.b16 %v209
    %v729 = vunpack.c.l.b16 %v210
    %v730 = vunpack.c.l.b16 %v211
    %v731 = vunpack.c.l.b16 %v212
    %v732 = vunpack.c.l.b16 %v213
    %v733 = vunpack.c.l.b16 %v214
    %v734 = vunpack.c.l.b16 %v215
    %v735 = vunpack.c.l.b16 %v216
    %v736 = vunpack.c.l.b16 %v217
    %v737 = vunpack.c.l.b16 %v218
    %v738 = vunpack.c.l.b16 %v219
    %v739 = vunpack.c.l.b16 %v220
    %v740 = vunpack.c.l.b16 %v221
    %v741 = vunpack.c.l.b16 %v222
    %v742 = vunpack.c.l.b16 %v223
    %v743 = vunpack.c.l.b16 %v224
    %v744 = vunpack.c.l.b16 %v225
    %v745 = vunpack.c.l.b16 %v226
    %v746 = vunpack.c.l.b16 %v227
    %v747 = vunpack.c.l.b16 %v228
    %v748 = vunpack.c.l.b16 %v229
    %v749 = vunpack.c.l.b16 %v230
    %v750 = vunpack.c.l.b16 %v231
    %v751 = vunpack.c.l.b16 %v232
    %v752 = vunpack.c.l.b16 %v233
    %v753 = vunpack.c.l.b16 %v234
    %v754 = vunpack.c.l.b16 %v235
    %v755 = vunpack.c.l.b16 %v236
    %v756 = vunpack.c.l.b16 %v237
    %v757 = vunpack.c.l.b16 %v238
    %v758 = vunpack.c.l.b16 %v239
    %v759 = vunpack.c.l.b16 %v240
    %v760 = vunpack.c.l.b16 %v241
    %v761 = vunpack.c.l.b16 %v242
    %v762 = vunpack.c.l.b16 %v243
    %v763 = vunpack.c.l.b16 %v244
    %v764 = vunpack.c.l.b16 %v245
    %v765 = vunpack.c.l.b16 %v246
    %v766 = vunpack.c.l.b16 %v247
    %v767 = vunpack.c.l.b16 %v248
    %v768 = vunpack.c.l.b16 %v249
    %v769 = vunpack.c.l.b16 %v250
    %v770 = vunpack.c.l.b16 %v251
    %v771 = vunpack.c.l.b16 %v252
    %v772 = vunpack.c.l.b16 %v253
    %v773 = vunpack.c.l.b16 %v254
    %v774 = vunpack.c.l.b16 %v255
    %v775 = vunpack.c.l.b16 %v256
    %v776 = vunpack.c.l.b16 %v257
    %v777 = vunpack.c.l.b16 %v258
    %v778 = vunpack.c.l.b16 %v259
    %v779 = vunpack.c.l.b16 %v260
    %v780 = vunpack.c.l.b16 %v261
    %v781 = vunpack.c.l.b16 %v262
    %v782 = vunpack.c.l.b16 %v263
    %v783 = vunpack.c.l.b16 %v264
    %v784 = vunpack.c.l.b16 %v265
    %v785 = vunpack.c.l.b16 %v266
    %v786 = vunpack.c.l.b16 %v267
    %v787 = vunpack.c.l.b16 %v268
    %v788 = vunpack.c.l.b16 %v269
    %v789 = vunpack.c.l.b16 %v270
    %v790 = vunpack.c.l.b16 %v271
    %v791 = vunpack.c.l.b16 %v272
    %v792 = vunpack.c.l.b16 %v273
    %v793 = vunpack.c.l.b16 %v274
    %v794 = vunpack.c.l.b16 %v275
    %v795 = vunpack.c.l.b16 %v276
    %v796 = vunpack.c.l.b16 %v277
    %v797 = vunpack.c.l.b16 %v278
    %v798 = vunpack.c.l.b16 %v279
    %v799 = vunpack.c.l.b16 %v280
    %v800 = vunpack.c.l.b16 %v281
    %v801 = vunpack.c.l.b16 %v282
    %v802 = vunpack.c.l.b16 %v283
    %v803 = vunpack.c.l.b16 %v284
    %v804 = vunpack.c.l.b16 %v285
    %v805 = vunpack.c.l.b16 %v286
    %v806 = vunpack.c.l.b16 %v287
    %v807 = vunpack.c.l.b16 %v288
    %v808 = vunpack.c.l.b16 %v289
    %v809 = vunpack.c.l.b16 %v290
    %v810 = vunpack.c.l.b16 %v291
    %v811 = vunpack.c.l.b16 %v292
    %v812 = vunpack.c.l.b16 %v293
    %v813 = vunpack.c.l.b16 %v294
    %v814 = vunpack.c.l.b16 %v295
    %v815 = vunpack.c.l.b16 %v296
    %v816 = vunpack.c.l.b16 %v297
    %v817 = vunpack.c.l.b16 %v298
    %v818 = vunpack.c.l.b16 %v299
    %v819 = vunpack.c.l.b16 %v300
    %v820 = vunpack.c.l.b16 %v301
    %v821 = vunpack.c.l.b16 %v302
    %v822 = vunpack.c.l.b16 %v303
    %v823 = vunpack.c.l.b16 %v304
    %v824 = vunpack.c.l.b16 %v305
    %v825 = vunpack.c.l.b16 %v306
    %v826 = vunpack.c.l.b16 %v307
    %v827 = vunpack.c.l.b16 %v308
    %v828 = vunpack.c.l.b16 %v309
    %v829 = vunpack.c.l.b16 %v310
    %v830 = vunpack.c.l.b16 %v311
    %v831 = vunpack.c.l.b16 %v312
    %v832 = vunpack.c.l.b16 %v313
    %v833 = vunpack.c.l.b16 %v314
    %v834 = vunpack.c.l.b16 %v315
    %v835 = vunpack.c.l.b16 %v316
    %v836 = vunpack.c.l.b16 %v317
    %v837 = vunpack.c.l.b16 %v318
    %v838 = vunpack.c.l.b16 %v319
    %v839 = vunpack.c.l.b16 %v320
    %v840 = vunpack.c.l.b16 %v321
    %v841 = vunpack.c.l.b16 %v322
    %v842 = vunpack.c.l.b16 %v323
    %v843 = vunpack.c.l.b16 %v324
    %v844 = vunpack.c.l.b16 %v325
    %v845 = vunpack.c.l.b16 %v326
    %v846 = vunpack.c.l.b16 %v327
    %v847 = vunpack.c.l.b16 %v328
    %v848 = vunpack.c.l.b16 %v329
    %v849 = vunpack.c.l.b16 %v330
    %v850 = vunpack.c.l.b16 %v331
    %v851 = vunpack.c.l.b16 %v332
    %v852 = vunpack.c.l.b16 %v333
    %v853 = vunpack.c.l.b16 %v334
    %v854 = vunpack.c.l.b16 %v335
    %v855 = vunpack.c.l.b16 %v336
    %v856 = vunpack.c.l.b16 %v337
    %v857 = vunpack.c.l.b16 %v338
    %v858 = vunpack.c.l.b16 %v339
    %v859 = vunpack.c.l.b16 %v340
    %v860 = vunpack.c.l.b16 %v341
    %v861 = vunpack.c.l.b16 %v342
    %v862 = vunpack.c.l.b16 %v343
    %v863 = vunpack.c.l.b16 %v344
    %v864 = vunpack.c.l.b16 %v345
    %v865 = vunpack.c.l.b16 %v346
    %v866 = vunpack.c.l.b16 %v347
    %v867 = vunpack.c.l.b16 %v348
    %v868 = vunpack.c.l.b16 %v349
    %v869 = vunpack.c.l.b16 %v350
    %v870 = vunpack.c.l.b16 %v351
    %v871 = vunpack.c.l.b16 %v352
    %v872 = vunpack.c.l.b16 %v353
    %v873 = vunpack.c.l.b16 %v354
    %v874 = vunpack.c.l.b16 %v355
    %v875 = vunpack.c.l.b16 %v356
    %v876 = vunpack.c.l.b16 %v357
    %v877 = vunpack.c.l.b16 %v358
    %v878 = vunpack.c.l.b16 %v359
    %v879 = vunpack.c.l.b16 %v360
    %v880 = vunpack.c.l.b16 %v361
    %v881 = vunpack.c.l.b16 %v362
    %v882 = vunpack.c.l.b16 %v363
    %v883 = vunpack.c.l.b16 %v364
    %v884 = vunpack.c.l.b16 %v365
    %v885 = vunpack.c.l.b16 %v366
    %v886 = vunpack.c.l.b16 %v367
    %v887 = vunpack.c.l.b16 %v368
    %v888 = vunpack.c.l.b16 %v369
    %v889 = vunpack.c.l.b16 %v370
    %v890 = vunpack.c.l.b16 %v371
    %v891 = vunpack.c.l.b16 %v372
    %v892 = vunpack.c.l.b16 %v373
    %v893 = vunpack.c.l.b16 %v374
    %v894 = vunpack.c.l.b16 %v375
    %v895 = vunpack.c.l.b16 %v376
    %v896 = vunpack.c.l.b16 %v377
    %v897 = vunpack.c.l.b16 %v378
    %v898 = vunpack.c.l.b16 %v379
    %v899 = vpack.c.b16 %v644, %v643
    %v900 = vpack.c.b16 %v646, %v645
    %v901 = vpack.c.b16 %v648, %v647
    %v902 = vpack.c.b16 %v650, %v649
    %v903 = vpack.c.b16 %v652, %v651
    %v904 = vpack.c.b16 %v654, %v653
    %v905 = vpack.c.b16 %v656, %v655
    %v906 = vpack.c.b16 %v658, %v657
    %v907 = vpack.c.b16 %v660, %v659
    %v908 = vpack.c.b16 %v662, %v661
    %v909 = vpack.c.b16 %v664, %v663
    %v910 = vpack.c.b16 %v666, %v665
    %v911 = vpack.c.b16 %v668, %v667
    %v912 = vpack.c.b16 %v670, %v669
    %v913 = vpack.c.b16 %v672, %v671
    %v914 = vpack.c.b16 %v674, %v673
    %v915 = vpack.c.b16 %v676, %v675
    %v916 = vpack.c.b16 %v678, %v677
    %v917 = vpack.c.b16 %v680, %v679
    %v918 = vpack.c.b16 %v682, %v681
    %v919 = vpack.c.b16 %v684, %v683
    %v920 = vpack.c.b16 %v686, %v685
    %v921 = vpack.c.b16 %v688, %v687
    %v922 = vpack.c.b16 %v690, %v689
    %v923 = vpack.c.b16 %v692, %v691
    %v924 = vpack.c.b16 %v694, %v693
    %v925 = vpack.c.b16 %v696, %v695
    %v926 = vpack.c.b16 %v698, %v697
    %v927 = vpack.c.b16 %v700, %v699
    %v928 = vpack.c.b16 %v702, %v701
    %v929 = vpack.c.b16 %v704, %v703
    %v930 = vpack.c.b16 %v706, %v705
    %v931 = vpack.c.b16 %v708, %v707
    %v932 = vpack.c.b16 %v710, %v709
    %v933 = vpack.c.b16 %v712, %v711
    %v934 = vpack.c.b16 %v714, %v713
    %v935 = vpack.c.b16 %v716, %v715
    %v936 = vpack.c.b16 %v718, %v717
    %v937 = vpack.c.b16 %v720, %v719
    %v938 = vpack.c.b16 %v722, %v721
    %v939 = vpack.c.b16 %v724, %v723
    %v940 = vpack.c.b16 %v726, %v725
    %v941 = vpack.c.b16 %v728, %v727
    %v942 = vpack.c.b16 %v730, %v729
    %v943 = vpack.c.b16 %v732, %v731
    %v944 = vpack.c.b16 %v734, %v733
    %v945 = vpack.c.b16 %v736, %v735
    %v946 = vpack.c.b16 %v738, %v737
    %v947 = vpack.c.b16 %v740, %v739
    %v948 = vpack.c.b16 %v742, %v741
    %v949 = vpack.c.b16 %v744, %v743
    %v950 = vpack.c.b16 %v746, %v745
    %v951 = vpack.c.b16 %v748, %v747
    %v952 = vpack.c.b16 %v750, %v749
    %v953 = vpack.c.b16 %v752, %v751
    %v954 = vpack.c.b16 %v754, %v753
    %v955 = vpack.c.b16 %v756, %v755
    %v956 = vpack.c.b16 %v758, %v757
    %v957 = vpack.c.b16 %v760, %v759
    %v958 = vpack.c.b16 %v762, %v761
    %v959 = vpack.c.b16 %v764, %v763
    %v960 = vpack.c.b16 %v766, %v765
    %v961 = vpack.c.b16 %v768, %v767
    %v962 = vpack.c.b16 %v770, %v769
    %v963 = vpack.c.b16 %v772, %v771
    %v964 = vpack.c.b16 %v774, %v773
    %v965 = vpack.c.b16 %v776, %v775
    %v966 = vpack.c.b16 %v778, %v777
    %v967 = vpack.c.b16 %v780, %v779
    %v968 = vpack.c.b16 %v782, %v781
    %v969 = vpack.c.b16 %v784, %v783
    %v970 = vpack.c.b16 %v786, %v785
    %v971 = vpack.c.b16 %v788, %v787
    %v972 = vpack.c.b16 %v790, %v789
    %v973 = vpack.c.b16 %v792, %v791
    %v974 = vpack.c.b16 %v794, %v793
    %v975 = vpack.c.b16 %v796, %v795
    %v976 = vpack.c.b16 %v798, %v797
    %v977 = vpack.c.b16 %v800, %v799
    %v978 = vpack.c.b16 %v802, %v801
    %v979 = vpack.c.b16 %v804, %v803
    %v980 = vpack.c.b16 %v806, %v805
    %v981 = vpack.c.b16 %v808, %v807
    %v982 = vpack.c.b16 %v810, %v809
    %v983 = vpack.c.b16 %v812, %v811
    %v984 = vpack.c.b16 %v814, %v813
    %v985 = vpack.c.b16 %v816, %v815
    %v986 = vpack.c.b16 %v818, %v817
    %v987 = vpack.c.b16 %v820, %v819
    %v988 = vpack.c.b16 %v822, %v821
    %v989 = vpack.c.b16 %v824, %v823
    %v990 = vpack.c.b16 %v826, %v825
    %v991 = vpack.c.b16 %v828, %v827
    %v992 = vpack.c.b16 %v830, %v829
    %v993 = vpack.c.b16 %v832, %v831
    %v994 = vpack.c.b16 %v834, %v833
    %v995 = vpack.c.b16 %v836, %v835
    %v996 = vpack.c.b16 %v838, %v837
    %v997 = vpack.c.b16 %v840, %v839
    %v998 = vpack.c.b16 %v842, %v841
    %v999 = vpack.c.b16 %v844, %v843
    %v1000 = vpack.c.b16 %v846, %v845
    %v1001 = vpack.c.b16 %v848, %v847
    %v1002 = vpack.c.b16 %v850, %v849
    %v1003 = vpack.c.b16 %v852, %v851
    %v1004 = vpack.c.b16 %v854, %v853
    %v1005 = vpack.c.b16 %v856, %v855
    %v1006 = vpack.c.b16 %v858, %v857
    %v1007 = vpack.c.b16 %v860, %v859
    %v1008 = vpack.c.b16 %v862, %v861
    %v1009 = vpack.c.b16 %v864, %v863
    %v1010 = vpack.c.b16 %v866, %v865
    %v1011 = vpack.c.b16 %v868, %v867
    %v1012 = vpack.c.b16 %v870, %v869
    %v1013 = vpack.c.b16 %v872, %v871
    %v1014 = vpack.c.b16 %v874, %v873
    %v1015 = vpack.c.b16 %v876, %v875
    %v1016 = vpack.c.b16 %v878, %v877
    %v1017 = vpack.c.b16 %v880, %v879
    %v1018 = vpack.c.b16 %v882, %v881
    %v1019 = vpack.c.b16 %v884, %v883
    %v1020 = vpack.c.b16 %v886, %v885
    %v1021 = vpack.c.b16 %v888, %v887
    %v1022 = vpack.c.b16 %v890, %v889
    %v1023 = vpack.c.b16 %v892, %v891
    %v1024 = vpack.c.b16 %v894, %v893
    %v1025 = vpack.c.b16 %v896, %v895
    %v1026 = vpack.c.b16 %v898, %v897
    %1155 = vmatprep.subr.bf16.mxu0 0
    %1156 = vmatpush1.bf16.msra.mxu0 %v906
    %1157 = vmatprep.subr.bf16.mxu0 0
    %1158 = vmatpush1.bf16.msra.mxu0 %v905
    %1159 = vmatprep.subr.bf16.mxu0 0
    %1160 = vmatpush1.bf16.msra.mxu0 %v904
    %1161 = vmatprep.subr.bf16.mxu0 0
    %1162 = vmatpush1.bf16.msra.mxu0 %v903
    %1163 = vmatprep.subr.bf16.mxu0 0
    %1164 = vmatpush1.bf16.msra.mxu0 %v902
    %1165 = vmatprep.subr.bf16.mxu0 0
    %1166 = vmatpush1.bf16.msra.mxu0 %v901
    %1167 = vmatprep.subr.bf16.mxu0 0
    %1168 = vmatpush1.bf16.msra.mxu0 %v900
    %1169 = vmatprep.subr.bf16.mxu0 0
    %1170 = vmatpush1.bf16.msra.mxu0 %v899
    %1171 = vmatprep.subr.bf16.mxu0 0
    %1172 = vmatpush2.bf16.msra.mxu0 %v914
    %1173 = vmatprep.subr.bf16.mxu0 0
    %1174 = vmatpush2.bf16.msra.mxu0 %v913
    %1175 = vmatprep.subr.bf16.mxu0 0
    %1176 = vmatpush2.bf16.msra.mxu0 %v912
    %1177 = vmatprep.subr.bf16.mxu0 0
    %1178 = vmatpush2.bf16.msra.mxu0 %v911
    %1179 = vmatprep.subr.bf16.mxu0 0
    %1180 = vmatpush2.bf16.msra.mxu0 %v910
    %1181 = vmatprep.subr.bf16.mxu0 0
    %1182 = vmatpush2.bf16.msra.mxu0 %v909
    %1183 = vmatprep.subr.bf16.mxu0 0
    %1184 = vmatpush2.bf16.msra.mxu0 %v908
    %1185 = vmatprep.subr.bf16.mxu0 0
    %1186 = vmatpush2.bf16.msra.mxu0 %v907
    %1187 = vmatprep.mubr.bf16.mxu0 %v109
    %1188 = vmatmul.mubr.bf16.gmra.mxu0 %v108
    %v1189 = vpop.f32.mrf.mxu0
    %v1190 = vadd.f32 %v385, %v1189
    %v1191 = vpop.f32.mrf.mxu0
    %v1192 = vpop.f32.mrf.mxu0
    %v1193 = vpop.f32.mrf.mxu0
    %1194 = vdwg.mxu0
    %1195 = vmatprep.subr.bf16.mxu0 0
    %1196 = vmatpush1.bf16.msra.mxu0 %v922
    %1197 = vmatprep.subr.bf16.mxu0 0
    %1198 = vmatpush1.bf16.msra.mxu0 %v921
    %1199 = vmatprep.subr.bf16.mxu0 0
    %1200 = vmatpush1.bf16.msra.mxu0 %v920
    %1201 = vmatprep.subr.bf16.mxu0 0
    %1202 = vmatpush1.bf16.msra.mxu0 %v919
    %1203 = vmatprep.subr.bf16.mxu0 0
    %1204 = vmatpush1.bf16.msra.mxu0 %v918
    %1205 = vmatprep.subr.bf16.mxu0 0
    %1206 = vmatpush1.bf16.msra.mxu0 %v917
    %1207 = vmatprep.subr.bf16.mxu0 0
    %1208 = vmatpush1.bf16.msra.mxu0 %v916
    %1209 = vmatprep.subr.bf16.mxu0 0
    %1210 = vmatpush1.bf16.msra.mxu0 %v915
    %1211 = vmatprep.subr.bf16.mxu0 0
    %1212 = vmatpush2.bf16.msra.mxu0 %v930
    %1213 = vmatprep.subr.bf16.mxu0 0
    %1214 = vmatpush2.bf16.msra.mxu0 %v929
    %1215 = vmatprep.subr.bf16.mxu0 0
    %1216 = vmatpush2.bf16.msra.mxu0 %v928
    %1217 = vmatprep.subr.bf16.mxu0 0
    %1218 = vmatpush2.bf16.msra.mxu0 %v927
    %1219 = vmatprep.subr.bf16.mxu0 0
    %1220 = vmatpush2.bf16.msra.mxu0 %v926
    %1221 = vmatprep.subr.bf16.mxu0 0
    %1222 = vmatpush2.bf16.msra.mxu0 %v925
    %1223 = vmatprep.subr.bf16.mxu0 0
    %1224 = vmatpush2.bf16.msra.mxu0 %v924
    %1225 = vmatprep.subr.bf16.mxu0 0
    %1226 = vmatpush2.bf16.msra.mxu0 %v923
    %1227 = vmatprep.mubr.bf16.mxu0 %v111
    %1228 = vmatmul.mubr.bf16.gmra.mxu0 %v110
    %v1229 = vpop.f32.mrf.mxu0
    %v1230 = vadd.f32 %v1190, %v1229
    %v1231 = vpop.f32.mrf.mxu0
    %v1232 = vpop.f32.mrf.mxu0
    %v1233 = vpop.f32.mrf.mxu0
    %1234 = vdwg.mxu0
    %1235 = vmatprep.subr.bf16.mxu0 0
    %1236 = vmatpush1.bf16.msra.mxu0 %v938
    %1237 = vmatprep.subr.bf16.mxu0 0
    %1238 = vmatpush1.bf16.msra.mxu0 %v937
    %1239 = vmatprep.subr.bf16.mxu0 0
    %1240 = vmatpush1.bf16.msra.mxu0 %v936
    %1241 = vmatprep.subr.bf16.mxu0 0
    %1242 = vmatpush1.bf16.msra.mxu0 %v935
    %1243 = vmatprep.subr.bf16.mxu0 0
    %1244 = vmatpush1.bf16.msra.mxu0 %v934
    %1245 = vmatprep.subr.bf16.mxu0 0
    %1246 = vmatpush1.bf16.msra.mxu0 %v933
    %1247 = vmatprep.subr.bf16.mxu0 0
    %1248 = vmatpush1.bf16.msra.mxu0 %v932
    %1249 = vmatprep.subr.bf16.mxu0 0
    %1250 = vmatpush1.bf16.msra.mxu0 %v931
    %1251 = vmatprep.subr.bf16.mxu0 0
    %1252 = vmatpush2.bf16.msra.mxu0 %v946
    %1253 = vmatprep.subr.bf16.mxu0 0
    %1254 = vmatpush2.bf16.msra.mxu0 %v945
    %1255 = vmatprep.subr.bf16.mxu0 0
    %1256 = vmatpush2.bf16.msra.mxu0 %v944
    %1257 = vmatprep.subr.bf16.mxu0 0
    %1258 = vmatpush2.bf16.msra.mxu0 %v943
    %1259 = vmatprep.subr.bf16.mxu0 0
    %1260 = vmatpush2.bf16.msra.mxu0 %v942
    %1261 = vmatprep.subr.bf16.mxu0 0
    %1262 = vmatpush2.bf16.msra.mxu0 %v941
    %1263 = vmatprep.subr.bf16.mxu0 0
    %1264 = vmatpush2.bf16.msra.mxu0 %v940
    %1265 = vmatprep.subr.bf16.mxu0 0
    %1266 = vmatpush2.bf16.msra.mxu0 %v939
    %1267 = vmatprep.mubr.bf16.mxu0 %v113
    %1268 = vmatmul.mubr.bf16.gmra.mxu0 %v112
    %v1269 = vpop.f32.mrf.mxu0
    %v1270 = vadd.f32 %v1230, %v1269
    %v1271 = vpop.f32.mrf.mxu0
    %v1272 = vpop.f32.mrf.mxu0
    %v1273 = vpop.f32.mrf.mxu0
    %1274 = vdwg.mxu0
    %1275 = vmatprep.subr.bf16.mxu0 0
    %1276 = vmatpush1.bf16.msra.mxu0 %v954
    %1277 = vmatprep.subr.bf16.mxu0 0
    %1278 = vmatpush1.bf16.msra.mxu0 %v953
    %1279 = vmatprep.subr.bf16.mxu0 0
    %1280 = vmatpush1.bf16.msra.mxu0 %v952
    %1281 = vmatprep.subr.bf16.mxu0 0
    %1282 = vmatpush1.bf16.msra.mxu0 %v951
    %1283 = vmatprep.subr.bf16.mxu0 0
    %1284 = vmatpush1.bf16.msra.mxu0 %v950
    %1285 = vmatprep.subr.bf16.mxu0 0
    %1286 = vmatpush1.bf16.msra.mxu0 %v949
    %1287 = vmatprep.subr.bf16.mxu0 0
    %1288 = vmatpush1.bf16.msra.mxu0 %v948
    %1289 = vmatprep.subr.bf16.mxu0 0
    %1290 = vmatpush1.bf16.msra.mxu0 %v947
    %1291 = vmatprep.subr.bf16.mxu0 0
    %1292 = vmatpush2.bf16.msra.mxu0 %v962
    %1293 = vmatprep.subr.bf16.mxu0 0
    %1294 = vmatpush2.bf16.msra.mxu0 %v961
    %1295 = vmatprep.subr.bf16.mxu0 0
    %1296 = vmatpush2.bf16.msra.mxu0 %v960
    %1297 = vmatprep.subr.bf16.mxu0 0
    %1298 = vmatpush2.bf16.msra.mxu0 %v959
    %1299 = vmatprep.subr.bf16.mxu0 0
    %1300 = vmatpush2.bf16.msra.mxu0 %v958
    %1301 = vmatprep.subr.bf16.mxu0 0
    %1302 = vmatpush2.bf16.msra.mxu0 %v957
    %1303 = vmatprep.subr.bf16.mxu0 0
    %1304 = vmatpush2.bf16.msra.mxu0 %v956
    %1305 = vmatprep.subr.bf16.mxu0 0
    %1306 = vmatpush2.bf16.msra.mxu0 %v955
    %1307 = vmatprep.mubr.bf16.mxu0 %v115
    %1308 = vmatmul.mubr.bf16.gmra.mxu0 %v114
    %v1309 = vpop.f32.mrf.mxu0
    %v1310 = vadd.f32 %v1270, %v1309
    %v1311 = vpop.f32.mrf.mxu0
    %v1312 = vpop.f32.mrf.mxu0
    %v1313 = vpop.f32.mrf.mxu0
    %1314 = vdwg.mxu0
    %1315 = vmatprep.subr.bf16.mxu0 0
    %1316 = vmatpush1.bf16.msra.mxu0 %v970
    %1317 = vmatprep.subr.bf16.mxu0 0
    %1318 = vmatpush1.bf16.msra.mxu0 %v969
    %1319 = vmatprep.subr.bf16.mxu0 0
    %1320 = vmatpush1.bf16.msra.mxu0 %v968
    %1321 = vmatprep.subr.bf16.mxu0 0
    %1322 = vmatpush1.bf16.msra.mxu0 %v967
    %1323 = vmatprep.subr.bf16.mxu0 0
    %1324 = vmatpush1.bf16.msra.mxu0 %v966
    %1325 = vmatprep.subr.bf16.mxu0 0
    %1326 = vmatpush1.bf16.msra.mxu0 %v965
    %1327 = vmatprep.subr.bf16.mxu0 0
    %1328 = vmatpush1.bf16.msra.mxu0 %v964
    %1329 = vmatprep.subr.bf16.mxu0 0
    %1330 = vmatpush1.bf16.msra.mxu0 %v963
    %1331 = vmatprep.subr.bf16.mxu0 0
    %1332 = vmatpush2.bf16.msra.mxu0 %v978
    %1333 = vmatprep.subr.bf16.mxu0 0
    %1334 = vmatpush2.bf16.msra.mxu0 %v977
    %1335 = vmatprep.subr.bf16.mxu0 0
    %1336 = vmatpush2.bf16.msra.mxu0 %v976
    %1337 = vmatprep.subr.bf16.mxu0 0
    %1338 = vmatpush2.bf16.msra.mxu0 %v975
    %1339 = vmatprep.subr.bf16.mxu0 0
    %1340 = vmatpush2.bf16.msra.mxu0 %v974
    %1341 = vmatprep.subr.bf16.mxu0 0
    %1342 = vmatpush2.bf16.msra.mxu0 %v973
    %1343 = vmatprep.subr.bf16.mxu0 0
    %1344 = vmatpush2.bf16.msra.mxu0 %v972
    %1345 = vmatprep.subr.bf16.mxu0 0
    %1346 = vmatpush2.bf16.msra.mxu0 %v971
    %1347 = vmatprep.mubr.bf16.mxu0 %v117
    %1348 = vmatmul.mubr.bf16.gmra.mxu0 %v116
    %v1349 = vpop.f32.mrf.mxu0
    %v1350 = vadd.f32 %v1310, %v1349
    %v1351 = vpop.f32.mrf.mxu0
    %v1352 = vpop.f32.mrf.mxu0
    %v1353 = vpop.f32.mrf.mxu0
    %1354 = vdwg.mxu0
    %1355 = vmatprep.subr.bf16.mxu0 0
    %1356 = vmatpush1.bf16.msra.mxu0 %v986
    %1357 = vmatprep.subr.bf16.mxu0 0
    %1358 = vmatpush1.bf16.msra.mxu0 %v985
    %1359 = vmatprep.subr.bf16.mxu0 0
    %1360 = vmatpush1.bf16.msra.mxu0 %v984
    %1361 = vmatprep.subr.bf16.mxu0 0
    %1362 = vmatpush1.bf16.msra.mxu0 %v983
    %1363 = vmatprep.subr.bf16.mxu0 0
    %1364 = vmatpush1.bf16.msra.mxu0 %v982
    %1365 = vmatprep.subr.bf16.mxu0 0
    %1366 = vmatpush1.bf16.msra.mxu0 %v981
    %1367 = vmatprep.subr.bf16.mxu0 0
    %1368 = vmatpush1.bf16.msra.mxu0 %v980
    %1369 = vmatprep.subr.bf16.mxu0 0
    %1370 = vmatpush1.bf16.msra.mxu0 %v979
    %1371 = vmatprep.subr.bf16.mxu0 0
    %1372 = vmatpush2.bf16.msra.mxu0 %v994
    %1373 = vmatprep.subr.bf16.mxu0 0
    %1374 = vmatpush2.bf16.msra.mxu0 %v993
    %1375 = vmatprep.subr.bf16.mxu0 0
    %1376 = vmatpush2.bf16.msra.mxu0 %v992
    %1377 = vmatprep.subr.bf16.mxu0 0
    %1378 = vmatpush2.bf16.msra.mxu0 %v991
    %1379 = vmatprep.subr.bf16.mxu0 0
    %1380 = vmatpush2.bf16.msra.mxu0 %v990
    %1381 = vmatprep.subr.bf16.mxu0 0
    %1382 = vmatpush2.bf16.msra.mxu0 %v989
    %1383 = vmatprep.subr.bf16.mxu0 0
    %1384 = vmatpush2.bf16.msra.mxu0 %v988
    %1385 = vmatprep.subr.bf16.mxu0 0
    %1386 = vmatpush2.bf16.msra.mxu0 %v987
    %1387 = vmatprep.mubr.bf16.mxu0 %v119
    %1388 = vmatmul.mubr.bf16.gmra.mxu0 %v118
    %v1389 = vpop.f32.mrf.mxu0
    %v1390 = vadd.f32 %v1350, %v1389
    %v1391 = vpop.f32.mrf.mxu0
    %v1392 = vpop.f32.mrf.mxu0
    %v1393 = vpop.f32.mrf.mxu0
    %1394 = vdwg.mxu0
    %1395 = vmatprep.subr.bf16.mxu0 0
    %1396 = vmatpush1.bf16.msra.mxu0 %v1002
    %1397 = vmatprep.subr.bf16.mxu0 0
    %1398 = vmatpush1.bf16.msra.mxu0 %v1001
    %1399 = vmatprep.subr.bf16.mxu0 0
    %1400 = vmatpush1.bf16.msra.mxu0 %v1000
    %1401 = vmatprep.subr.bf16.mxu0 0
    %1402 = vmatpush1.bf16.msra.mxu0 %v999
    %1403 = vmatprep.subr.bf16.mxu0 0
    %1404 = vmatpush1.bf16.msra.mxu0 %v998
    %1405 = vmatprep.subr.bf16.mxu0 0
    %1406 = vmatpush1.bf16.msra.mxu0 %v997
    %1407 = vmatprep.subr.bf16.mxu0 0
    %1408 = vmatpush1.bf16.msra.mxu0 %v996
    %1409 = vmatprep.subr.bf16.mxu0 0
    %1410 = vmatpush1.bf16.msra.mxu0 %v995
    %1411 = vmatprep.subr.bf16.mxu0 0
    %1412 = vmatpush2.bf16.msra.mxu0 %v1010
    %1413 = vmatprep.subr.bf16.mxu0 0
    %1414 = vmatpush2.bf16.msra.mxu0 %v1009
    %1415 = vmatprep.subr.bf16.mxu0 0
    %1416 = vmatpush2.bf16.msra.mxu0 %v1008
    %1417 = vmatprep.subr.bf16.mxu0 0
    %1418 = vmatpush2.bf16.msra.mxu0 %v1007
    %1419 = vmatprep.subr.bf16.mxu0 0
    %1420 = vmatpush2.bf16.msra.mxu0 %v1006
    %1421 = vmatprep.subr.bf16.mxu0 0
    %1422 = vmatpush2.bf16.msra.mxu0 %v1005
    %1423 = vmatprep.subr.bf16.mxu0 0
    %1424 = vmatpush2.bf16.msra.mxu0 %v1004
    %1425 = vmatprep.subr.bf16.mxu0 0
    %1426 = vmatpush2.bf16.msra.mxu0 %v1003
    %1427 = vmatprep.mubr.bf16.mxu0 %v121
    %1428 = vmatmul.mubr.bf16.gmra.mxu0 %v120
    %v1429 = vpop.f32.mrf.mxu0
    %v1430 = vadd.f32 %v1390, %v1429
    %v1431 = vpop.f32.mrf.mxu0
    %v1432 = vpop.f32.mrf.mxu0
    %v1433 = vpop.f32.mrf.mxu0
    %1434 = vdwg.mxu0
    %1435 = vmatprep.subr.bf16.mxu0 0
    %1436 = vmatpush1.bf16.msra.mxu0 %v1018
    %1437 = vmatprep.subr.bf16.mxu0 0
    %1438 = vmatpush1.bf16.msra.mxu0 %v1017
    %1439 = vmatprep.subr.bf16.mxu0 0
    %1440 = vmatpush1.bf16.msra.mxu0 %v1016
    %1441 = vmatprep.subr.bf16.mxu0 0
    %1442 = vmatpush1.bf16.msra.mxu0 %v1015
    %1443 = vmatprep.subr.bf16.mxu0 0
    %1444 = vmatpush1.bf16.msra.mxu0 %v1014
    %1445 = vmatprep.subr.bf16.mxu0 0
    %1446 = vmatpush1.bf16.msra.mxu0 %v1013
    %1447 = vmatprep.subr.bf16.mxu0 0
    %1448 = vmatpush1.bf16.msra.mxu0 %v1012
    %1449 = vmatprep.subr.bf16.mxu0 0
    %1450 = vmatpush1.bf16.msra.mxu0 %v1011
    %1451 = vmatprep.subr.bf16.mxu0 0
    %1452 = vmatpush2.bf16.msra.mxu0 %v1026
    %1453 = vmatprep.subr.bf16.mxu0 0
    %1454 = vmatpush2.bf16.msra.mxu0 %v1025
    %1455 = vmatprep.subr.bf16.mxu0 0
    %1456 = vmatpush2.bf16.msra.mxu0 %v1024
    %1457 = vmatprep.subr.bf16.mxu0 0
    %1458 = vmatpush2.bf16.msra.mxu0 %v1023
    %1459 = vmatprep.subr.bf16.mxu0 0
    %1460 = vmatpush2.bf16.msra.mxu0 %v1022
    %1461 = vmatprep.subr.bf16.mxu0 0
    %1462 = vmatpush2.bf16.msra.mxu0 %v1021
    %1463 = vmatprep.subr.bf16.mxu0 0
    %1464 = vmatpush2.bf16.msra.mxu0 %v1020
    %1465 = vmatprep.subr.bf16.mxu0 0
    %1466 = vmatpush2.bf16.msra.mxu0 %v1019
    %1467 = vmatprep.mubr.bf16.mxu0 %v123
    %1468 = vmatmul.mubr.bf16.gmra.mxu0 %v122
    %v1469 = vpop.f32.mrf.mxu0
    %v1470 = vadd.f32 %v1430, %v1469
    %v1471 = vpop.f32.mrf.mxu0
    %v1472 = vpop.f32.mrf.mxu0
    %v1473 = vpop.f32.mrf.mxu0
    %1474 = vdwg.mxu0
    %v1475 = vsub.f32 0.0, %v1470
    %v1476 = vmul.f32 %v1475, 1.442695
    %v1477 = vpow.pop %v1476
    %v1478 = vadd.f32 %v1477, 1.0
    %v1479 = vrcp.pop %v1478
    %v1480 = vmul.f32 1.0, %v1479
    %vm1481 = vcmask 517120
    %1482 = vst.msk [vmem:[#allocation2] sm:$0x3] %vm1481, %v1480
    // Predicated region
    $region14: #{model_d_forward.3} parent=1 // pred_check
      _
    $region15: #{model_d_forward.3} parent=1 // pred_check_branch
      %1484 = sbr.rel (0) target = $region17
    $region16: #{model_d_forward.3} parent=1 // pred_region
      %s1486 = ssub.s32 32, 32
      %1487 = vsyncadd [#allocation3], %s1486
      %s1489 = sshll.u32 [#allocation2], 4
      %s1490 = int_to_ptr.vmem [resolvable:$true] %s1489
      %1492 = dma.vmem_to_hbm [thread:$0]  %s1490, 32, %s3, [#allocation3]
    $region17: #{model_d_forward.3} parent=1 // pred_fallthru
      _
    // Predicated region
    $region18: #{model_d_forward.3} parent=1 // pred_check
      _
    $region19: #{model_d_forward.3} parent=1 // pred_check_branch
      %1494 = sbr.rel (0) target = $region21
    $region20: #{model_d_forward.3} parent=1 // pred_region
      %1495 = dma.done [#allocation3], 32
    $region21: #{model_d_forward.3} parent=1 // pred_fallthru
      _
    %1496 = vsyncpa [#allocation3], 1

</llo_original>
